<compile_context>
chip_gen: v6e
topology: v6e:2x2x1
jax: 0.10.0
libtpu: 0.0.40
codegen_flags: <defaults>
</compile_context>

<pallas_src>
import functools
import math

import jax
import jax.numpy as jnp
from jax import lax
from jax.experimental import pallas as pl

# f32 matmul parity between the kernel and the pure-JAX reference (root cause of the
# previous miscompare): force full-f32 MXU passes everywhere, compiled or interpreted.
jax.config.update("jax_default_matmul_precision", "highest")

_HIGHEST = jax.lax.Precision.HIGHEST


def _round8(x):
    return ((x + 7) // 8) * 8


def _slab_layout(L, S, N, H, E, Din, Dc):
    """Row offsets of the packed parameter/constant slab (single input DMA).

    Every section starts on an 8-row (sublane-tile) boundary.
    """
    NE, NHS = N * E, N * H * S
    offs, r = {}, 0
    offs["b_xq"] = r; r += 8                 # row: fused q bias * scale, batch-tiled  (1, NE)
    offs["b_ckv"] = r; r += 8                # row: fused k|v bias, batch-tiled        (1, 2*NE)
    offs["b_o"] = r; r += 8                  # row: out-proj bias, batch-tiled         (1, NE)
    offs["wxq"] = r; r += _round8(N * Din)   # (N*Din, NE)   linear1@ (Wq*scale), block-diag over batch
    offs["wckv"] = r; r += _round8(N * Dc)   # (N*Dc, 2*NE)  linear2@[Wk|Wv], block-diag over batch
    offs["msel"] = r; r += _round8(NHS)      # (NHS, NE)     0/1 (batch, head) selector
    offs["wo"] = r; r += _round8(NE)         # (NE, NE)      Wo, block-diag over batch
    offs["ones"] = r; r += _round8(NHS)      # (NHS, NHS)    per-(batch,head) block of ones
    offs["mask"] = r; r += _round8(2 * L)    # (2*L, NHS)    both masks, pre-tiled over (batch, head)
    width = max(2 * NE, NHS)
    return offs, r, width


def _block_diag(block, n):
    r, c = block.shape
    out = jnp.zeros((n * r, n * c), block.dtype)
    for i in range(n):
        out = out.at[i * r:(i + 1) * r, i * c:(i + 1) * c].set(block)
    return out


def _pack_slab(params, attn_mask1, attn_mask2, dims):
    """Host-side parameter folding + packing into one lane-dense f32 slab."""
    L, S, N, H, E, Din, Dc = dims
    d = E // H
    NE, NHS = N * E, N * H * S
    scale = 1.0 / math.sqrt(d)
    f32 = jnp.float32
    offs, rows, width = _slab_layout(L, S, N, H, E, Din, Dc)

    # Exact algebraic folds:  (x@W1+b1)@Wq+bq == x@(W1@Wq) + (b1@Wq+bq); scale folded
    # into the q path; Wk|Wv fused so k and v come out of one matmul.
    w_xq = params["w1"] @ (params["wq"] * scale)                       # (Din, E)
    b_xq = (params["b1"] @ params["wq"] + params["bq"]) * scale        # (1, E)
    w_ck = params["w2"] @ params["wk"]                                 # (Dc, E)
    w_cv = params["w2"] @ params["wv"]                                 # (Dc, E)
    b_ck = params["b2"] @ params["wk"] + params["bk"]                  # (1, E)
    b_cv = params["b2"] @ params["wv"] + params["bv"]                  # (1, E)

    w_xq_blk = _block_diag(w_xq.astype(f32), N)                        # (N*Din, NE)
    w_ckv_blk = jnp.concatenate([_block_diag(w_ck.astype(f32), N),
                                 _block_diag(w_cv.astype(f32), N)], axis=1)  # (N*Dc, 2*NE)
    w_o_blk = _block_diag(params["wo"].astype(f32), N)                 # (NE, NE)

    b_xq_t = jnp.tile(b_xq.astype(f32), (1, N))                        # (1, NE)
    b_ckv_t = jnp.concatenate([jnp.tile(b_ck.astype(f32), (1, N)),
                               jnp.tile(b_cv.astype(f32), (1, N))], axis=1)  # (1, 2*NE)
    b_o_t = jnp.tile(params["bo"].astype(f32), (1, N))                 # (1, NE)

    # 0/1 selector: row (n*H+h)*S+s matches column n'*E+j iff n'==n and j is in head h.
    r_idx = jnp.arange(NHS)
    c_idx = jnp.arange(NE)
    r_n, r_h = r_idx // (H * S), (r_idx % (H * S)) // S
    c_n, c_h = c_idx // E, (c_idx % E) // d
    m_sel = ((r_n[:, None] == c_n[None, :]) &
             (r_h[:, None] == c_h[None, :])).astype(f32)               # (NHS, NE)

    # block-of-ones: lanes in the same (batch, head) group of S (softmax denominators).
    g = jnp.arange(NHS) // S
    ones_blk = (g[:, None] == g[None, :]).astype(f32)                  # (NHS, NHS)

    # additive masks pre-tiled across the (batch, head) lane groups, stacked along rows.
    masks = jnp.concatenate([jnp.tile(attn_mask1.astype(f32), (1, N * H)),
                             jnp.tile(attn_mask2.astype(f32), (1, N * H))], axis=0)  # (2L, NHS)

    slab = jnp.zeros((rows, width), f32)
    slab = slab.at[offs["b_xq"], 0:NE].set(b_xq_t[0])
    slab = slab.at[offs["b_ckv"], 0:2 * NE].set(b_ckv_t[0])
    slab = slab.at[offs["b_o"], 0:NE].set(b_o_t[0])
    slab = slab.at[offs["wxq"]:offs["wxq"] + N * Din, 0:NE].set(w_xq_blk)
    slab = slab.at[offs["wckv"]:offs["wckv"] + N * Dc, 0:2 * NE].set(w_ckv_blk)
    slab = slab.at[offs["msel"]:offs["msel"] + NHS, 0:NE].set(m_sel)
    slab = slab.at[offs["wo"]:offs["wo"] + NE, 0:NE].set(w_o_blk)
    slab = slab.at[offs["ones"]:offs["ones"] + NHS, 0:NHS].set(ones_blk)
    slab = slab.at[offs["mask"]:offs["mask"] + 2 * L, 0:NHS].set(masks)
    return slab, offs


def _cond_ar_kernel(dims, offs, x_ref, c_ref, slab_ref, out_ref):
    L, S, N, H, E, Din, Dc = dims
    NE, NHS = N * E, N * H * S
    f32 = jnp.float32

    b_xq = slab_ref[offs["b_xq"]:offs["b_xq"] + 1, 0:NE]            # (1, NE)
    b_ckv = slab_ref[offs["b_ckv"]:offs["b_ckv"] + 1, 0:2 * NE]     # (1, 2*NE)
    b_o = slab_ref[offs["b_o"]:offs["b_o"] + 1, 0:NE]               # (1, NE)
    w_xq = slab_ref[offs["wxq"]:offs["wxq"] + N * Din, 0:NE]        # (N*Din, NE)
    w_ckv = slab_ref[offs["wckv"]:offs["wckv"] + N * Dc, 0:2 * NE]  # (N*Dc, 2*NE)
    m_sel = slab_ref[offs["msel"]:offs["msel"] + NHS, 0:NE]         # (NHS, NE)
    w_o = slab_ref[offs["wo"]:offs["wo"] + NE, 0:NE]                # (NE, NE)
    ones_blk = slab_ref[offs["ones"]:offs["ones"] + NHS, 0:NHS]     # (NHS, NHS)

    # Fused in-projections, all batches at once (weights are batch-block-diagonal):
    #   q_all[l, n*E+e]       = scale * ((linear1(x_n)) @ Wq + bq)[l, e]
    #   kv_all[s, n*E+e]      = (linear2(c_n) @ Wk + bk)[s, e]
    #   kv_all[s, NE+n*E+e]   = (linear2(c_n) @ Wv + bv)[s, e]
    q_all = jnp.dot(x_ref[...], w_xq, precision=_HIGHEST,
                    preferred_element_type=f32) + b_xq              # (L, NE)
    kv_all = jnp.dot(c_ref[...], w_ckv, precision=_HIGHEST,
                     preferred_element_type=f32) + b_ckv            # (S, 2*NE)
    k_all = kv_all[:, :NE]                                          # (S, NE)
    v_all = kv_all[:, NE:2 * NE]                                    # (S, NE)

    # (batch, head)-block-diagonal expansions of K and V: sublane-tile + 0/1 selector.
    # No per-head loops and no transposes anywhere in the kernel.
    k_blk = jnp.concatenate([k_all] * (N * H), axis=0) * m_sel      # (NHS, NE)
    v_blk = jnp.concatenate([v_all] * (N * H), axis=0) * m_sel      # (NHS, NE)

    # All (batch, head) attention scores in ONE matmul (contract embed dims directly):
    #   s_all[l, (n*H+h)*S + s] = sum_{e in head h} q_n[l, e] * k_n[s, e]   (scale folded in q)
    s_all = lax.dot_general(q_all, k_blk, (((1,), (1,)), ((), ())),
                            precision=_HIGHEST,
                            preferred_element_type=f32)             # (L, NHS)

    # Wo pre-projected values, shared by both masked passes:
    #   u_blk[(n*H+h)*S + s, n*E + e] = (v_{n,h} @ Wo_h)[s, e]
    u_blk = jnp.dot(v_blk, w_o, precision=_HIGHEST,
                    preferred_element_type=f32)                     # (NHS, NE)

    ys = []
    for idx in range(2):                       # the two attention masks (static loop)
        row = offs["mask"] + idx * L
        a = s_all + slab_ref[row:row + L, 0:NHS]                    # (L, NHS)
        # per-row shift (softmax is shift-invariant per (row, head); one lane-dense pass)
        a = a - jnp.max(a, axis=-1, keepdims=True)
        ea = jnp.exp(a)
        # per-(batch, head) denominators broadcast back over their S lanes via one matmul
        denom = jnp.dot(ea, ones_blk, precision=_HIGHEST,
                        preferred_element_type=f32)                 # (L, NHS)
        p = ea / denom                          # exact divide (no approx reciprocal)
        ys.append(jnp.dot(p, u_blk, precision=_HIGHEST,
                          preferred_element_type=f32) + b_o)        # (L, NE)

    # one full-width lane-dense (L, 2*N*E) store
    out_ref[...] = jnp.concatenate(ys, axis=1)


def cond_autoregressive_layer(input_x, condition, attn_mask1, attn_mask2,
                              params, num_heads):
    """input_x: (L, N, Din), condition: (S, N, Dc), masks: (L, S) additive float.

    Returns (y1, y2), each (L, N, E) -- same seq-first layout as the PyTorch module.
    """
    L, N, Din = input_x.shape
    S, Nc, Dc = condition.shape
    assert Nc == N
    E = params["w1"].shape[1]
    H = num_heads
    dims = (L, S, N, H, E, Din, Dc)
    NE = N * E

    slab, offs = _pack_slab(params, attn_mask1, attn_mask2, dims)

    # Free, layout-preserving minor-dim reshapes (no HBM transpose round-trips).
    x2d = input_x.reshape(L, N * Din).astype(jnp.float32)
    c2d = condition.reshape(S, N * Dc).astype(jnp.float32)

    kernel = functools.partial(_cond_ar_kernel, dims, offs)

    # Single invocation (grid=()), whole arrays resident in VMEM (~160 KiB total),
    # default whole-array BlockSpecs, one lane-dense output slab.
    out = pl.pallas_call(
        kernel,
        out_shape=jax.ShapeDtypeStruct((L, 2 * NE), jnp.float32),
    )(x2d, c2d, slab)

    out = out.reshape(L, 2, N, E)
    return out[:, 0], out[:, 1]


def _reference_single(input_x, condition, mask, params, num_heads):
    """Pure-JAX replica of linear1/linear2 + nn.MultiheadAttention forward."""
    xq = input_x @ params["w1"] + params["b1"][0]
    ck = condition @ params["w2"] + params["b2"][0]
    q = xq @ params["wq"] + params["bq"][0]
    k = ck @ params["wk"] + params["bk"][0]
    v = ck @ params["wv"] + params["bv"][0]
    L, N, E = q.shape
    S = k.shape[0]
    d = E // num_heads
    qh = jnp.transpose(q.reshape(L, N, num_heads, d), (1, 2, 0, 3))  # (N,H,L,d)
    kh = jnp.transpose(k.reshape(S, N, num_heads, d), (1, 2, 0, 3))
    vh = jnp.transpose(v.reshape(S, N, num_heads, d), (1, 2, 0, 3))
    s = jnp.einsum("nhld,nhsd->nhls", qh, kh) / math.sqrt(d) + mask
    p = jax.nn.softmax(s, axis=-1)
    o = jnp.einsum("nhls,nhsd->nhld", p, vh)
    o = jnp.transpose(o, (2, 0, 1, 3)).reshape(L, N, E)
    return o @ params["wo"] + params["bo"][0]


if __name__ == "__main__":
    # Small shapes consistent with the module's forward.
    L, S, N = 8, 8, 2                    # target seq, source (condition) seq, batch
    input_dim, cond_dim = 16, 24
    embed_dim, num_heads = 32, 4

    key = jax.random.PRNGKey(0)
    ks = jax.random.split(key, 16)

    def init_w(k, din, dout):
        return jax.random.normal(k, (din, dout), jnp.float32) / math.sqrt(din)

    params = {
        "w1": init_w(ks[0], input_dim, embed_dim),
        "b1": 0.02 * jax.random.normal(ks[1], (1, embed_dim), jnp.float32),
        "w2": init_w(ks[2], cond_dim, embed_dim),
        "b2": 0.02 * jax.random.normal(ks[3], (1, embed_dim), jnp.float32),
        "wq": init_w(ks[4], embed_dim, embed_dim),
        "bq": 0.02 * jax.random.normal(ks[5], (1, embed_dim), jnp.float32),
        "wk": init_w(ks[6], embed_dim, embed_dim),
        "bk": 0.02 * jax.random.normal(ks[7], (1, embed_dim), jnp.float32),
        "wv": init_w(ks[8], embed_dim, embed_dim),
        "bv": 0.02 * jax.random.normal(ks[9], (1, embed_dim), jnp.float32),
        "wo": init_w(ks[10], embed_dim, embed_dim),
        "bo": 0.02 * jax.random.normal(ks[11], (1, embed_dim), jnp.float32),
    }

    input_x = jax.random.normal(ks[12], (L, N, input_dim), jnp.float32)
    condition = jax.random.normal(ks[13], (S, N, cond_dim), jnp.float32)
    # additive float attention masks (PyTorch attn_mask semantics: added to scores)
    causal = jnp.tril(jnp.ones((L, S), jnp.float32))
    attention_mask1 = jnp.where(causal > 0, 0.0, -1e9).astype(jnp.float32)
    attention_mask2 = 0.5 * jax.random.normal(ks[14], (L, S), jnp.float32)

    y1, y2 = cond_autoregressive_layer(
        input_x, condition, attention_mask1, attention_mask2, params, num_heads)
    jax.block_until_ready((y1, y2))

    y1_ref = _reference_single(input_x, condition, attention_mask1, params, num_heads)
    y2_ref = _reference_single(input_x, condition, attention_mask2, params, num_heads)

    assert y1.shape == (L, N, embed_dim) and y2.shape == (L, N, embed_dim)
    assert jnp.allclose(y1, y1_ref, rtol=2e-3, atol=2e-3), \
        float(jnp.max(jnp.abs(y1 - y1_ref)))
    assert jnp.allclose(y2, y2_ref, rtol=2e-3, atol=2e-3), \
        float(jnp.max(jnp.abs(y2 - y2_ref)))

    print("KERNEL_OK")
</pallas_src>

<mosaic_0001>
module attributes {stable_mosaic.version = 11 : i64} {
  func.func @_cond_ar_kernel(%arg0: memref<8x32xf32, #tpu.memory_space<vmem>>, %arg1: memref<8x48xf32, #tpu.memory_space<vmem>>, %arg2: memref<312x128xf32, #tpu.memory_space<vmem>>, %arg3: memref<8x128xf32, #tpu.memory_space<vmem>>) attributes {dimension_semantics = [], scalar_prefetch = 0 : i64, scratch_operands = 0 : i64, tpu.core_type = #tpu.core_type<tc>} {
    %c0 = arith.constant 0 : index
    %c0_0 = arith.constant 0 : index
    %0 = vector.load %arg2[%c0, %c0_0] : memref<312x128xf32, #tpu.memory_space<vmem>>, vector<1x64xf32>
    %c8 = arith.constant 8 : index
    %c0_1 = arith.constant 0 : index
    %1 = vector.load %arg2[%c8, %c0_1] : memref<312x128xf32, #tpu.memory_space<vmem>>, vector<1x128xf32>
    %c16 = arith.constant 16 : index
    %c0_2 = arith.constant 0 : index
    %2 = vector.load %arg2[%c16, %c0_2] : memref<312x128xf32, #tpu.memory_space<vmem>>, vector<1x64xf32>
    %c24 = arith.constant 24 : index
    %c0_3 = arith.constant 0 : index
    %3 = vector.load %arg2[%c24, %c0_3] : memref<312x128xf32, #tpu.memory_space<vmem>>, vector<32x64xf32>
    %c56 = arith.constant 56 : index
    %c0_4 = arith.constant 0 : index
    %4 = vector.load %arg2[%c56, %c0_4] : memref<312x128xf32, #tpu.memory_space<vmem>>, vector<48x128xf32>
    %c104 = arith.constant 104 : index
    %c0_5 = arith.constant 0 : index
    %5 = vector.load %arg2[%c104, %c0_5] : memref<312x128xf32, #tpu.memory_space<vmem>>, vector<64x64xf32>
    %c168 = arith.constant 168 : index
    %c0_6 = arith.constant 0 : index
    %6 = vector.load %arg2[%c168, %c0_6] : memref<312x128xf32, #tpu.memory_space<vmem>>, vector<64x64xf32>
    %c232 = arith.constant 232 : index
    %c0_7 = arith.constant 0 : index
    %7 = vector.load %arg2[%c232, %c0_7] : memref<312x128xf32, #tpu.memory_space<vmem>>, vector<64x64xf32>
    %c0_8 = arith.constant 0 : index
    %c0_9 = arith.constant 0 : index
    %8 = vector.load %arg0[%c0_8, %c0_9] : memref<8x32xf32, #tpu.memory_space<vmem>>, vector<8x32xf32>
    %cst = arith.constant dense<0.000000e+00> : vector<8x64xf32>
    %9 = tpu.matmul %8, %3, %cst {dimension_numbers = #tpu.dot_dimension_numbers<[1], [0], [0], [1], [0, 0, 1, 1], [], []>, precision = #tpu.contract_precision<fp32>} : vector<8x32xf32>, vector<32x64xf32>, vector<8x64xf32> -> vector<8x64xf32>
    %10 = vector.broadcast %0 : vector<1x64xf32> to vector<8x64xf32>
    %11 = arith.addf %9, %10 : vector<8x64xf32>
    %c0_10 = arith.constant 0 : index
    %c0_11 = arith.constant 0 : index
    %12 = vector.load %arg1[%c0_10, %c0_11] : memref<8x48xf32, #tpu.memory_space<vmem>>, vector<8x48xf32>
    %cst_12 = arith.constant dense<0.000000e+00> : vector<8x128xf32>
    %13 = tpu.matmul %12, %4, %cst_12 {dimension_numbers = #tpu.dot_dimension_numbers<[1], [0], [0], [1], [0, 0, 1, 1], [], []>, precision = #tpu.contract_precision<fp32>} : vector<8x48xf32>, vector<48x128xf32>, vector<8x128xf32> -> vector<8x128xf32>
    %14 = vector.broadcast %1 : vector<1x128xf32> to vector<8x128xf32>
    %15 = arith.addf %13, %14 : vector<8x128xf32>
    %16 = vector.extract_strided_slice %15 {offsets = [0, 0], sizes = [8, 64], strides = [1, 1]} : vector<8x128xf32> to vector<8x64xf32>
    %17 = vector.extract_strided_slice %15 {offsets = [0, 64], sizes = [8, 64], strides = [1, 1]} : vector<8x128xf32> to vector<8x64xf32>
    %18 = tpu.concatenate %16, %16, %16, %16, %16, %16, %16, %16 in 0 : vector<8x64xf32>, vector<8x64xf32>, vector<8x64xf32>, vector<8x64xf32>, vector<8x64xf32>, vector<8x64xf32>, vector<8x64xf32>, vector<8x64xf32> -> vector<64x64xf32>
    %19 = arith.mulf %18, %5 : vector<64x64xf32>
    %20 = tpu.concatenate %17, %17, %17, %17, %17, %17, %17, %17 in 0 : vector<8x64xf32>, vector<8x64xf32>, vector<8x64xf32>, vector<8x64xf32>, vector<8x64xf32>, vector<8x64xf32>, vector<8x64xf32>, vector<8x64xf32> -> vector<64x64xf32>
    %21 = arith.mulf %20, %5 : vector<64x64xf32>
    %cst_13 = arith.constant dense<0.000000e+00> : vector<8x64xf32>
    %22 = tpu.matmul %11, %19, %cst_13 {dimension_numbers = #tpu.dot_dimension_numbers<[1], [1], [0], [0], [0, 0, 1, 0], [], []>, precision = #tpu.contract_precision<fp32>} : vector<8x64xf32>, vector<64x64xf32>, vector<8x64xf32> -> vector<8x64xf32>
    %cst_14 = arith.constant dense<0.000000e+00> : vector<64x64xf32>
    %23 = tpu.matmul %21, %6, %cst_14 {dimension_numbers = #tpu.dot_dimension_numbers<[1], [0], [0], [1], [0, 0, 1, 1], [], []>, precision = #tpu.contract_precision<fp32>} : vector<64x64xf32>, vector<64x64xf32>, vector<64x64xf32> -> vector<64x64xf32>
    %c296 = arith.constant 296 : index
    %c0_15 = arith.constant 0 : index
    %24 = vector.load %arg2[%c296, %c0_15] : memref<312x128xf32, #tpu.memory_space<vmem>>, vector<8x64xf32>
    %25 = arith.addf %22, %24 : vector<8x64xf32>
    %cst_16 = arith.constant dense<0xFF800000> : vector<8xf32>
    %26 = vector.multi_reduction <maximumf>, %25, %cst_16 [1] : vector<8x64xf32> to vector<8xf32>
    %27 = vector.shape_cast %26 : vector<8xf32> to vector<8x1xf32>
    %28 = vector.broadcast %27 : vector<8x1xf32> to vector<8x64xf32>
    %29 = arith.subf %25, %28 : vector<8x64xf32>
    %30 = math.exp %29 : vector<8x64xf32>
    %cst_17 = arith.constant dense<0.000000e+00> : vector<8x64xf32>
    %31 = tpu.matmul %30, %7, %cst_17 {dimension_numbers = #tpu.dot_dimension_numbers<[1], [0], [0], [1], [0, 0, 1, 1], [], []>, precision = #tpu.contract_precision<fp32>} : vector<8x64xf32>, vector<64x64xf32>, vector<8x64xf32> -> vector<8x64xf32>
    %32 = arith.divf %30, %31 : vector<8x64xf32>
    %cst_18 = arith.constant dense<0.000000e+00> : vector<8x64xf32>
    %33 = tpu.matmul %32, %23, %cst_18 {dimension_numbers = #tpu.dot_dimension_numbers<[1], [0], [0], [1], [0, 0, 1, 1], [], []>, precision = #tpu.contract_precision<fp32>} : vector<8x64xf32>, vector<64x64xf32>, vector<8x64xf32> -> vector<8x64xf32>
    %34 = vector.broadcast %2 : vector<1x64xf32> to vector<8x64xf32>
    %35 = arith.addf %33, %34 : vector<8x64xf32>
    %c304 = arith.constant 304 : index
    %c0_19 = arith.constant 0 : index
    %36 = vector.load %arg2[%c304, %c0_19] : memref<312x128xf32, #tpu.memory_space<vmem>>, vector<8x64xf32>
    %37 = arith.addf %22, %36 : vector<8x64xf32>
    %cst_20 = arith.constant dense<0xFF800000> : vector<8xf32>
    %38 = vector.multi_reduction <maximumf>, %37, %cst_20 [1] : vector<8x64xf32> to vector<8xf32>
    %39 = vector.shape_cast %38 : vector<8xf32> to vector<8x1xf32>
    %40 = vector.broadcast %39 : vector<8x1xf32> to vector<8x64xf32>
    %41 = arith.subf %37, %40 : vector<8x64xf32>
    %42 = math.exp %41 : vector<8x64xf32>
    %cst_21 = arith.constant dense<0.000000e+00> : vector<8x64xf32>
    %43 = tpu.matmul %42, %7, %cst_21 {dimension_numbers = #tpu.dot_dimension_numbers<[1], [0], [0], [1], [0, 0, 1, 1], [], []>, precision = #tpu.contract_precision<fp32>} : vector<8x64xf32>, vector<64x64xf32>, vector<8x64xf32> -> vector<8x64xf32>
    %44 = arith.divf %42, %43 : vector<8x64xf32>
    %cst_22 = arith.constant dense<0.000000e+00> : vector<8x64xf32>
    %45 = tpu.matmul %44, %23, %cst_22 {dimension_numbers = #tpu.dot_dimension_numbers<[1], [0], [0], [1], [0, 0, 1, 1], [], []>, precision = #tpu.contract_precision<fp32>} : vector<8x64xf32>, vector<64x64xf32>, vector<8x64xf32> -> vector<8x64xf32>
    %46 = vector.broadcast %2 : vector<1x64xf32> to vector<8x64xf32>
    %47 = arith.addf %45, %46 : vector<8x64xf32>
    %48 = tpu.concatenate %35, %47 in 1 : vector<8x64xf32>, vector<8x64xf32> -> vector<8x128xf32>
    %c0_23 = arith.constant 0 : index
    %c0_24 = arith.constant 0 : index
    %49 = vector.load %arg3[%c0_23, %c0_24] : memref<8x128xf32, #tpu.memory_space<vmem>>, vector<8x128xf32>
    tpu.vector_store %arg3[%c0_23, %c0_24], %48 {strides = array<i32>} : memref<8x128xf32, #tpu.memory_space<vmem>>, vector<8x128xf32>,
    return
  }
}

</mosaic_0001>

<llo_original>
// kernel: tpu_custom_call.1
$region0: #{tpu_custom_call.1}
  #allocation0 [shape = 'u32[]', space=smem, size = 0x4, offset = 0x4, fixed_abs, tag = 'smem constant byte address 0x4 - core index']
  #allocation1 [shape = 'u32[144,128]{1,0:T(1,128)}', space=vmem, size = 0x12000, scoped, tag = 'internal scratch']
  %s0 = inlined_call_operand.hbm [shape: f32[8,32], index: 0, kind: input, shape index: {}]
  %s1 = inlined_call_operand.hbm [shape: f32[8,48], index: 1, kind: input, shape index: {}]
  %s2 = inlined_call_operand.hbm [shape: f32[312,128], index: 2, kind: input, shape index: {}]
  %s3 = inlined_call_operand.hbm [shape: f32[8,128], index: 3, kind: output, shape index: {}]
  %s4 = sld [smem:[#allocation0]]
  $region34: #{tpu_custom_call.1} parent=0
    _
  %s6 = ssub.s32 1, %s4
  %s7 = scalar_select 0, %s6, %s4
  $region1: #{tpu_custom_call.1} parent=0
    #allocation2 [shape = 'u8[4096]{0}', space=vmem, size = 0x1000, scoped, tag = 'input window, operand 0, single buffered']
    #allocation3 [shape = 's32[1]{0}', space=sflag, size = 0x4, scoped, tag = 'scoped memory for tpu_custom_call.1']
    #allocation4 [shape = 's32[1]{0}', space=sflag, size = 0x4, scoped, tag = 'scoped memory for tpu_custom_call.1']
    #allocation5 [shape = 'u8[4096]{0}', space=vmem, size = 0x1000, scoped, tag = 'input window, operand 1, single buffered']
    #allocation6 [shape = 's32[1]{0}', space=sflag, size = 0x4, scoped, tag = 'scoped memory for tpu_custom_call.1']
    #allocation7 [shape = 'u8[159744]{0}', space=vmem, size = 0x27000, scoped, tag = 'input window, operand 2, single buffered']
    #allocation8 [shape = 'u8[4096]{0}', space=vmem, size = 0x1000, scoped, tag = 'output window, operand 0, single buffered']
    %8 = vsyncpa [#allocation3], 0
    %9 = vsyncpa [#allocation6], 0
    %10 = vsyncpa [#allocation4], 0
    // Predicated region
    $region2: #{tpu_custom_call.1} parent=1 // pred_check
      _
    $region3: #{tpu_custom_call.1} parent=1 // pred_check_branch
      %12 = sbr.rel (0) target = $region5
    $region4: #{tpu_custom_call.1} parent=1 // pred_region
      %s14 = ssub.s32 128, 128
      %15 = vsyncadd [#allocation3], %s14
      %s17 = sshll.u32 [#allocation2], 4
      %s18 = int_to_ptr.vmem [resolvable:$true] %s17
      %20 = dma.hbm_to_vmem [thread:$0]  %s0, 128, %s18, [#allocation3]
    $region5: #{tpu_custom_call.1} parent=1 // pred_fallthru
      _
    // Predicated region
    $region6: #{tpu_custom_call.1} parent=1 // pred_check
      _
    $region7: #{tpu_custom_call.1} parent=1 // pred_check_branch
      %22 = sbr.rel (0) target = $region9
    $region8: #{tpu_custom_call.1} parent=1 // pred_region
      %s24 = ssub.s32 128, 128
      %25 = vsyncadd [#allocation6], %s24
      %s27 = sshll.u32 [#allocation5], 4
      %s28 = int_to_ptr.vmem [resolvable:$true] %s27
      %30 = dma.hbm_to_vmem [thread:$0]  %s1, 128, %s28, [#allocation6]
    $region9: #{tpu_custom_call.1} parent=1 // pred_fallthru
      _
    // Predicated region
    $region10: #{tpu_custom_call.1} parent=1 // pred_check
      _
    $region11: #{tpu_custom_call.1} parent=1 // pred_check_branch
      %32 = sbr.rel (0) target = $region13
    $region12: #{tpu_custom_call.1} parent=1 // pred_region
      %s34 = ssub.s32 4992, 4992
      %35 = vsyncadd [#allocation6], %s34
      %s36 = sshll.u32 [#allocation7], 4
      %s37 = int_to_ptr.vmem [resolvable:$true] %s36
      %42 = dma.hbm_to_vmem [thread:$0]  %s2, 4992, %s37, [#allocation6], 128, 128, 8
    $region13: #{tpu_custom_call.1} parent=1 // pred_fallthru
      _
    // Predicated region
    $region14: #{tpu_custom_call.1} parent=1 // pred_check
      _
    $region15: #{tpu_custom_call.1} parent=1 // pred_check_branch
      %44 = sbr.rel (0) target = $region17
    $region16: #{tpu_custom_call.1} parent=1 // pred_region
      %45 = dma.done [#allocation3], 128
    $region17: #{tpu_custom_call.1} parent=1 // pred_fallthru
      _
    // Predicated region
    $region18: #{tpu_custom_call.1} parent=1 // pred_check
      _
    $region19: #{tpu_custom_call.1} parent=1 // pred_check_branch
      %47 = sbr.rel (0) target = $region21
    $region20: #{tpu_custom_call.1} parent=1 // pred_region
      %48 = dma.done [#allocation6], 128
    $region21: #{tpu_custom_call.1} parent=1 // pred_fallthru
      _
    // Predicated region
    $region22: #{tpu_custom_call.1} parent=1 // pred_check
      _
    $region23: #{tpu_custom_call.1} parent=1 // pred_check_branch
      %50 = sbr.rel (0) target = $region25
    $region24: #{tpu_custom_call.1} parent=1 // pred_region
      %51 = dma.done [#allocation6], 4992
    $region25: #{tpu_custom_call.1} parent=1 // pred_fallthru
      _
    %v52 = vld [vmem:[#allocation7] sm:$0x1]
    %v53 = vld [vmem:[#allocation7 + $0x8] sm:$0x1]
    %v54 = vld [vmem:[#allocation7 + $0x10] sm:$0x1]
    %v55 = vld [vmem:[#allocation7 + $0x18] sm:$0xff]
    %v56 = vld [vmem:[#allocation7 + $0x20] sm:$0xff]
    %v57 = vld [vmem:[#allocation7 + $0x28] sm:$0xff]
    %v58 = vld [vmem:[#allocation7 + $0x30] sm:$0xff]
    %v59 = vld [vmem:[#allocation7 + $0x38] sm:$0xff]
    %v60 = vld [vmem:[#allocation7 + $0x40] sm:$0xff]
    %v61 = vld [vmem:[#allocation7 + $0x48] sm:$0xff]
    %v62 = vld [vmem:[#allocation7 + $0x50] sm:$0xff]
    %v63 = vld [vmem:[#allocation7 + $0x58] sm:$0xff]
    %v64 = vld [vmem:[#allocation7 + $0x60] sm:$0xff]
    %v65 = vld [vmem:[#allocation7 + $0x68] sm:$0xff]
    %v66 = vld [vmem:[#allocation7 + $0x70] sm:$0xff]
    %v67 = vld [vmem:[#allocation7 + $0x78] sm:$0xff]
    %v68 = vld [vmem:[#allocation7 + $0x80] sm:$0xff]
    %v69 = vld [vmem:[#allocation7 + $0x88] sm:$0xff]
    %v70 = vld [vmem:[#allocation7 + $0x90] sm:$0xff]
    %v71 = vld [vmem:[#allocation7 + $0x98] sm:$0xff]
    %v72 = vld [vmem:[#allocation7 + $0xa0] sm:$0xff]
    %v73 = vld [vmem:[#allocation7 + $0xa8] sm:$0xff]
    %v74 = vld [vmem:[#allocation7 + $0xb0] sm:$0xff]
    %v75 = vld [vmem:[#allocation7 + $0xb8] sm:$0xff]
    %v76 = vld [vmem:[#allocation7 + $0xc0] sm:$0xff]
    %v77 = vld [vmem:[#allocation7 + $0xc8] sm:$0xff]
    %v78 = vld [vmem:[#allocation7 + $0xd0] sm:$0xff]
    %v79 = vld [vmem:[#allocation7 + $0xd8] sm:$0xff]
    %v80 = vld [vmem:[#allocation7 + $0xe0] sm:$0xff]
    %v81 = vld [vmem:[#allocation7 + $0xe8] sm:$0xff]
    %v82 = vld [vmem:[#allocation7 + $0xf0] sm:$0xff]
    %v83 = vld [vmem:[#allocation7 + $0xf8] sm:$0xff]
    %v84 = vld [vmem:[#allocation7 + $0x100] sm:$0xff]
    %v85 = vld [vmem:[#allocation7 + $0x108] sm:$0xff]
    %v86 = vld [vmem:[#allocation7 + $0x110] sm:$0xff]
    %v87 = vld [vmem:[#allocation7 + $0x118] sm:$0xff]
    %v88 = vld [vmem:[#allocation7 + $0x120] sm:$0xff]
    %v89 = vld [vmem:[#allocation2] sm:$0xff]
    %v90 = vlaneseq
    %v91 = vshrl.u32 %v90, 7
    %v92 = vsub.s32 0, %v91
    %v93 = vrot.slane %v52, %v92
    %vm94 = vcmask 261120
    %v96 = vsel %vm94, %v89, 0
    %98 = vmatprep.subr.mxu0 0.0
    %99 = vmatpush1.msra.mxu0 0.0
    %100 = vmatprep.subr.mxu0 0.0
    %101 = vmatpush1.msra.mxu0 0.0
    %102 = vmatprep.subr.mxu0 0.0
    %103 = vmatpush1.msra.mxu0 0.0
    %104 = vmatprep.subr.mxu0 0.0
    %105 = vmatpush1.msra.mxu0 0.0
    %106 = vmatprep.subr.mxu0 0.0
    %107 = vmatpush1.msra.mxu0 0.0
    %108 = vmatprep.subr.mxu0 0.0
    %109 = vmatpush1.msra.mxu0 0.0
    %110 = vmatprep.subr.mxu0 0.0
    %111 = vmatpush1.msra.mxu0 0.0
    %112 = vmatprep.subr.mxu0 0.0
    %113 = vmatpush1.msra.mxu0 0.0
    %114 = vmatprep.subr.mxu0 0.0
    %115 = vmatpush1.msra.mxu0 0.0
    %116 = vmatprep.subr.mxu0 0.0
    %117 = vmatpush1.msra.mxu0 0.0
    %118 = vmatprep.subr.mxu0 0.0
    %119 = vmatpush1.msra.mxu0 0.0
    %120 = vmatprep.subr.mxu0 0.0
    %121 = vmatpush1.msra.mxu0 0.0
    %122 = vmatprep.subr.mxu0 0.0
    %v123 = vand.u32 %v58, 4294901760
    %124 = vmatpush1.msra.mxu0 %v123
    %125 = vmatprep.subr.mxu0 0.0
    %v126 = vand.u32 %v57, 4294901760
    %127 = vmatpush1.msra.mxu0 %v126
    %128 = vmatprep.subr.mxu0 0.0
    %v129 = vand.u32 %v56, 4294901760
    %130 = vmatpush1.msra.mxu0 %v129
    %131 = vmatprep.subr.mxu0 0.0
    %v132 = vand.u32 %v55, 4294901760
    %133 = vmatpush1.msra.mxu0 %v132
    %134 = vmatprep.subr.mxu0 0.0
    %135 = vmatpush2.msra.mxu0 0.0
    %136 = vmatprep.subr.mxu0 0.0
    %137 = vmatpush2.msra.mxu0 0.0
    %138 = vmatprep.subr.mxu0 0.0
    %139 = vmatpush2.msra.mxu0 0.0
    %140 = vmatprep.subr.mxu0 0.0
    %141 = vmatpush2.msra.mxu0 0.0
    %142 = vmatprep.subr.mxu0 0.0
    %143 = vmatpush2.msra.mxu0 0.0
    %144 = vmatprep.subr.mxu0 0.0
    %145 = vmatpush2.msra.mxu0 0.0
    %146 = vmatprep.subr.mxu0 0.0
    %147 = vmatpush2.msra.mxu0 0.0
    %148 = vmatprep.subr.mxu0 0.0
    %149 = vmatpush2.msra.mxu0 0.0
    %150 = vmatprep.subr.mxu0 0.0
    %151 = vmatpush2.msra.mxu0 0.0
    %152 = vmatprep.subr.mxu0 0.0
    %153 = vmatpush2.msra.mxu0 0.0
    %154 = vmatprep.subr.mxu0 0.0
    %155 = vmatpush2.msra.mxu0 0.0
    %156 = vmatprep.subr.mxu0 0.0
    %157 = vmatpush2.msra.mxu0 0.0
    %158 = vmatprep.subr.mxu0 0.0
    %159 = vmatpush2.msra.mxu0 0.0
    %160 = vmatprep.subr.mxu0 0.0
    %161 = vmatpush2.msra.mxu0 0.0
    %162 = vmatprep.subr.mxu0 0.0
    %163 = vmatpush2.msra.mxu0 0.0
    %164 = vmatprep.subr.mxu0 0.0
    %165 = vmatpush2.msra.mxu0 0.0
    %166 = vmatprep.mubr.f32.mxu0 0.0
    %v167 = vand.u32 %v96, 4294901760
    %v168 = vsub.f32 %v96, %v167
    %v169 = vand.u32 %v168, 4294901760
    %v170 = vsub.f32 %v168, %v169
    %v171 = vand.u32 %v170, 4294901760
    %172 = vmatmul.mubr.f32.gmra.mxu0 %v171
    %v173 = vpop.f32.mrf.mxu0
    %v174 = vadd.f32 %v93, %v173
    %v175 = vpop.f32.mrf.mxu0
    %176 = vdwg.mxu0
    %177 = vmatprep.subr.mxu0 0.0
    %178 = vmatpush1.msra.mxu0 0.0
    %179 = vmatprep.subr.mxu0 0.0
    %180 = vmatpush1.msra.mxu0 0.0
    %181 = vmatprep.subr.mxu0 0.0
    %182 = vmatpush1.msra.mxu0 0.0
    %183 = vmatprep.subr.mxu0 0.0
    %184 = vmatpush1.msra.mxu0 0.0
    %185 = vmatprep.subr.mxu0 0.0
    %186 = vmatpush1.msra.mxu0 0.0
    %187 = vmatprep.subr.mxu0 0.0
    %188 = vmatpush1.msra.mxu0 0.0
    %189 = vmatprep.subr.mxu0 0.0
    %190 = vmatpush1.msra.mxu0 0.0
    %191 = vmatprep.subr.mxu0 0.0
    %192 = vmatpush1.msra.mxu0 0.0
    %193 = vmatprep.subr.mxu0 0.0
    %194 = vmatpush1.msra.mxu0 0.0
    %195 = vmatprep.subr.mxu0 0.0
    %196 = vmatpush1.msra.mxu0 0.0
    %197 = vmatprep.subr.mxu0 0.0
    %198 = vmatpush1.msra.mxu0 0.0
    %199 = vmatprep.subr.mxu0 0.0
    %200 = vmatpush1.msra.mxu0 0.0
    %201 = vmatprep.subr.mxu0 0.0
    %v202 = vand.u32 %v58, 4294901760
    %v203 = vsub.f32 %v58, %v202
    %v204 = vand.u32 %v203, 4294901760
    %v205 = vsub.f32 %v203, %v204
    %v206 = vand.u32 %v205, 4294901760
    %207 = vmatpush1.msra.mxu0 %v206
    %208 = vmatprep.subr.mxu0 0.0
    %v209 = vand.u32 %v57, 4294901760
    %v210 = vsub.f32 %v57, %v209
    %v211 = vand.u32 %v210, 4294901760
    %v212 = vsub.f32 %v210, %v211
    %v213 = vand.u32 %v212, 4294901760
    %214 = vmatpush1.msra.mxu0 %v213
    %215 = vmatprep.subr.mxu0 0.0
    %v216 = vand.u32 %v56, 4294901760
    %v217 = vsub.f32 %v56, %v216
    %v218 = vand.u32 %v217, 4294901760
    %v219 = vsub.f32 %v217, %v218
    %v220 = vand.u32 %v219, 4294901760
    %221 = vmatpush1.msra.mxu0 %v220
    %222 = vmatprep.subr.mxu0 0.0
    %v223 = vand.u32 %v55, 4294901760
    %v224 = vsub.f32 %v55, %v223
    %v225 = vand.u32 %v224, 4294901760
    %v226 = vsub.f32 %v224, %v225
    %v227 = vand.u32 %v226, 4294901760
    %228 = vmatpush1.msra.mxu0 %v227
    %229 = vmatprep.subr.mxu0 0.0
    %230 = vmatpush2.msra.mxu0 0.0
    %231 = vmatprep.subr.mxu0 0.0
    %232 = vmatpush2.msra.mxu0 0.0
    %233 = vmatprep.subr.mxu0 0.0
    %234 = vmatpush2.msra.mxu0 0.0
    %235 = vmatprep.subr.mxu0 0.0
    %236 = vmatpush2.msra.mxu0 0.0
    %237 = vmatprep.subr.mxu0 0.0
    %238 = vmatpush2.msra.mxu0 0.0
    %239 = vmatprep.subr.mxu0 0.0
    %240 = vmatpush2.msra.mxu0 0.0
    %241 = vmatprep.subr.mxu0 0.0
    %242 = vmatpush2.msra.mxu0 0.0
    %243 = vmatprep.subr.mxu0 0.0
    %244 = vmatpush2.msra.mxu0 0.0
    %245 = vmatprep.subr.mxu0 0.0
    %246 = vmatpush2.msra.mxu0 0.0
    %247 = vmatprep.subr.mxu0 0.0
    %248 = vmatpush2.msra.mxu0 0.0
    %249 = vmatprep.subr.mxu0 0.0
    %250 = vmatpush2.msra.mxu0 0.0
    %251 = vmatprep.subr.mxu0 0.0
    %252 = vmatpush2.msra.mxu0 0.0
    %253 = vmatprep.subr.mxu0 0.0
    %254 = vmatpush2.msra.mxu0 0.0
    %255 = vmatprep.subr.mxu0 0.0
    %256 = vmatpush2.msra.mxu0 0.0
    %257 = vmatprep.subr.mxu0 0.0
    %258 = vmatpush2.msra.mxu0 0.0
    %259 = vmatprep.subr.mxu0 0.0
    %260 = vmatpush2.msra.mxu0 0.0
    %261 = vmatprep.mubr.f32.mxu0 0.0
    %v262 = vand.u32 %v96, 4294901760
    %263 = vmatmul.mubr.f32.gmra.mxu0 %v262
    %v264 = vpop.f32.mrf.mxu0
    %v265 = vadd.f32 %v174, %v264
    %v266 = vpop.f32.mrf.mxu0
    %267 = vdwg.mxu0
    %268 = vmatprep.subr.mxu0 0.0
    %269 = vmatpush1.msra.mxu0 0.0
    %270 = vmatprep.subr.mxu0 0.0
    %271 = vmatpush1.msra.mxu0 0.0
    %272 = vmatprep.subr.mxu0 0.0
    %273 = vmatpush1.msra.mxu0 0.0
    %274 = vmatprep.subr.mxu0 0.0
    %275 = vmatpush1.msra.mxu0 0.0
    %276 = vmatprep.subr.mxu0 0.0
    %277 = vmatpush1.msra.mxu0 0.0
    %278 = vmatprep.subr.mxu0 0.0
    %279 = vmatpush1.msra.mxu0 0.0
    %280 = vmatprep.subr.mxu0 0.0
    %281 = vmatpush1.msra.mxu0 0.0
    %282 = vmatprep.subr.mxu0 0.0
    %283 = vmatpush1.msra.mxu0 0.0
    %284 = vmatprep.subr.mxu0 0.0
    %285 = vmatpush1.msra.mxu0 0.0
    %286 = vmatprep.subr.mxu0 0.0
    %287 = vmatpush1.msra.mxu0 0.0
    %288 = vmatprep.subr.mxu0 0.0
    %289 = vmatpush1.msra.mxu0 0.0
    %290 = vmatprep.subr.mxu0 0.0
    %291 = vmatpush1.msra.mxu0 0.0
    %292 = vmatprep.subr.mxu0 0.0
    %v293 = vand.u32 %v58, 4294901760
    %v294 = vsub.f32 %v58, %v293
    %295 = vmatpush1.msra.mxu0 %v294
    %296 = vmatprep.subr.mxu0 0.0
    %v297 = vand.u32 %v57, 4294901760
    %v298 = vsub.f32 %v57, %v297
    %299 = vmatpush1.msra.mxu0 %v298
    %300 = vmatprep.subr.mxu0 0.0
    %v301 = vand.u32 %v56, 4294901760
    %v302 = vsub.f32 %v56, %v301
    %303 = vmatpush1.msra.mxu0 %v302
    %304 = vmatprep.subr.mxu0 0.0
    %v305 = vand.u32 %v55, 4294901760
    %v306 = vsub.f32 %v55, %v305
    %307 = vmatpush1.msra.mxu0 %v306
    %308 = vmatprep.subr.mxu0 0.0
    %309 = vmatpush2.msra.mxu0 0.0
    %310 = vmatprep.subr.mxu0 0.0
    %311 = vmatpush2.msra.mxu0 0.0
    %312 = vmatprep.subr.mxu0 0.0
    %313 = vmatpush2.msra.mxu0 0.0
    %314 = vmatprep.subr.mxu0 0.0
    %315 = vmatpush2.msra.mxu0 0.0
    %316 = vmatprep.subr.mxu0 0.0
    %317 = vmatpush2.msra.mxu0 0.0
    %318 = vmatprep.subr.mxu0 0.0
    %319 = vmatpush2.msra.mxu0 0.0
    %320 = vmatprep.subr.mxu0 0.0
    %321 = vmatpush2.msra.mxu0 0.0
    %322 = vmatprep.subr.mxu0 0.0
    %323 = vmatpush2.msra.mxu0 0.0
    %324 = vmatprep.subr.mxu0 0.0
    %325 = vmatpush2.msra.mxu0 0.0
    %326 = vmatprep.subr.mxu0 0.0
    %327 = vmatpush2.msra.mxu0 0.0
    %328 = vmatprep.subr.mxu0 0.0
    %329 = vmatpush2.msra.mxu0 0.0
    %330 = vmatprep.subr.mxu0 0.0
    %331 = vmatpush2.msra.mxu0 0.0
    %332 = vmatprep.subr.mxu0 0.0
    %333 = vmatpush2.msra.mxu0 0.0
    %334 = vmatprep.subr.mxu0 0.0
    %335 = vmatpush2.msra.mxu0 0.0
    %336 = vmatprep.subr.mxu0 0.0
    %337 = vmatpush2.msra.mxu0 0.0
    %338 = vmatprep.subr.mxu0 0.0
    %339 = vmatpush2.msra.mxu0 0.0
    %340 = vmatprep.mubr.f32.mxu0 0.0
    %v341 = vand.u32 %v96, 4294901760
    %v342 = vsub.f32 %v96, %v341
    %343 = vmatmul.mubr.f32.gmra.mxu0 %v342
    %v344 = vpop.f32.mrf.mxu0
    %v345 = vadd.f32 %v265, %v344
    %v346 = vpop.f32.mrf.mxu0
    %347 = vdwg.mxu0
    %348 = vmatprep.subr.mxu0 0.0
    %349 = vmatpush1.msra.mxu0 0.0
    %350 = vmatprep.subr.mxu0 0.0
    %351 = vmatpush1.msra.mxu0 0.0
    %352 = vmatprep.subr.mxu0 0.0
    %353 = vmatpush1.msra.mxu0 0.0
    %354 = vmatprep.subr.mxu0 0.0
    %355 = vmatpush1.msra.mxu0 0.0
    %356 = vmatprep.subr.mxu0 0.0
    %357 = vmatpush1.msra.mxu0 0.0
    %358 = vmatprep.subr.mxu0 0.0
    %359 = vmatpush1.msra.mxu0 0.0
    %360 = vmatprep.subr.mxu0 0.0
    %361 = vmatpush1.msra.mxu0 0.0
    %362 = vmatprep.subr.mxu0 0.0
    %363 = vmatpush1.msra.mxu0 0.0
    %364 = vmatprep.subr.mxu0 0.0
    %365 = vmatpush1.msra.mxu0 0.0
    %366 = vmatprep.subr.mxu0 0.0
    %367 = vmatpush1.msra.mxu0 0.0
    %368 = vmatprep.subr.mxu0 0.0
    %369 = vmatpush1.msra.mxu0 0.0
    %370 = vmatprep.subr.mxu0 0.0
    %371 = vmatpush1.msra.mxu0 0.0
    %372 = vmatprep.subr.mxu0 0.0
    %v373 = vand.u32 %v58, 4294901760
    %374 = vmatpush1.msra.mxu0 %v373
    %375 = vmatprep.subr.mxu0 0.0
    %v376 = vand.u32 %v57, 4294901760
    %377 = vmatpush1.msra.mxu0 %v376
    %378 = vmatprep.subr.mxu0 0.0
    %v379 = vand.u32 %v56, 4294901760
    %380 = vmatpush1.msra.mxu0 %v379
    %381 = vmatprep.subr.mxu0 0.0
    %v382 = vand.u32 %v55, 4294901760
    %383 = vmatpush1.msra.mxu0 %v382
    %384 = vmatprep.subr.mxu0 0.0
    %385 = vmatpush2.msra.mxu0 0.0
    %386 = vmatprep.subr.mxu0 0.0
    %387 = vmatpush2.msra.mxu0 0.0
    %388 = vmatprep.subr.mxu0 0.0
    %389 = vmatpush2.msra.mxu0 0.0
    %390 = vmatprep.subr.mxu0 0.0
    %391 = vmatpush2.msra.mxu0 0.0
    %392 = vmatprep.subr.mxu0 0.0
    %393 = vmatpush2.msra.mxu0 0.0
    %394 = vmatprep.subr.mxu0 0.0
    %395 = vmatpush2.msra.mxu0 0.0
    %396 = vmatprep.subr.mxu0 0.0
    %397 = vmatpush2.msra.mxu0 0.0
    %398 = vmatprep.subr.mxu0 0.0
    %399 = vmatpush2.msra.mxu0 0.0
    %400 = vmatprep.subr.mxu0 0.0
    %401 = vmatpush2.msra.mxu0 0.0
    %402 = vmatprep.subr.mxu0 0.0
    %403 = vmatpush2.msra.mxu0 0.0
    %404 = vmatprep.subr.mxu0 0.0
    %405 = vmatpush2.msra.mxu0 0.0
    %406 = vmatprep.subr.mxu0 0.0
    %407 = vmatpush2.msra.mxu0 0.0
    %408 = vmatprep.subr.mxu0 0.0
    %409 = vmatpush2.msra.mxu0 0.0
    %410 = vmatprep.subr.mxu0 0.0
    %411 = vmatpush2.msra.mxu0 0.0
    %412 = vmatprep.subr.mxu0 0.0
    %413 = vmatpush2.msra.mxu0 0.0
    %414 = vmatprep.subr.mxu0 0.0
    %415 = vmatpush2.msra.mxu0 0.0
    %416 = vmatprep.mubr.f32.mxu0 0.0
    %v417 = vand.u32 %v96, 4294901760
    %v418 = vsub.f32 %v96, %v417
    %v419 = vand.u32 %v418, 4294901760
    %420 = vmatmul.mubr.f32.gmra.mxu0 %v419
    %v421 = vpop.f32.mrf.mxu0
    %v422 = vadd.f32 %v345, %v421
    %v423 = vpop.f32.mrf.mxu0
    %424 = vdwg.mxu0
    %425 = vmatprep.subr.mxu0 0.0
    %426 = vmatpush1.msra.mxu0 0.0
    %427 = vmatprep.subr.mxu0 0.0
    %428 = vmatpush1.msra.mxu0 0.0
    %429 = vmatprep.subr.mxu0 0.0
    %430 = vmatpush1.msra.mxu0 0.0
    %431 = vmatprep.subr.mxu0 0.0
    %432 = vmatpush1.msra.mxu0 0.0
    %433 = vmatprep.subr.mxu0 0.0
    %434 = vmatpush1.msra.mxu0 0.0
    %435 = vmatprep.subr.mxu0 0.0
    %436 = vmatpush1.msra.mxu0 0.0
    %437 = vmatprep.subr.mxu0 0.0
    %438 = vmatpush1.msra.mxu0 0.0
    %439 = vmatprep.subr.mxu0 0.0
    %440 = vmatpush1.msra.mxu0 0.0
    %441 = vmatprep.subr.mxu0 0.0
    %442 = vmatpush1.msra.mxu0 0.0
    %443 = vmatprep.subr.mxu0 0.0
    %444 = vmatpush1.msra.mxu0 0.0
    %445 = vmatprep.subr.mxu0 0.0
    %446 = vmatpush1.msra.mxu0 0.0
    %447 = vmatprep.subr.mxu0 0.0
    %448 = vmatpush1.msra.mxu0 0.0
    %449 = vmatprep.subr.mxu0 0.0
    %v450 = vand.u32 %v58, 4294901760
    %v451 = vsub.f32 %v58, %v450
    %v452 = vand.u32 %v451, 4294901760
    %453 = vmatpush1.msra.mxu0 %v452
    %454 = vmatprep.subr.mxu0 0.0
    %v455 = vand.u32 %v57, 4294901760
    %v456 = vsub.f32 %v57, %v455
    %v457 = vand.u32 %v456, 4294901760
    %458 = vmatpush1.msra.mxu0 %v457
    %459 = vmatprep.subr.mxu0 0.0
    %v460 = vand.u32 %v56, 4294901760
    %v461 = vsub.f32 %v56, %v460
    %v462 = vand.u32 %v461, 4294901760
    %463 = vmatpush1.msra.mxu0 %v462
    %464 = vmatprep.subr.mxu0 0.0
    %v465 = vand.u32 %v55, 4294901760
    %v466 = vsub.f32 %v55, %v465
    %v467 = vand.u32 %v466, 4294901760
    %468 = vmatpush1.msra.mxu0 %v467
    %469 = vmatprep.subr.mxu0 0.0
    %470 = vmatpush2.msra.mxu0 0.0
    %471 = vmatprep.subr.mxu0 0.0
    %472 = vmatpush2.msra.mxu0 0.0
    %473 = vmatprep.subr.mxu0 0.0
    %474 = vmatpush2.msra.mxu0 0.0
    %475 = vmatprep.subr.mxu0 0.0
    %476 = vmatpush2.msra.mxu0 0.0
    %477 = vmatprep.subr.mxu0 0.0
    %478 = vmatpush2.msra.mxu0 0.0
    %479 = vmatprep.subr.mxu0 0.0
    %480 = vmatpush2.msra.mxu0 0.0
    %481 = vmatprep.subr.mxu0 0.0
    %482 = vmatpush2.msra.mxu0 0.0
    %483 = vmatprep.subr.mxu0 0.0
    %484 = vmatpush2.msra.mxu0 0.0
    %485 = vmatprep.subr.mxu0 0.0
    %486 = vmatpush2.msra.mxu0 0.0
    %487 = vmatprep.subr.mxu0 0.0
    %488 = vmatpush2.msra.mxu0 0.0
    %489 = vmatprep.subr.mxu0 0.0
    %490 = vmatpush2.msra.mxu0 0.0
    %491 = vmatprep.subr.mxu0 0.0
    %492 = vmatpush2.msra.mxu0 0.0
    %493 = vmatprep.subr.mxu0 0.0
    %494 = vmatpush2.msra.mxu0 0.0
    %495 = vmatprep.subr.mxu0 0.0
    %496 = vmatpush2.msra.mxu0 0.0
    %497 = vmatprep.subr.mxu0 0.0
    %498 = vmatpush2.msra.mxu0 0.0
    %499 = vmatprep.subr.mxu0 0.0
    %500 = vmatpush2.msra.mxu0 0.0
    %501 = vmatprep.mubr.f32.mxu0 0.0
    %v502 = vand.u32 %v96, 4294901760
    %503 = vmatmul.mubr.f32.gmra.mxu0 %v502
    %v504 = vpop.f32.mrf.mxu0
    %v505 = vadd.f32 %v422, %v504
    %v506 = vpop.f32.mrf.mxu0
    %507 = vdwg.mxu0
    %508 = vmatprep.subr.mxu0 0.0
    %509 = vmatpush1.msra.mxu0 0.0
    %510 = vmatprep.subr.mxu0 0.0
    %511 = vmatpush1.msra.mxu0 0.0
    %512 = vmatprep.subr.mxu0 0.0
    %513 = vmatpush1.msra.mxu0 0.0
    %514 = vmatprep.subr.mxu0 0.0
    %515 = vmatpush1.msra.mxu0 0.0
    %516 = vmatprep.subr.mxu0 0.0
    %517 = vmatpush1.msra.mxu0 0.0
    %518 = vmatprep.subr.mxu0 0.0
    %519 = vmatpush1.msra.mxu0 0.0
    %520 = vmatprep.subr.mxu0 0.0
    %521 = vmatpush1.msra.mxu0 0.0
    %522 = vmatprep.subr.mxu0 0.0
    %523 = vmatpush1.msra.mxu0 0.0
    %524 = vmatprep.subr.mxu0 0.0
    %525 = vmatpush1.msra.mxu0 0.0
    %526 = vmatprep.subr.mxu0 0.0
    %527 = vmatpush1.msra.mxu0 0.0
    %528 = vmatprep.subr.mxu0 0.0
    %529 = vmatpush1.msra.mxu0 0.0
    %530 = vmatprep.subr.mxu0 0.0
    %531 = vmatpush1.msra.mxu0 0.0
    %532 = vmatprep.subr.mxu0 0.0
    %v533 = vand.u32 %v58, 4294901760
    %534 = vmatpush1.msra.mxu0 %v533
    %535 = vmatprep.subr.mxu0 0.0
    %v536 = vand.u32 %v57, 4294901760
    %537 = vmatpush1.msra.mxu0 %v536
    %538 = vmatprep.subr.mxu0 0.0
    %v539 = vand.u32 %v56, 4294901760
    %540 = vmatpush1.msra.mxu0 %v539
    %541 = vmatprep.subr.mxu0 0.0
    %v542 = vand.u32 %v55, 4294901760
    %543 = vmatpush1.msra.mxu0 %v542
    %544 = vmatprep.subr.mxu0 0.0
    %545 = vmatpush2.msra.mxu0 0.0
    %546 = vmatprep.subr.mxu0 0.0
    %547 = vmatpush2.msra.mxu0 0.0
    %548 = vmatprep.subr.mxu0 0.0
    %549 = vmatpush2.msra.mxu0 0.0
    %550 = vmatprep.subr.mxu0 0.0
    %551 = vmatpush2.msra.mxu0 0.0
    %552 = vmatprep.subr.mxu0 0.0
    %553 = vmatpush2.msra.mxu0 0.0
    %554 = vmatprep.subr.mxu0 0.0
    %555 = vmatpush2.msra.mxu0 0.0
    %556 = vmatprep.subr.mxu0 0.0
    %557 = vmatpush2.msra.mxu0 0.0
    %558 = vmatprep.subr.mxu0 0.0
    %559 = vmatpush2.msra.mxu0 0.0
    %560 = vmatprep.subr.mxu0 0.0
    %561 = vmatpush2.msra.mxu0 0.0
    %562 = vmatprep.subr.mxu0 0.0
    %563 = vmatpush2.msra.mxu0 0.0
    %564 = vmatprep.subr.mxu0 0.0
    %565 = vmatpush2.msra.mxu0 0.0
    %566 = vmatprep.subr.mxu0 0.0
    %567 = vmatpush2.msra.mxu0 0.0
    %568 = vmatprep.subr.mxu0 0.0
    %569 = vmatpush2.msra.mxu0 0.0
    %570 = vmatprep.subr.mxu0 0.0
    %571 = vmatpush2.msra.mxu0 0.0
    %572 = vmatprep.subr.mxu0 0.0
    %573 = vmatpush2.msra.mxu0 0.0
    %574 = vmatprep.subr.mxu0 0.0
    %575 = vmatpush2.msra.mxu0 0.0
    %576 = vmatprep.mubr.f32.mxu0 0.0
    %v577 = vand.u32 %v96, 4294901760
    %578 = vmatmul.mubr.f32.gmra.mxu0 %v577
    %v579 = vpop.f32.mrf.mxu0
    %v580 = vadd.f32 %v505, %v579
    %v581 = vpop.f32.mrf.mxu0
    %582 = vdwg.mxu0
    %v583 = vld [vmem:[#allocation5] sm:$0xff]
    %v584 = vlaneseq
    %v585 = vshrl.u32 %v584, 7
    %v586 = vsub.s32 0, %v585
    %v587 = vrot.slane %v53, %v586
    %vm588 = vcmask 392192
    %v590 = vsel %vm588, %v583, 0
    %592 = vmatprep.subr.mxu0 0.0
    %593 = vmatpush1.msra.mxu0 0.0
    %594 = vmatprep.subr.mxu0 0.0
    %595 = vmatpush1.msra.mxu0 0.0
    %596 = vmatprep.subr.mxu0 0.0
    %597 = vmatpush1.msra.mxu0 0.0
    %598 = vmatprep.subr.mxu0 0.0
    %599 = vmatpush1.msra.mxu0 0.0
    %600 = vmatprep.subr.mxu0 0.0
    %601 = vmatpush1.msra.mxu0 0.0
    %602 = vmatprep.subr.mxu0 0.0
    %603 = vmatpush1.msra.mxu0 0.0
    %604 = vmatprep.subr.mxu0 0.0
    %605 = vmatpush1.msra.mxu0 0.0
    %606 = vmatprep.subr.mxu0 0.0
    %607 = vmatpush1.msra.mxu0 0.0
    %608 = vmatprep.subr.mxu0 0.0
    %609 = vmatpush1.msra.mxu0 0.0
    %610 = vmatprep.subr.mxu0 0.0
    %611 = vmatpush1.msra.mxu0 0.0
    %612 = vmatprep.subr.mxu0 0.0
    %v613 = vand.u32 %v64, 4294901760
    %614 = vmatpush1.msra.mxu0 %v613
    %615 = vmatprep.subr.mxu0 0.0
    %v616 = vand.u32 %v63, 4294901760
    %617 = vmatpush1.msra.mxu0 %v616
    %618 = vmatprep.subr.mxu0 0.0
    %v619 = vand.u32 %v62, 4294901760
    %620 = vmatpush1.msra.mxu0 %v619
    %621 = vmatprep.subr.mxu0 0.0
    %v622 = vand.u32 %v61, 4294901760
    %623 = vmatpush1.msra.mxu0 %v622
    %624 = vmatprep.subr.mxu0 0.0
    %v625 = vand.u32 %v60, 4294901760
    %626 = vmatpush1.msra.mxu0 %v625
    %627 = vmatprep.subr.mxu0 0.0
    %v628 = vand.u32 %v59, 4294901760
    %629 = vmatpush1.msra.mxu0 %v628
    %630 = vmatprep.subr.mxu0 0.0
    %631 = vmatpush2.msra.mxu0 0.0
    %632 = vmatprep.subr.mxu0 0.0
    %633 = vmatpush2.msra.mxu0 0.0
    %634 = vmatprep.subr.mxu0 0.0
    %635 = vmatpush2.msra.mxu0 0.0
    %636 = vmatprep.subr.mxu0 0.0
    %637 = vmatpush2.msra.mxu0 0.0
    %638 = vmatprep.subr.mxu0 0.0
    %639 = vmatpush2.msra.mxu0 0.0
    %640 = vmatprep.subr.mxu0 0.0
    %641 = vmatpush2.msra.mxu0 0.0
    %642 = vmatprep.subr.mxu0 0.0
    %643 = vmatpush2.msra.mxu0 0.0
    %644 = vmatprep.subr.mxu0 0.0
    %645 = vmatpush2.msra.mxu0 0.0
    %646 = vmatprep.subr.mxu0 0.0
    %647 = vmatpush2.msra.mxu0 0.0
    %648 = vmatprep.subr.mxu0 0.0
    %649 = vmatpush2.msra.mxu0 0.0
    %650 = vmatprep.subr.mxu0 0.0
    %651 = vmatpush2.msra.mxu0 0.0
    %652 = vmatprep.subr.mxu0 0.0
    %653 = vmatpush2.msra.mxu0 0.0
    %654 = vmatprep.subr.mxu0 0.0
    %655 = vmatpush2.msra.mxu0 0.0
    %656 = vmatprep.subr.mxu0 0.0
    %657 = vmatpush2.msra.mxu0 0.0
    %658 = vmatprep.subr.mxu0 0.0
    %659 = vmatpush2.msra.mxu0 0.0
    %660 = vmatprep.subr.mxu0 0.0
    %661 = vmatpush2.msra.mxu0 0.0
    %662 = vmatprep.mubr.f32.mxu0 0.0
    %v663 = vand.u32 %v590, 4294901760
    %v664 = vsub.f32 %v590, %v663
    %v665 = vand.u32 %v664, 4294901760
    %v666 = vsub.f32 %v664, %v665
    %v667 = vand.u32 %v666, 4294901760
    %668 = vmatmul.mubr.f32.gmra.mxu0 %v667
    %v669 = vpop.f32.mrf.mxu0
    %v670 = vadd.f32 %v587, %v669
    %v671 = vpop.f32.mrf.mxu0
    %672 = vdwg.mxu0
    %673 = vmatprep.subr.mxu0 0.0
    %674 = vmatpush1.msra.mxu0 0.0
    %675 = vmatprep.subr.mxu0 0.0
    %676 = vmatpush1.msra.mxu0 0.0
    %677 = vmatprep.subr.mxu0 0.0
    %678 = vmatpush1.msra.mxu0 0.0
    %679 = vmatprep.subr.mxu0 0.0
    %680 = vmatpush1.msra.mxu0 0.0
    %681 = vmatprep.subr.mxu0 0.0
    %682 = vmatpush1.msra.mxu0 0.0
    %683 = vmatprep.subr.mxu0 0.0
    %684 = vmatpush1.msra.mxu0 0.0
    %685 = vmatprep.subr.mxu0 0.0
    %686 = vmatpush1.msra.mxu0 0.0
    %687 = vmatprep.subr.mxu0 0.0
    %688 = vmatpush1.msra.mxu0 0.0
    %689 = vmatprep.subr.mxu0 0.0
    %690 = vmatpush1.msra.mxu0 0.0
    %691 = vmatprep.subr.mxu0 0.0
    %692 = vmatpush1.msra.mxu0 0.0
    %693 = vmatprep.subr.mxu0 0.0
    %v694 = vand.u32 %v64, 4294901760
    %v695 = vsub.f32 %v64, %v694
    %v696 = vand.u32 %v695, 4294901760
    %v697 = vsub.f32 %v695, %v696
    %v698 = vand.u32 %v697, 4294901760
    %699 = vmatpush1.msra.mxu0 %v698
    %700 = vmatprep.subr.mxu0 0.0
    %v701 = vand.u32 %v63, 4294901760
    %v702 = vsub.f32 %v63, %v701
    %v703 = vand.u32 %v702, 4294901760
    %v704 = vsub.f32 %v702, %v703
    %v705 = vand.u32 %v704, 4294901760
    %706 = vmatpush1.msra.mxu0 %v705
    %707 = vmatprep.subr.mxu0 0.0
    %v708 = vand.u32 %v62, 4294901760
    %v709 = vsub.f32 %v62, %v708
    %v710 = vand.u32 %v709, 4294901760
    %v711 = vsub.f32 %v709, %v710
    %v712 = vand.u32 %v711, 4294901760
    %713 = vmatpush1.msra.mxu0 %v712
    %714 = vmatprep.subr.mxu0 0.0
    %v715 = vand.u32 %v61, 4294901760
    %v716 = vsub.f32 %v61, %v715
    %v717 = vand.u32 %v716, 4294901760
    %v718 = vsub.f32 %v716, %v717
    %v719 = vand.u32 %v718, 4294901760
    %720 = vmatpush1.msra.mxu0 %v719
    %721 = vmatprep.subr.mxu0 0.0
    %v722 = vand.u32 %v60, 4294901760
    %v723 = vsub.f32 %v60, %v722
    %v724 = vand.u32 %v723, 4294901760
    %v725 = vsub.f32 %v723, %v724
    %v726 = vand.u32 %v725, 4294901760
    %727 = vmatpush1.msra.mxu0 %v726
    %728 = vmatprep.subr.mxu0 0.0
    %v729 = vand.u32 %v59, 4294901760
    %v730 = vsub.f32 %v59, %v729
    %v731 = vand.u32 %v730, 4294901760
    %v732 = vsub.f32 %v730, %v731
    %v733 = vand.u32 %v732, 4294901760
    %734 = vmatpush1.msra.mxu0 %v733
    %735 = vmatprep.subr.mxu0 0.0
    %736 = vmatpush2.msra.mxu0 0.0
    %737 = vmatprep.subr.mxu0 0.0
    %738 = vmatpush2.msra.mxu0 0.0
    %739 = vmatprep.subr.mxu0 0.0
    %740 = vmatpush2.msra.mxu0 0.0
    %741 = vmatprep.subr.mxu0 0.0
    %742 = vmatpush2.msra.mxu0 0.0
    %743 = vmatprep.subr.mxu0 0.0
    %744 = vmatpush2.msra.mxu0 0.0
    %745 = vmatprep.subr.mxu0 0.0
    %746 = vmatpush2.msra.mxu0 0.0
    %747 = vmatprep.subr.mxu0 0.0
    %748 = vmatpush2.msra.mxu0 0.0
    %749 = vmatprep.subr.mxu0 0.0
    %750 = vmatpush2.msra.mxu0 0.0
    %751 = vmatprep.subr.mxu0 0.0
    %752 = vmatpush2.msra.mxu0 0.0
    %753 = vmatprep.subr.mxu0 0.0
    %754 = vmatpush2.msra.mxu0 0.0
    %755 = vmatprep.subr.mxu0 0.0
    %756 = vmatpush2.msra.mxu0 0.0
    %757 = vmatprep.subr.mxu0 0.0
    %758 = vmatpush2.msra.mxu0 0.0
    %759 = vmatprep.subr.mxu0 0.0
    %760 = vmatpush2.msra.mxu0 0.0
    %761 = vmatprep.subr.mxu0 0.0
    %762 = vmatpush2.msra.mxu0 0.0
    %763 = vmatprep.subr.mxu0 0.0
    %764 = vmatpush2.msra.mxu0 0.0
    %765 = vmatprep.subr.mxu0 0.0
    %766 = vmatpush2.msra.mxu0 0.0
    %767 = vmatprep.mubr.f32.mxu0 0.0
    %v768 = vand.u32 %v590, 4294901760
    %769 = vmatmul.mubr.f32.gmra.mxu0 %v768
    %v770 = vpop.f32.mrf.mxu0
    %v771 = vadd.f32 %v670, %v770
    %v772 = vpop.f32.mrf.mxu0
    %773 = vdwg.mxu0
    %774 = vmatprep.subr.mxu0 0.0
    %775 = vmatpush1.msra.mxu0 0.0
    %776 = vmatprep.subr.mxu0 0.0
    %777 = vmatpush1.msra.mxu0 0.0
    %778 = vmatprep.subr.mxu0 0.0
    %779 = vmatpush1.msra.mxu0 0.0
    %780 = vmatprep.subr.mxu0 0.0
    %781 = vmatpush1.msra.mxu0 0.0
    %782 = vmatprep.subr.mxu0 0.0
    %783 = vmatpush1.msra.mxu0 0.0
    %784 = vmatprep.subr.mxu0 0.0
    %785 = vmatpush1.msra.mxu0 0.0
    %786 = vmatprep.subr.mxu0 0.0
    %787 = vmatpush1.msra.mxu0 0.0
    %788 = vmatprep.subr.mxu0 0.0
    %789 = vmatpush1.msra.mxu0 0.0
    %790 = vmatprep.subr.mxu0 0.0
    %791 = vmatpush1.msra.mxu0 0.0
    %792 = vmatprep.subr.mxu0 0.0
    %793 = vmatpush1.msra.mxu0 0.0
    %794 = vmatprep.subr.mxu0 0.0
    %v795 = vand.u32 %v64, 4294901760
    %v796 = vsub.f32 %v64, %v795
    %797 = vmatpush1.msra.mxu0 %v796
    %798 = vmatprep.subr.mxu0 0.0
    %v799 = vand.u32 %v63, 4294901760
    %v800 = vsub.f32 %v63, %v799
    %801 = vmatpush1.msra.mxu0 %v800
    %802 = vmatprep.subr.mxu0 0.0
    %v803 = vand.u32 %v62, 4294901760
    %v804 = vsub.f32 %v62, %v803
    %805 = vmatpush1.msra.mxu0 %v804
    %806 = vmatprep.subr.mxu0 0.0
    %v807 = vand.u32 %v61, 4294901760
    %v808 = vsub.f32 %v61, %v807
    %809 = vmatpush1.msra.mxu0 %v808
    %810 = vmatprep.subr.mxu0 0.0
    %v811 = vand.u32 %v60, 4294901760
    %v812 = vsub.f32 %v60, %v811
    %813 = vmatpush1.msra.mxu0 %v812
    %814 = vmatprep.subr.mxu0 0.0
    %v815 = vand.u32 %v59, 4294901760
    %v816 = vsub.f32 %v59, %v815
    %817 = vmatpush1.msra.mxu0 %v816
    %818 = vmatprep.subr.mxu0 0.0
    %819 = vmatpush2.msra.mxu0 0.0
    %820 = vmatprep.subr.mxu0 0.0
    %821 = vmatpush2.msra.mxu0 0.0
    %822 = vmatprep.subr.mxu0 0.0
    %823 = vmatpush2.msra.mxu0 0.0
    %824 = vmatprep.subr.mxu0 0.0
    %825 = vmatpush2.msra.mxu0 0.0
    %826 = vmatprep.subr.mxu0 0.0
    %827 = vmatpush2.msra.mxu0 0.0
    %828 = vmatprep.subr.mxu0 0.0
    %829 = vmatpush2.msra.mxu0 0.0
    %830 = vmatprep.subr.mxu0 0.0
    %831 = vmatpush2.msra.mxu0 0.0
    %832 = vmatprep.subr.mxu0 0.0
    %833 = vmatpush2.msra.mxu0 0.0
    %834 = vmatprep.subr.mxu0 0.0
    %835 = vmatpush2.msra.mxu0 0.0
    %836 = vmatprep.subr.mxu0 0.0
    %837 = vmatpush2.msra.mxu0 0.0
    %838 = vmatprep.subr.mxu0 0.0
    %839 = vmatpush2.msra.mxu0 0.0
    %840 = vmatprep.subr.mxu0 0.0
    %841 = vmatpush2.msra.mxu0 0.0
    %842 = vmatprep.subr.mxu0 0.0
    %843 = vmatpush2.msra.mxu0 0.0
    %844 = vmatprep.subr.mxu0 0.0
    %845 = vmatpush2.msra.mxu0 0.0
    %846 = vmatprep.subr.mxu0 0.0
    %847 = vmatpush2.msra.mxu0 0.0
    %848 = vmatprep.subr.mxu0 0.0
    %849 = vmatpush2.msra.mxu0 0.0
    %850 = vmatprep.mubr.f32.mxu0 0.0
    %v851 = vand.u32 %v590, 4294901760
    %v852 = vsub.f32 %v590, %v851
    %853 = vmatmul.mubr.f32.gmra.mxu0 %v852
    %v854 = vpop.f32.mrf.mxu0
    %v855 = vadd.f32 %v771, %v854
    %v856 = vpop.f32.mrf.mxu0
    %857 = vdwg.mxu0
    %858 = vmatprep.subr.mxu0 0.0
    %859 = vmatpush1.msra.mxu0 0.0
    %860 = vmatprep.subr.mxu0 0.0
    %861 = vmatpush1.msra.mxu0 0.0
    %862 = vmatprep.subr.mxu0 0.0
    %863 = vmatpush1.msra.mxu0 0.0
    %864 = vmatprep.subr.mxu0 0.0
    %865 = vmatpush1.msra.mxu0 0.0
    %866 = vmatprep.subr.mxu0 0.0
    %867 = vmatpush1.msra.mxu0 0.0
    %868 = vmatprep.subr.mxu0 0.0
    %869 = vmatpush1.msra.mxu0 0.0
    %870 = vmatprep.subr.mxu0 0.0
    %871 = vmatpush1.msra.mxu0 0.0
    %872 = vmatprep.subr.mxu0 0.0
    %873 = vmatpush1.msra.mxu0 0.0
    %874 = vmatprep.subr.mxu0 0.0
    %875 = vmatpush1.msra.mxu0 0.0
    %876 = vmatprep.subr.mxu0 0.0
    %877 = vmatpush1.msra.mxu0 0.0
    %878 = vmatprep.subr.mxu0 0.0
    %v879 = vand.u32 %v64, 4294901760
    %880 = vmatpush1.msra.mxu0 %v879
    %881 = vmatprep.subr.mxu0 0.0
    %v882 = vand.u32 %v63, 4294901760
    %883 = vmatpush1.msra.mxu0 %v882
    %884 = vmatprep.subr.mxu0 0.0
    %v885 = vand.u32 %v62, 4294901760
    %886 = vmatpush1.msra.mxu0 %v885
    %887 = vmatprep.subr.mxu0 0.0
    %v888 = vand.u32 %v61, 4294901760
    %889 = vmatpush1.msra.mxu0 %v888
    %890 = vmatprep.subr.mxu0 0.0
    %v891 = vand.u32 %v60, 4294901760
    %892 = vmatpush1.msra.mxu0 %v891
    %893 = vmatprep.subr.mxu0 0.0
    %v894 = vand.u32 %v59, 4294901760
    %895 = vmatpush1.msra.mxu0 %v894
    %896 = vmatprep.subr.mxu0 0.0
    %897 = vmatpush2.msra.mxu0 0.0
    %898 = vmatprep.subr.mxu0 0.0
    %899 = vmatpush2.msra.mxu0 0.0
    %900 = vmatprep.subr.mxu0 0.0
    %901 = vmatpush2.msra.mxu0 0.0
    %902 = vmatprep.subr.mxu0 0.0
    %903 = vmatpush2.msra.mxu0 0.0
    %904 = vmatprep.subr.mxu0 0.0
    %905 = vmatpush2.msra.mxu0 0.0
    %906 = vmatprep.subr.mxu0 0.0
    %907 = vmatpush2.msra.mxu0 0.0
    %908 = vmatprep.subr.mxu0 0.0
    %909 = vmatpush2.msra.mxu0 0.0
    %910 = vmatprep.subr.mxu0 0.0
    %911 = vmatpush2.msra.mxu0 0.0
    %912 = vmatprep.subr.mxu0 0.0
    %913 = vmatpush2.msra.mxu0 0.0
    %914 = vmatprep.subr.mxu0 0.0
    %915 = vmatpush2.msra.mxu0 0.0
    %916 = vmatprep.subr.mxu0 0.0
    %917 = vmatpush2.msra.mxu0 0.0
    %918 = vmatprep.subr.mxu0 0.0
    %919 = vmatpush2.msra.mxu0 0.0
    %920 = vmatprep.subr.mxu0 0.0
    %921 = vmatpush2.msra.mxu0 0.0
    %922 = vmatprep.subr.mxu0 0.0
    %923 = vmatpush2.msra.mxu0 0.0
    %924 = vmatprep.subr.mxu0 0.0
    %925 = vmatpush2.msra.mxu0 0.0
    %926 = vmatprep.subr.mxu0 0.0
    %927 = vmatpush2.msra.mxu0 0.0
    %928 = vmatprep.mubr.f32.mxu0 0.0
    %v929 = vand.u32 %v590, 4294901760
    %v930 = vsub.f32 %v590, %v929
    %v931 = vand.u32 %v930, 4294901760
    %932 = vmatmul.mubr.f32.gmra.mxu0 %v931
    %v933 = vpop.f32.mrf.mxu0
    %v934 = vadd.f32 %v855, %v933
    %v935 = vpop.f32.mrf.mxu0
    %936 = vdwg.mxu0
    %937 = vmatprep.subr.mxu0 0.0
    %938 = vmatpush1.msra.mxu0 0.0
    %939 = vmatprep.subr.mxu0 0.0
    %940 = vmatpush1.msra.mxu0 0.0
    %941 = vmatprep.subr.mxu0 0.0
    %942 = vmatpush1.msra.mxu0 0.0
    %943 = vmatprep.subr.mxu0 0.0
    %944 = vmatpush1.msra.mxu0 0.0
    %945 = vmatprep.subr.mxu0 0.0
    %946 = vmatpush1.msra.mxu0 0.0
    %947 = vmatprep.subr.mxu0 0.0
    %948 = vmatpush1.msra.mxu0 0.0
    %949 = vmatprep.subr.mxu0 0.0
    %950 = vmatpush1.msra.mxu0 0.0
    %951 = vmatprep.subr.mxu0 0.0
    %952 = vmatpush1.msra.mxu0 0.0
    %953 = vmatprep.subr.mxu0 0.0
    %954 = vmatpush1.msra.mxu0 0.0
    %955 = vmatprep.subr.mxu0 0.0
    %956 = vmatpush1.msra.mxu0 0.0
    %957 = vmatprep.subr.mxu0 0.0
    %v958 = vand.u32 %v64, 4294901760
    %v959 = vsub.f32 %v64, %v958
    %v960 = vand.u32 %v959, 4294901760
    %961 = vmatpush1.msra.mxu0 %v960
    %962 = vmatprep.subr.mxu0 0.0
    %v963 = vand.u32 %v63, 4294901760
    %v964 = vsub.f32 %v63, %v963
    %v965 = vand.u32 %v964, 4294901760
    %966 = vmatpush1.msra.mxu0 %v965
    %967 = vmatprep.subr.mxu0 0.0
    %v968 = vand.u32 %v62, 4294901760
    %v969 = vsub.f32 %v62, %v968
    %v970 = vand.u32 %v969, 4294901760
    %971 = vmatpush1.msra.mxu0 %v970
    %972 = vmatprep.subr.mxu0 0.0
    %v973 = vand.u32 %v61, 4294901760
    %v974 = vsub.f32 %v61, %v973
    %v975 = vand.u32 %v974, 4294901760
    %976 = vmatpush1.msra.mxu0 %v975
    %977 = vmatprep.subr.mxu0 0.0
    %v978 = vand.u32 %v60, 4294901760
    %v979 = vsub.f32 %v60, %v978
    %v980 = vand.u32 %v979, 4294901760
    %981 = vmatpush1.msra.mxu0 %v980
    %982 = vmatprep.subr.mxu0 0.0
    %v983 = vand.u32 %v59, 4294901760
    %v984 = vsub.f32 %v59, %v983
    %v985 = vand.u32 %v984, 4294901760
    %986 = vmatpush1.msra.mxu0 %v985
    %987 = vmatprep.subr.mxu0 0.0
    %988 = vmatpush2.msra.mxu0 0.0
    %989 = vmatprep.subr.mxu0 0.0
    %990 = vmatpush2.msra.mxu0 0.0
    %991 = vmatprep.subr.mxu0 0.0
    %992 = vmatpush2.msra.mxu0 0.0
    %993 = vmatprep.subr.mxu0 0.0
    %994 = vmatpush2.msra.mxu0 0.0
    %995 = vmatprep.subr.mxu0 0.0
    %996 = vmatpush2.msra.mxu0 0.0
    %997 = vmatprep.subr.mxu0 0.0
    %998 = vmatpush2.msra.mxu0 0.0
    %999 = vmatprep.subr.mxu0 0.0
    %1000 = vmatpush2.msra.mxu0 0.0
    %1001 = vmatprep.subr.mxu0 0.0
    %1002 = vmatpush2.msra.mxu0 0.0
    %1003 = vmatprep.subr.mxu0 0.0
    %1004 = vmatpush2.msra.mxu0 0.0
    %1005 = vmatprep.subr.mxu0 0.0
    %1006 = vmatpush2.msra.mxu0 0.0
    %1007 = vmatprep.subr.mxu0 0.0
    %1008 = vmatpush2.msra.mxu0 0.0
    %1009 = vmatprep.subr.mxu0 0.0
    %1010 = vmatpush2.msra.mxu0 0.0
    %1011 = vmatprep.subr.mxu0 0.0
    %1012 = vmatpush2.msra.mxu0 0.0
    %1013 = vmatprep.subr.mxu0 0.0
    %1014 = vmatpush2.msra.mxu0 0.0
    %1015 = vmatprep.subr.mxu0 0.0
    %1016 = vmatpush2.msra.mxu0 0.0
    %1017 = vmatprep.subr.mxu0 0.0
    %1018 = vmatpush2.msra.mxu0 0.0
    %1019 = vmatprep.mubr.f32.mxu0 0.0
    %v1020 = vand.u32 %v590, 4294901760
    %1021 = vmatmul.mubr.f32.gmra.mxu0 %v1020
    %v1022 = vpop.f32.mrf.mxu0
    %v1023 = vadd.f32 %v934, %v1022
    %v1024 = vpop.f32.mrf.mxu0
    %1025 = vdwg.mxu0
    %1026 = vmatprep.subr.mxu0 0.0
    %1027 = vmatpush1.msra.mxu0 0.0
    %1028 = vmatprep.subr.mxu0 0.0
    %1029 = vmatpush1.msra.mxu0 0.0
    %1030 = vmatprep.subr.mxu0 0.0
    %1031 = vmatpush1.msra.mxu0 0.0
    %1032 = vmatprep.subr.mxu0 0.0
    %1033 = vmatpush1.msra.mxu0 0.0
    %1034 = vmatprep.subr.mxu0 0.0
    %1035 = vmatpush1.msra.mxu0 0.0
    %1036 = vmatprep.subr.mxu0 0.0
    %1037 = vmatpush1.msra.mxu0 0.0
    %1038 = vmatprep.subr.mxu0 0.0
    %1039 = vmatpush1.msra.mxu0 0.0
    %1040 = vmatprep.subr.mxu0 0.0
    %1041 = vmatpush1.msra.mxu0 0.0
    %1042 = vmatprep.subr.mxu0 0.0
    %1043 = vmatpush1.msra.mxu0 0.0
    %1044 = vmatprep.subr.mxu0 0.0
    %1045 = vmatpush1.msra.mxu0 0.0
    %1046 = vmatprep.subr.mxu0 0.0
    %v1047 = vand.u32 %v64, 4294901760
    %1048 = vmatpush1.msra.mxu0 %v1047
    %1049 = vmatprep.subr.mxu0 0.0
    %v1050 = vand.u32 %v63, 4294901760
    %1051 = vmatpush1.msra.mxu0 %v1050
    %1052 = vmatprep.subr.mxu0 0.0
    %v1053 = vand.u32 %v62, 4294901760
    %1054 = vmatpush1.msra.mxu0 %v1053
    %1055 = vmatprep.subr.mxu0 0.0
    %v1056 = vand.u32 %v61, 4294901760
    %1057 = vmatpush1.msra.mxu0 %v1056
    %1058 = vmatprep.subr.mxu0 0.0
    %v1059 = vand.u32 %v60, 4294901760
    %1060 = vmatpush1.msra.mxu0 %v1059
    %1061 = vmatprep.subr.mxu0 0.0
    %v1062 = vand.u32 %v59, 4294901760
    %1063 = vmatpush1.msra.mxu0 %v1062
    %1064 = vmatprep.subr.mxu0 0.0
    %1065 = vmatpush2.msra.mxu0 0.0
    %1066 = vmatprep.subr.mxu0 0.0
    %1067 = vmatpush2.msra.mxu0 0.0
    %1068 = vmatprep.subr.mxu0 0.0
    %1069 = vmatpush2.msra.mxu0 0.0
    %1070 = vmatprep.subr.mxu0 0.0
    %1071 = vmatpush2.msra.mxu0 0.0
    %1072 = vmatprep.subr.mxu0 0.0
    %1073 = vmatpush2.msra.mxu0 0.0
    %1074 = vmatprep.subr.mxu0 0.0
    %1075 = vmatpush2.msra.mxu0 0.0
    %1076 = vmatprep.subr.mxu0 0.0
    %1077 = vmatpush2.msra.mxu0 0.0
    %1078 = vmatprep.subr.mxu0 0.0
    %1079 = vmatpush2.msra.mxu0 0.0
    %1080 = vmatprep.subr.mxu0 0.0
    %1081 = vmatpush2.msra.mxu0 0.0
    %1082 = vmatprep.subr.mxu0 0.0
    %1083 = vmatpush2.msra.mxu0 0.0
    %1084 = vmatprep.subr.mxu0 0.0
    %1085 = vmatpush2.msra.mxu0 0.0
    %1086 = vmatprep.subr.mxu0 0.0
    %1087 = vmatpush2.msra.mxu0 0.0
    %1088 = vmatprep.subr.mxu0 0.0
    %1089 = vmatpush2.msra.mxu0 0.0
    %1090 = vmatprep.subr.mxu0 0.0
    %1091 = vmatpush2.msra.mxu0 0.0
    %1092 = vmatprep.subr.mxu0 0.0
    %1093 = vmatpush2.msra.mxu0 0.0
    %1094 = vmatprep.subr.mxu0 0.0
    %1095 = vmatpush2.msra.mxu0 0.0
    %1096 = vmatprep.mubr.f32.mxu0 0.0
    %v1097 = vand.u32 %v590, 4294901760
    %1098 = vmatmul.mubr.f32.gmra.mxu0 %v1097
    %v1099 = vpop.f32.mrf.mxu0
    %v1100 = vadd.f32 %v1023, %v1099
    %v1101 = vpop.f32.mrf.mxu0
    %1102 = vdwg.mxu0
    %v1103 = vmul.f32 %v1100, %v65
    %v1104 = vmul.f32 %v1100, %v66
    %v1105 = vmul.f32 %v1100, %v67
    %v1106 = vmul.f32 %v1100, %v68
    %v1107 = vmul.f32 %v1100, %v69
    %v1108 = vmul.f32 %v1100, %v70
    %v1109 = vmul.f32 %v1100, %v71
    %v1110 = vmul.f32 %v1100, %v72
    %1119 = vrot.lane.b32.xlu0 %v65, 64
    %v1120 = vpop.permute.xlu0 %1119
    %1121 = vrot.lane.b32.xlu0 %v66, 64
    %v1122 = vpop.permute.xlu0 %1121
    %1123 = vrot.lane.b32.xlu0 %v67, 64
    %v1124 = vpop.permute.xlu0 %1123
    %1125 = vrot.lane.b32.xlu0 %v68, 64
    %v1126 = vpop.permute.xlu0 %1125
    %1127 = vrot.lane.b32.xlu0 %v69, 64
    %v1128 = vpop.permute.xlu0 %1127
    %1129 = vrot.lane.b32.xlu0 %v70, 64
    %v1130 = vpop.permute.xlu0 %1129
    %1131 = vrot.lane.b32.xlu0 %v71, 64
    %v1132 = vpop.permute.xlu0 %1131
    %1133 = vrot.lane.b32.xlu0 %v72, 64
    %v1134 = vpop.permute.xlu0 %1133
    %v1143 = vmul.f32 %v1100, %v1120
    %v1144 = vmul.f32 %v1100, %v1122
    %v1145 = vmul.f32 %v1100, %v1124
    %v1146 = vmul.f32 %v1100, %v1126
    %v1147 = vmul.f32 %v1100, %v1128
    %v1148 = vmul.f32 %v1100, %v1130
    %v1149 = vmul.f32 %v1100, %v1132
    %v1150 = vmul.f32 %v1100, %v1134
    %vm1151 = vcmask 523264
    %v1153 = vsel %vm1151, %v580, 0
    %v1156 = vsel %vm1151, %v1103, 0
    %v1159 = vsel %vm1151, %v1104, 0
    %v1162 = vsel %vm1151, %v1105, 0
    %v1165 = vsel %vm1151, %v1106, 0
    %v1168 = vsel %vm1151, %v1107, 0
    %v1171 = vsel %vm1151, %v1108, 0
    %v1174 = vsel %vm1151, %v1109, 0
    %v1177 = vsel %vm1151, %v1110, 0
    %1179 = vmatprep.subr.mxu0 0.0
    %1180 = vmatpush1.xpose.msra.mxu0 0.0
    %1181 = vmatprep.subr.mxu0 0.0
    %1182 = vmatpush1.xpose.msra.mxu0 0.0
    %1183 = vmatprep.subr.mxu0 0.0
    %1184 = vmatpush1.xpose.msra.mxu0 0.0
    %1185 = vmatprep.subr.mxu0 0.0
    %1186 = vmatpush1.xpose.msra.mxu0 0.0
    %1187 = vmatprep.subr.mxu0 0.0
    %1188 = vmatpush1.xpose.msra.mxu0 0.0
    %1189 = vmatprep.subr.mxu0 0.0
    %1190 = vmatpush1.xpose.msra.mxu0 0.0
    %1191 = vmatprep.subr.mxu0 0.0
    %1192 = vmatpush1.xpose.msra.mxu0 0.0
    %1193 = vmatprep.subr.mxu0 0.0
    %1194 = vmatpush1.xpose.msra.mxu0 0.0
    %1195 = vmatprep.subr.mxu0 0.0
    %v1196 = vand.u32 %v1177, 4294901760
    %1197 = vmatpush1.xpose.msra.mxu0 %v1196
    %1198 = vmatprep.subr.mxu0 0.0
    %v1199 = vand.u32 %v1174, 4294901760
    %1200 = vmatpush1.xpose.msra.mxu0 %v1199
    %1201 = vmatprep.subr.mxu0 0.0
    %v1202 = vand.u32 %v1171, 4294901760
    %1203 = vmatpush1.xpose.msra.mxu0 %v1202
    %1204 = vmatprep.subr.mxu0 0.0
    %v1205 = vand.u32 %v1168, 4294901760
    %1206 = vmatpush1.xpose.msra.mxu0 %v1205
    %1207 = vmatprep.subr.mxu0 0.0
    %v1208 = vand.u32 %v1165, 4294901760
    %1209 = vmatpush1.xpose.msra.mxu0 %v1208
    %1210 = vmatprep.subr.mxu0 0.0
    %v1211 = vand.u32 %v1162, 4294901760
    %1212 = vmatpush1.xpose.msra.mxu0 %v1211
    %1213 = vmatprep.subr.mxu0 0.0
    %v1214 = vand.u32 %v1159, 4294901760
    %1215 = vmatpush1.xpose.msra.mxu0 %v1214
    %1216 = vmatprep.subr.mxu0 0.0
    %v1217 = vand.u32 %v1156, 4294901760
    %1218 = vmatpush1.xpose.msra.mxu0 %v1217
    %1219 = vmatprep.subr.mxu0 0.0
    %1220 = vmatpush2.xpose.msra.mxu0 0.0
    %1221 = vmatprep.subr.mxu0 0.0
    %1222 = vmatpush2.xpose.msra.mxu0 0.0
    %1223 = vmatprep.subr.mxu0 0.0
    %1224 = vmatpush2.xpose.msra.mxu0 0.0
    %1225 = vmatprep.subr.mxu0 0.0
    %1226 = vmatpush2.xpose.msra.mxu0 0.0
    %1227 = vmatprep.subr.mxu0 0.0
    %1228 = vmatpush2.xpose.msra.mxu0 0.0
    %1229 = vmatprep.subr.mxu0 0.0
    %1230 = vmatpush2.xpose.msra.mxu0 0.0
    %1231 = vmatprep.subr.mxu0 0.0
    %1232 = vmatpush2.xpose.msra.mxu0 0.0
    %1233 = vmatprep.subr.mxu0 0.0
    %1234 = vmatpush2.xpose.msra.mxu0 0.0
    %1235 = vmatprep.subr.mxu0 0.0
    %1236 = vmatpush2.xpose.msra.mxu0 0.0
    %1237 = vmatprep.subr.mxu0 0.0
    %1238 = vmatpush2.xpose.msra.mxu0 0.0
    %1239 = vmatprep.subr.mxu0 0.0
    %1240 = vmatpush2.xpose.msra.mxu0 0.0
    %1241 = vmatprep.subr.mxu0 0.0
    %1242 = vmatpush2.xpose.msra.mxu0 0.0
    %1243 = vmatprep.subr.mxu0 0.0
    %1244 = vmatpush2.xpose.msra.mxu0 0.0
    %1245 = vmatprep.subr.mxu0 0.0
    %1246 = vmatpush2.xpose.msra.mxu0 0.0
    %1247 = vmatprep.subr.mxu0 0.0
    %1248 = vmatpush2.xpose.msra.mxu0 0.0
    %1249 = vmatprep.subr.mxu0 0.0
    %1250 = vmatpush2.xpose.msra.mxu0 0.0
    %1251 = vmatprep.mubr.f32.mxu0 0.0
    %v1252 = vand.u32 %v1153, 4294901760
    %v1253 = vsub.f32 %v1153, %v1252
    %v1254 = vand.u32 %v1253, 4294901760
    %v1255 = vsub.f32 %v1253, %v1254
    %v1256 = vand.u32 %v1255, 4294901760
    %1257 = vmatmul.mubr.f32.gmra.mxu0 %v1256
    %v1258 = vpop.f32.mrf.mxu0
    %v1259 = vadd.f32 0.0, %v1258
    %v1260 = vpop.f32.mrf.mxu0
    %1261 = vdwg.mxu0
    %1262 = vmatprep.subr.mxu0 0.0
    %1263 = vmatpush1.xpose.msra.mxu0 0.0
    %1264 = vmatprep.subr.mxu0 0.0
    %1265 = vmatpush1.xpose.msra.mxu0 0.0
    %1266 = vmatprep.subr.mxu0 0.0
    %1267 = vmatpush1.xpose.msra.mxu0 0.0
    %1268 = vmatprep.subr.mxu0 0.0
    %1269 = vmatpush1.xpose.msra.mxu0 0.0
    %1270 = vmatprep.subr.mxu0 0.0
    %1271 = vmatpush1.xpose.msra.mxu0 0.0
    %1272 = vmatprep.subr.mxu0 0.0
    %1273 = vmatpush1.xpose.msra.mxu0 0.0
    %1274 = vmatprep.subr.mxu0 0.0
    %1275 = vmatpush1.xpose.msra.mxu0 0.0
    %1276 = vmatprep.subr.mxu0 0.0
    %1277 = vmatpush1.xpose.msra.mxu0 0.0
    %1278 = vmatprep.subr.mxu0 0.0
    %v1279 = vand.u32 %v1177, 4294901760
    %v1280 = vsub.f32 %v1177, %v1279
    %v1281 = vand.u32 %v1280, 4294901760
    %v1282 = vsub.f32 %v1280, %v1281
    %v1283 = vand.u32 %v1282, 4294901760
    %1284 = vmatpush1.xpose.msra.mxu0 %v1283
    %1285 = vmatprep.subr.mxu0 0.0
    %v1286 = vand.u32 %v1174, 4294901760
    %v1287 = vsub.f32 %v1174, %v1286
    %v1288 = vand.u32 %v1287, 4294901760
    %v1289 = vsub.f32 %v1287, %v1288
    %v1290 = vand.u32 %v1289, 4294901760
    %1291 = vmatpush1.xpose.msra.mxu0 %v1290
    %1292 = vmatprep.subr.mxu0 0.0
    %v1293 = vand.u32 %v1171, 4294901760
    %v1294 = vsub.f32 %v1171, %v1293
    %v1295 = vand.u32 %v1294, 4294901760
    %v1296 = vsub.f32 %v1294, %v1295
    %v1297 = vand.u32 %v1296, 4294901760
    %1298 = vmatpush1.xpose.msra.mxu0 %v1297
    %1299 = vmatprep.subr.mxu0 0.0
    %v1300 = vand.u32 %v1168, 4294901760
    %v1301 = vsub.f32 %v1168, %v1300
    %v1302 = vand.u32 %v1301, 4294901760
    %v1303 = vsub.f32 %v1301, %v1302
    %v1304 = vand.u32 %v1303, 4294901760
    %1305 = vmatpush1.xpose.msra.mxu0 %v1304
    %1306 = vmatprep.subr.mxu0 0.0
    %v1307 = vand.u32 %v1165, 4294901760
    %v1308 = vsub.f32 %v1165, %v1307
    %v1309 = vand.u32 %v1308, 4294901760
    %v1310 = vsub.f32 %v1308, %v1309
    %v1311 = vand.u32 %v1310, 4294901760
    %1312 = vmatpush1.xpose.msra.mxu0 %v1311
    %1313 = vmatprep.subr.mxu0 0.0
    %v1314 = vand.u32 %v1162, 4294901760
    %v1315 = vsub.f32 %v1162, %v1314
    %v1316 = vand.u32 %v1315, 4294901760
    %v1317 = vsub.f32 %v1315, %v1316
    %v1318 = vand.u32 %v1317, 4294901760
    %1319 = vmatpush1.xpose.msra.mxu0 %v1318
    %1320 = vmatprep.subr.mxu0 0.0
    %v1321 = vand.u32 %v1159, 4294901760
    %v1322 = vsub.f32 %v1159, %v1321
    %v1323 = vand.u32 %v1322, 4294901760
    %v1324 = vsub.f32 %v1322, %v1323
    %v1325 = vand.u32 %v1324, 4294901760
    %1326 = vmatpush1.xpose.msra.mxu0 %v1325
    %1327 = vmatprep.subr.mxu0 0.0
    %v1328 = vand.u32 %v1156, 4294901760
    %v1329 = vsub.f32 %v1156, %v1328
    %v1330 = vand.u32 %v1329, 4294901760
    %v1331 = vsub.f32 %v1329, %v1330
    %v1332 = vand.u32 %v1331, 4294901760
    %1333 = vmatpush1.xpose.msra.mxu0 %v1332
    %1334 = vmatprep.subr.mxu0 0.0
    %1335 = vmatpush2.xpose.msra.mxu0 0.0
    %1336 = vmatprep.subr.mxu0 0.0
    %1337 = vmatpush2.xpose.msra.mxu0 0.0
    %1338 = vmatprep.subr.mxu0 0.0
    %1339 = vmatpush2.xpose.msra.mxu0 0.0
    %1340 = vmatprep.subr.mxu0 0.0
    %1341 = vmatpush2.xpose.msra.mxu0 0.0
    %1342 = vmatprep.subr.mxu0 0.0
    %1343 = vmatpush2.xpose.msra.mxu0 0.0
    %1344 = vmatprep.subr.mxu0 0.0
    %1345 = vmatpush2.xpose.msra.mxu0 0.0
    %1346 = vmatprep.subr.mxu0 0.0
    %1347 = vmatpush2.xpose.msra.mxu0 0.0
    %1348 = vmatprep.subr.mxu0 0.0
    %1349 = vmatpush2.xpose.msra.mxu0 0.0
    %1350 = vmatprep.subr.mxu0 0.0
    %1351 = vmatpush2.xpose.msra.mxu0 0.0
    %1352 = vmatprep.subr.mxu0 0.0
    %1353 = vmatpush2.xpose.msra.mxu0 0.0
    %1354 = vmatprep.subr.mxu0 0.0
    %1355 = vmatpush2.xpose.msra.mxu0 0.0
    %1356 = vmatprep.subr.mxu0 0.0
    %1357 = vmatpush2.xpose.msra.mxu0 0.0
    %1358 = vmatprep.subr.mxu0 0.0
    %1359 = vmatpush2.xpose.msra.mxu0 0.0
    %1360 = vmatprep.subr.mxu0 0.0
    %1361 = vmatpush2.xpose.msra.mxu0 0.0
    %1362 = vmatprep.subr.mxu0 0.0
    %1363 = vmatpush2.xpose.msra.mxu0 0.0
    %1364 = vmatprep.subr.mxu0 0.0
    %1365 = vmatpush2.xpose.msra.mxu0 0.0
    %1366 = vmatprep.mubr.f32.mxu0 0.0
    %v1367 = vand.u32 %v1153, 4294901760
    %1368 = vmatmul.mubr.f32.gmra.mxu0 %v1367
    %v1369 = vpop.f32.mrf.mxu0
    %v1370 = vadd.f32 %v1259, %v1369
    %v1371 = vpop.f32.mrf.mxu0
    %1372 = vdwg.mxu0
    %1373 = vmatprep.subr.mxu0 0.0
    %1374 = vmatpush1.xpose.msra.mxu0 0.0
    %1375 = vmatprep.subr.mxu0 0.0
    %1376 = vmatpush1.xpose.msra.mxu0 0.0
    %1377 = vmatprep.subr.mxu0 0.0
    %1378 = vmatpush1.xpose.msra.mxu0 0.0
    %1379 = vmatprep.subr.mxu0 0.0
    %1380 = vmatpush1.xpose.msra.mxu0 0.0
    %1381 = vmatprep.subr.mxu0 0.0
    %1382 = vmatpush1.xpose.msra.mxu0 0.0
    %1383 = vmatprep.subr.mxu0 0.0
    %1384 = vmatpush1.xpose.msra.mxu0 0.0
    %1385 = vmatprep.subr.mxu0 0.0
    %1386 = vmatpush1.xpose.msra.mxu0 0.0
    %1387 = vmatprep.subr.mxu0 0.0
    %1388 = vmatpush1.xpose.msra.mxu0 0.0
    %1389 = vmatprep.subr.mxu0 0.0
    %v1390 = vand.u32 %v1177, 4294901760
    %v1391 = vsub.f32 %v1177, %v1390
    %1392 = vmatpush1.xpose.msra.mxu0 %v1391
    %1393 = vmatprep.subr.mxu0 0.0
    %v1394 = vand.u32 %v1174, 4294901760
    %v1395 = vsub.f32 %v1174, %v1394
    %1396 = vmatpush1.xpose.msra.mxu0 %v1395
    %1397 = vmatprep.subr.mxu0 0.0
    %v1398 = vand.u32 %v1171, 4294901760
    %v1399 = vsub.f32 %v1171, %v1398
    %1400 = vmatpush1.xpose.msra.mxu0 %v1399
    %1401 = vmatprep.subr.mxu0 0.0
    %v1402 = vand.u32 %v1168, 4294901760
    %v1403 = vsub.f32 %v1168, %v1402
    %1404 = vmatpush1.xpose.msra.mxu0 %v1403
    %1405 = vmatprep.subr.mxu0 0.0
    %v1406 = vand.u32 %v1165, 4294901760
    %v1407 = vsub.f32 %v1165, %v1406
    %1408 = vmatpush1.xpose.msra.mxu0 %v1407
    %1409 = vmatprep.subr.mxu0 0.0
    %v1410 = vand.u32 %v1162, 4294901760
    %v1411 = vsub.f32 %v1162, %v1410
    %1412 = vmatpush1.xpose.msra.mxu0 %v1411
    %1413 = vmatprep.subr.mxu0 0.0
    %v1414 = vand.u32 %v1159, 4294901760
    %v1415 = vsub.f32 %v1159, %v1414
    %1416 = vmatpush1.xpose.msra.mxu0 %v1415
    %1417 = vmatprep.subr.mxu0 0.0
    %v1418 = vand.u32 %v1156, 4294901760
    %v1419 = vsub.f32 %v1156, %v1418
    %1420 = vmatpush1.xpose.msra.mxu0 %v1419
    %1421 = vmatprep.subr.mxu0 0.0
    %1422 = vmatpush2.xpose.msra.mxu0 0.0
    %1423 = vmatprep.subr.mxu0 0.0
    %1424 = vmatpush2.xpose.msra.mxu0 0.0
    %1425 = vmatprep.subr.mxu0 0.0
    %1426 = vmatpush2.xpose.msra.mxu0 0.0
    %1427 = vmatprep.subr.mxu0 0.0
    %1428 = vmatpush2.xpose.msra.mxu0 0.0
    %1429 = vmatprep.subr.mxu0 0.0
    %1430 = vmatpush2.xpose.msra.mxu0 0.0
    %1431 = vmatprep.subr.mxu0 0.0
    %1432 = vmatpush2.xpose.msra.mxu0 0.0
    %1433 = vmatprep.subr.mxu0 0.0
    %1434 = vmatpush2.xpose.msra.mxu0 0.0
    %1435 = vmatprep.subr.mxu0 0.0
    %1436 = vmatpush2.xpose.msra.mxu0 0.0
    %1437 = vmatprep.subr.mxu0 0.0
    %1438 = vmatpush2.xpose.msra.mxu0 0.0
    %1439 = vmatprep.subr.mxu0 0.0
    %1440 = vmatpush2.xpose.msra.mxu0 0.0
    %1441 = vmatprep.subr.mxu0 0.0
    %1442 = vmatpush2.xpose.msra.mxu0 0.0
    %1443 = vmatprep.subr.mxu0 0.0
    %1444 = vmatpush2.xpose.msra.mxu0 0.0
    %1445 = vmatprep.subr.mxu0 0.0
    %1446 = vmatpush2.xpose.msra.mxu0 0.0
    %1447 = vmatprep.subr.mxu0 0.0
    %1448 = vmatpush2.xpose.msra.mxu0 0.0
    %1449 = vmatprep.subr.mxu0 0.0
    %1450 = vmatpush2.xpose.msra.mxu0 0.0
    %1451 = vmatprep.subr.mxu0 0.0
    %1452 = vmatpush2.xpose.msra.mxu0 0.0
    %1453 = vmatprep.mubr.f32.mxu0 0.0
    %v1454 = vand.u32 %v1153, 4294901760
    %v1455 = vsub.f32 %v1153, %v1454
    %1456 = vmatmul.mubr.f32.gmra.mxu0 %v1455
    %v1457 = vpop.f32.mrf.mxu0
    %v1458 = vadd.f32 %v1370, %v1457
    %v1459 = vpop.f32.mrf.mxu0
    %1460 = vdwg.mxu0
    %1461 = vmatprep.subr.mxu0 0.0
    %1462 = vmatpush1.xpose.msra.mxu0 0.0
    %1463 = vmatprep.subr.mxu0 0.0
    %1464 = vmatpush1.xpose.msra.mxu0 0.0
    %1465 = vmatprep.subr.mxu0 0.0
    %1466 = vmatpush1.xpose.msra.mxu0 0.0
    %1467 = vmatprep.subr.mxu0 0.0
    %1468 = vmatpush1.xpose.msra.mxu0 0.0
    %1469 = vmatprep.subr.mxu0 0.0
    %1470 = vmatpush1.xpose.msra.mxu0 0.0
    %1471 = vmatprep.subr.mxu0 0.0
    %1472 = vmatpush1.xpose.msra.mxu0 0.0
    %1473 = vmatprep.subr.mxu0 0.0
    %1474 = vmatpush1.xpose.msra.mxu0 0.0
    %1475 = vmatprep.subr.mxu0 0.0
    %1476 = vmatpush1.xpose.msra.mxu0 0.0
    %1477 = vmatprep.subr.mxu0 0.0
    %v1478 = vand.u32 %v1177, 4294901760
    %1479 = vmatpush1.xpose.msra.mxu0 %v1478
    %1480 = vmatprep.subr.mxu0 0.0
    %v1481 = vand.u32 %v1174, 4294901760
    %1482 = vmatpush1.xpose.msra.mxu0 %v1481
    %1483 = vmatprep.subr.mxu0 0.0
    %v1484 = vand.u32 %v1171, 4294901760
    %1485 = vmatpush1.xpose.msra.mxu0 %v1484
    %1486 = vmatprep.subr.mxu0 0.0
    %v1487 = vand.u32 %v1168, 4294901760
    %1488 = vmatpush1.xpose.msra.mxu0 %v1487
    %1489 = vmatprep.subr.mxu0 0.0
    %v1490 = vand.u32 %v1165, 4294901760
    %1491 = vmatpush1.xpose.msra.mxu0 %v1490
    %1492 = vmatprep.subr.mxu0 0.0
    %v1493 = vand.u32 %v1162, 4294901760
    %1494 = vmatpush1.xpose.msra.mxu0 %v1493
    %1495 = vmatprep.subr.mxu0 0.0
    %v1496 = vand.u32 %v1159, 4294901760
    %1497 = vmatpush1.xpose.msra.mxu0 %v1496
    %1498 = vmatprep.subr.mxu0 0.0
    %v1499 = vand.u32 %v1156, 4294901760
    %1500 = vmatpush1.xpose.msra.mxu0 %v1499
    %1501 = vmatprep.subr.mxu0 0.0
    %1502 = vmatpush2.xpose.msra.mxu0 0.0
    %1503 = vmatprep.subr.mxu0 0.0
    %1504 = vmatpush2.xpose.msra.mxu0 0.0
    %1505 = vmatprep.subr.mxu0 0.0
    %1506 = vmatpush2.xpose.msra.mxu0 0.0
    %1507 = vmatprep.subr.mxu0 0.0
    %1508 = vmatpush2.xpose.msra.mxu0 0.0
    %1509 = vmatprep.subr.mxu0 0.0
    %1510 = vmatpush2.xpose.msra.mxu0 0.0
    %1511 = vmatprep.subr.mxu0 0.0
    %1512 = vmatpush2.xpose.msra.mxu0 0.0
    %1513 = vmatprep.subr.mxu0 0.0
    %1514 = vmatpush2.xpose.msra.mxu0 0.0
    %1515 = vmatprep.subr.mxu0 0.0
    %1516 = vmatpush2.xpose.msra.mxu0 0.0
    %1517 = vmatprep.subr.mxu0 0.0
    %1518 = vmatpush2.xpose.msra.mxu0 0.0
    %1519 = vmatprep.subr.mxu0 0.0
    %1520 = vmatpush2.xpose.msra.mxu0 0.0
    %1521 = vmatprep.subr.mxu0 0.0
    %1522 = vmatpush2.xpose.msra.mxu0 0.0
    %1523 = vmatprep.subr.mxu0 0.0
    %1524 = vmatpush2.xpose.msra.mxu0 0.0
    %1525 = vmatprep.subr.mxu0 0.0
    %1526 = vmatpush2.xpose.msra.mxu0 0.0
    %1527 = vmatprep.subr.mxu0 0.0
    %1528 = vmatpush2.xpose.msra.mxu0 0.0
    %1529 = vmatprep.subr.mxu0 0.0
    %1530 = vmatpush2.xpose.msra.mxu0 0.0
    %1531 = vmatprep.subr.mxu0 0.0
    %1532 = vmatpush2.xpose.msra.mxu0 0.0
    %1533 = vmatprep.mubr.f32.mxu0 0.0
    %v1534 = vand.u32 %v1153, 4294901760
    %v1535 = vsub.f32 %v1153, %v1534
    %v1536 = vand.u32 %v1535, 4294901760
    %1537 = vmatmul.mubr.f32.gmra.mxu0 %v1536
    %v1538 = vpop.f32.mrf.mxu0
    %v1539 = vadd.f32 %v1458, %v1538
    %v1540 = vpop.f32.mrf.mxu0
    %1541 = vdwg.mxu0
    %1542 = vmatprep.subr.mxu0 0.0
    %1543 = vmatpush1.xpose.msra.mxu0 0.0
    %1544 = vmatprep.subr.mxu0 0.0
    %1545 = vmatpush1.xpose.msra.mxu0 0.0
    %1546 = vmatprep.subr.mxu0 0.0
    %1547 = vmatpush1.xpose.msra.mxu0 0.0
    %1548 = vmatprep.subr.mxu0 0.0
    %1549 = vmatpush1.xpose.msra.mxu0 0.0
    %1550 = vmatprep.subr.mxu0 0.0
    %1551 = vmatpush1.xpose.msra.mxu0 0.0
    %1552 = vmatprep.subr.mxu0 0.0
    %1553 = vmatpush1.xpose.msra.mxu0 0.0
    %1554 = vmatprep.subr.mxu0 0.0
    %1555 = vmatpush1.xpose.msra.mxu0 0.0
    %1556 = vmatprep.subr.mxu0 0.0
    %1557 = vmatpush1.xpose.msra.mxu0 0.0
    %1558 = vmatprep.subr.mxu0 0.0
    %v1559 = vand.u32 %v1177, 4294901760
    %v1560 = vsub.f32 %v1177, %v1559
    %v1561 = vand.u32 %v1560, 4294901760
    %1562 = vmatpush1.xpose.msra.mxu0 %v1561
    %1563 = vmatprep.subr.mxu0 0.0
    %v1564 = vand.u32 %v1174, 4294901760
    %v1565 = vsub.f32 %v1174, %v1564
    %v1566 = vand.u32 %v1565, 4294901760
    %1567 = vmatpush1.xpose.msra.mxu0 %v1566
    %1568 = vmatprep.subr.mxu0 0.0
    %v1569 = vand.u32 %v1171, 4294901760
    %v1570 = vsub.f32 %v1171, %v1569
    %v1571 = vand.u32 %v1570, 4294901760
    %1572 = vmatpush1.xpose.msra.mxu0 %v1571
    %1573 = vmatprep.subr.mxu0 0.0
    %v1574 = vand.u32 %v1168, 4294901760
    %v1575 = vsub.f32 %v1168, %v1574
    %v1576 = vand.u32 %v1575, 4294901760
    %1577 = vmatpush1.xpose.msra.mxu0 %v1576
    %1578 = vmatprep.subr.mxu0 0.0
    %v1579 = vand.u32 %v1165, 4294901760
    %v1580 = vsub.f32 %v1165, %v1579
    %v1581 = vand.u32 %v1580, 4294901760
    %1582 = vmatpush1.xpose.msra.mxu0 %v1581
    %1583 = vmatprep.subr.mxu0 0.0
    %v1584 = vand.u32 %v1162, 4294901760
    %v1585 = vsub.f32 %v1162, %v1584
    %v1586 = vand.u32 %v1585, 4294901760
    %1587 = vmatpush1.xpose.msra.mxu0 %v1586
    %1588 = vmatprep.subr.mxu0 0.0
    %v1589 = vand.u32 %v1159, 4294901760
    %v1590 = vsub.f32 %v1159, %v1589
    %v1591 = vand.u32 %v1590, 4294901760
    %1592 = vmatpush1.xpose.msra.mxu0 %v1591
    %1593 = vmatprep.subr.mxu0 0.0
    %v1594 = vand.u32 %v1156, 4294901760
    %v1595 = vsub.f32 %v1156, %v1594
    %v1596 = vand.u32 %v1595, 4294901760
    %1597 = vmatpush1.xpose.msra.mxu0 %v1596
    %1598 = vmatprep.subr.mxu0 0.0
    %1599 = vmatpush2.xpose.msra.mxu0 0.0
    %1600 = vmatprep.subr.mxu0 0.0
    %1601 = vmatpush2.xpose.msra.mxu0 0.0
    %1602 = vmatprep.subr.mxu0 0.0
    %1603 = vmatpush2.xpose.msra.mxu0 0.0
    %1604 = vmatprep.subr.mxu0 0.0
    %1605 = vmatpush2.xpose.msra.mxu0 0.0
    %1606 = vmatprep.subr.mxu0 0.0
    %1607 = vmatpush2.xpose.msra.mxu0 0.0
    %1608 = vmatprep.subr.mxu0 0.0
    %1609 = vmatpush2.xpose.msra.mxu0 0.0
    %1610 = vmatprep.subr.mxu0 0.0
    %1611 = vmatpush2.xpose.msra.mxu0 0.0
    %1612 = vmatprep.subr.mxu0 0.0
    %1613 = vmatpush2.xpose.msra.mxu0 0.0
    %1614 = vmatprep.subr.mxu0 0.0
    %1615 = vmatpush2.xpose.msra.mxu0 0.0
    %1616 = vmatprep.subr.mxu0 0.0
    %1617 = vmatpush2.xpose.msra.mxu0 0.0
    %1618 = vmatprep.subr.mxu0 0.0
    %1619 = vmatpush2.xpose.msra.mxu0 0.0
    %1620 = vmatprep.subr.mxu0 0.0
    %1621 = vmatpush2.xpose.msra.mxu0 0.0
    %1622 = vmatprep.subr.mxu0 0.0
    %1623 = vmatpush2.xpose.msra.mxu0 0.0
    %1624 = vmatprep.subr.mxu0 0.0
    %1625 = vmatpush2.xpose.msra.mxu0 0.0
    %1626 = vmatprep.subr.mxu0 0.0
    %1627 = vmatpush2.xpose.msra.mxu0 0.0
    %1628 = vmatprep.subr.mxu0 0.0
    %1629 = vmatpush2.xpose.msra.mxu0 0.0
    %1630 = vmatprep.mubr.f32.mxu0 0.0
    %v1631 = vand.u32 %v1153, 4294901760
    %1632 = vmatmul.mubr.f32.gmra.mxu0 %v1631
    %v1633 = vpop.f32.mrf.mxu0
    %v1634 = vadd.f32 %v1539, %v1633
    %v1635 = vpop.f32.mrf.mxu0
    %1636 = vdwg.mxu0
    %1637 = vmatprep.subr.mxu0 0.0
    %1638 = vmatpush1.xpose.msra.mxu0 0.0
    %1639 = vmatprep.subr.mxu0 0.0
    %1640 = vmatpush1.xpose.msra.mxu0 0.0
    %1641 = vmatprep.subr.mxu0 0.0
    %1642 = vmatpush1.xpose.msra.mxu0 0.0
    %1643 = vmatprep.subr.mxu0 0.0
    %1644 = vmatpush1.xpose.msra.mxu0 0.0
    %1645 = vmatprep.subr.mxu0 0.0
    %1646 = vmatpush1.xpose.msra.mxu0 0.0
    %1647 = vmatprep.subr.mxu0 0.0
    %1648 = vmatpush1.xpose.msra.mxu0 0.0
    %1649 = vmatprep.subr.mxu0 0.0
    %1650 = vmatpush1.xpose.msra.mxu0 0.0
    %1651 = vmatprep.subr.mxu0 0.0
    %1652 = vmatpush1.xpose.msra.mxu0 0.0
    %1653 = vmatprep.subr.mxu0 0.0
    %v1654 = vand.u32 %v1177, 4294901760
    %1655 = vmatpush1.xpose.msra.mxu0 %v1654
    %1656 = vmatprep.subr.mxu0 0.0
    %v1657 = vand.u32 %v1174, 4294901760
    %1658 = vmatpush1.xpose.msra.mxu0 %v1657
    %1659 = vmatprep.subr.mxu0 0.0
    %v1660 = vand.u32 %v1171, 4294901760
    %1661 = vmatpush1.xpose.msra.mxu0 %v1660
    %1662 = vmatprep.subr.mxu0 0.0
    %v1663 = vand.u32 %v1168, 4294901760
    %1664 = vmatpush1.xpose.msra.mxu0 %v1663
    %1665 = vmatprep.subr.mxu0 0.0
    %v1666 = vand.u32 %v1165, 4294901760
    %1667 = vmatpush1.xpose.msra.mxu0 %v1666
    %1668 = vmatprep.subr.mxu0 0.0
    %v1669 = vand.u32 %v1162, 4294901760
    %1670 = vmatpush1.xpose.msra.mxu0 %v1669
    %1671 = vmatprep.subr.mxu0 0.0
    %v1672 = vand.u32 %v1159, 4294901760
    %1673 = vmatpush1.xpose.msra.mxu0 %v1672
    %1674 = vmatprep.subr.mxu0 0.0
    %v1675 = vand.u32 %v1156, 4294901760
    %1676 = vmatpush1.xpose.msra.mxu0 %v1675
    %1677 = vmatprep.subr.mxu0 0.0
    %1678 = vmatpush2.xpose.msra.mxu0 0.0
    %1679 = vmatprep.subr.mxu0 0.0
    %1680 = vmatpush2.xpose.msra.mxu0 0.0
    %1681 = vmatprep.subr.mxu0 0.0
    %1682 = vmatpush2.xpose.msra.mxu0 0.0
    %1683 = vmatprep.subr.mxu0 0.0
    %1684 = vmatpush2.xpose.msra.mxu0 0.0
    %1685 = vmatprep.subr.mxu0 0.0
    %1686 = vmatpush2.xpose.msra.mxu0 0.0
    %1687 = vmatprep.subr.mxu0 0.0
    %1688 = vmatpush2.xpose.msra.mxu0 0.0
    %1689 = vmatprep.subr.mxu0 0.0
    %1690 = vmatpush2.xpose.msra.mxu0 0.0
    %1691 = vmatprep.subr.mxu0 0.0
    %1692 = vmatpush2.xpose.msra.mxu0 0.0
    %1693 = vmatprep.subr.mxu0 0.0
    %1694 = vmatpush2.xpose.msra.mxu0 0.0
    %1695 = vmatprep.subr.mxu0 0.0
    %1696 = vmatpush2.xpose.msra.mxu0 0.0
    %1697 = vmatprep.subr.mxu0 0.0
    %1698 = vmatpush2.xpose.msra.mxu0 0.0
    %1699 = vmatprep.subr.mxu0 0.0
    %1700 = vmatpush2.xpose.msra.mxu0 0.0
    %1701 = vmatprep.subr.mxu0 0.0
    %1702 = vmatpush2.xpose.msra.mxu0 0.0
    %1703 = vmatprep.subr.mxu0 0.0
    %1704 = vmatpush2.xpose.msra.mxu0 0.0
    %1705 = vmatprep.subr.mxu0 0.0
    %1706 = vmatpush2.xpose.msra.mxu0 0.0
    %1707 = vmatprep.subr.mxu0 0.0
    %1708 = vmatpush2.xpose.msra.mxu0 0.0
    %1709 = vmatprep.mubr.f32.mxu0 0.0
    %v1710 = vand.u32 %v1153, 4294901760
    %1711 = vmatmul.mubr.f32.gmra.mxu0 %v1710
    %v1712 = vpop.f32.mrf.mxu0
    %v1713 = vadd.f32 %v1634, %v1712
    %v1714 = vpop.f32.mrf.mxu0
    %1715 = vdwg.mxu0
    %1724 = vrot.lane.b32.xlu0 %v1143, 64
    %v1725 = vpop.permute.xlu0 %1724
    %1726 = vrot.lane.b32.xlu0 %v1144, 64
    %v1727 = vpop.permute.xlu0 %1726
    %1728 = vrot.lane.b32.xlu0 %v1145, 64
    %v1729 = vpop.permute.xlu0 %1728
    %1730 = vrot.lane.b32.xlu0 %v1146, 64
    %v1731 = vpop.permute.xlu0 %1730
    %1732 = vrot.lane.b32.xlu0 %v1147, 64
    %v1733 = vpop.permute.xlu0 %1732
    %1734 = vrot.lane.b32.xlu0 %v1148, 64
    %v1735 = vpop.permute.xlu0 %1734
    %1736 = vrot.lane.b32.xlu0 %v1149, 64
    %v1737 = vpop.permute.xlu0 %1736
    %1738 = vrot.lane.b32.xlu0 %v1150, 64
    %v1739 = vpop.permute.xlu0 %1738
    %v1740 = vsel %vm1151, %v1725, 0
    %v1742 = vsel %vm1151, %v1727, 0
    %v1744 = vsel %vm1151, %v1729, 0
    %v1746 = vsel %vm1151, %v1731, 0
    %v1748 = vsel %vm1151, %v1733, 0
    %v1750 = vsel %vm1151, %v1735, 0
    %v1752 = vsel %vm1151, %v1737, 0
    %v1754 = vsel %vm1151, %v1739, 0
    %1756 = vmatprep.subr.mxu0 0.0
    %1757 = vmatpush1.msra.mxu0 0.0
    %1758 = vmatprep.subr.mxu0 0.0
    %1759 = vmatpush1.msra.mxu0 0.0
    %1760 = vmatprep.subr.mxu0 0.0
    %1761 = vmatpush1.msra.mxu0 0.0
    %1762 = vmatprep.subr.mxu0 0.0
    %1763 = vmatpush1.msra.mxu0 0.0
    %1764 = vmatprep.subr.mxu0 0.0
    %1765 = vmatpush1.msra.mxu0 0.0
    %1766 = vmatprep.subr.mxu0 0.0
    %1767 = vmatpush1.msra.mxu0 0.0
    %1768 = vmatprep.subr.mxu0 0.0
    %1769 = vmatpush1.msra.mxu0 0.0
    %1770 = vmatprep.subr.mxu0 0.0
    %1771 = vmatpush1.msra.mxu0 0.0
    %1772 = vmatprep.subr.mxu0 0.0
    %v1773 = vand.u32 %v80, 4294901760
    %1774 = vmatpush1.msra.mxu0 %v1773
    %1775 = vmatprep.subr.mxu0 0.0
    %v1776 = vand.u32 %v79, 4294901760
    %1777 = vmatpush1.msra.mxu0 %v1776
    %1778 = vmatprep.subr.mxu0 0.0
    %v1779 = vand.u32 %v78, 4294901760
    %1780 = vmatpush1.msra.mxu0 %v1779
    %1781 = vmatprep.subr.mxu0 0.0
    %v1782 = vand.u32 %v77, 4294901760
    %1783 = vmatpush1.msra.mxu0 %v1782
    %1784 = vmatprep.subr.mxu0 0.0
    %v1785 = vand.u32 %v76, 4294901760
    %1786 = vmatpush1.msra.mxu0 %v1785
    %1787 = vmatprep.subr.mxu0 0.0
    %v1788 = vand.u32 %v75, 4294901760
    %1789 = vmatpush1.msra.mxu0 %v1788
    %1790 = vmatprep.subr.mxu0 0.0
    %v1791 = vand.u32 %v74, 4294901760
    %1792 = vmatpush1.msra.mxu0 %v1791
    %1793 = vmatprep.subr.mxu0 0.0
    %v1794 = vand.u32 %v73, 4294901760
    %1795 = vmatpush1.msra.mxu0 %v1794
    %1796 = vmatprep.subr.mxu0 0.0
    %1797 = vmatpush2.msra.mxu0 0.0
    %1798 = vmatprep.subr.mxu0 0.0
    %1799 = vmatpush2.msra.mxu0 0.0
    %1800 = vmatprep.subr.mxu0 0.0
    %1801 = vmatpush2.msra.mxu0 0.0
    %1802 = vmatprep.subr.mxu0 0.0
    %1803 = vmatpush2.msra.mxu0 0.0
    %1804 = vmatprep.subr.mxu0 0.0
    %1805 = vmatpush2.msra.mxu0 0.0
    %1806 = vmatprep.subr.mxu0 0.0
    %1807 = vmatpush2.msra.mxu0 0.0
    %1808 = vmatprep.subr.mxu0 0.0
    %1809 = vmatpush2.msra.mxu0 0.0
    %1810 = vmatprep.subr.mxu0 0.0
    %1811 = vmatpush2.msra.mxu0 0.0
    %1812 = vmatprep.subr.mxu0 0.0
    %1813 = vmatpush2.msra.mxu0 0.0
    %1814 = vmatprep.subr.mxu0 0.0
    %1815 = vmatpush2.msra.mxu0 0.0
    %1816 = vmatprep.subr.mxu0 0.0
    %1817 = vmatpush2.msra.mxu0 0.0
    %1818 = vmatprep.subr.mxu0 0.0
    %1819 = vmatpush2.msra.mxu0 0.0
    %1820 = vmatprep.subr.mxu0 0.0
    %1821 = vmatpush2.msra.mxu0 0.0
    %1822 = vmatprep.subr.mxu0 0.0
    %1823 = vmatpush2.msra.mxu0 0.0
    %1824 = vmatprep.subr.mxu0 0.0
    %1825 = vmatpush2.msra.mxu0 0.0
    %1826 = vmatprep.subr.mxu0 0.0
    %1827 = vmatpush2.msra.mxu0 0.0
    %1828 = vmatprep.mubr.f32.mxu0 0.0
    %v1829 = vand.u32 %v1740, 4294901760
    %v1830 = vsub.f32 %v1740, %v1829
    %v1831 = vand.u32 %v1830, 4294901760
    %v1832 = vsub.f32 %v1830, %v1831
    %v1833 = vand.u32 %v1832, 4294901760
    %1834 = vmatmul.mubr.f32.gmra.mxu0 %v1833
    %v1835 = vpop.f32.mrf.mxu0
    %v1836 = vadd.f32 0.0, %v1835
    %v1837 = vpop.f32.mrf.mxu0
    %1838 = vmatprep.mubr.f32.mxu0 0.0
    %v1839 = vand.u32 %v1742, 4294901760
    %v1840 = vsub.f32 %v1742, %v1839
    %v1841 = vand.u32 %v1840, 4294901760
    %v1842 = vsub.f32 %v1840, %v1841
    %v1843 = vand.u32 %v1842, 4294901760
    %1844 = vmatmul.mubr.f32.gmra.mxu0 %v1843
    %v1845 = vpop.f32.mrf.mxu0
    %v1846 = vadd.f32 0.0, %v1845
    %v1847 = vpop.f32.mrf.mxu0
    %1848 = vmatprep.mubr.f32.mxu0 0.0
    %v1849 = vand.u32 %v1744, 4294901760
    %v1850 = vsub.f32 %v1744, %v1849
    %v1851 = vand.u32 %v1850, 4294901760
    %v1852 = vsub.f32 %v1850, %v1851
    %v1853 = vand.u32 %v1852, 4294901760
    %1854 = vmatmul.mubr.f32.gmra.mxu0 %v1853
    %v1855 = vpop.f32.mrf.mxu0
    %v1856 = vadd.f32 0.0, %v1855
    %v1857 = vpop.f32.mrf.mxu0
    %1858 = vmatprep.mubr.f32.mxu0 0.0
    %v1859 = vand.u32 %v1746, 4294901760
    %v1860 = vsub.f32 %v1746, %v1859
    %v1861 = vand.u32 %v1860, 4294901760
    %v1862 = vsub.f32 %v1860, %v1861
    %v1863 = vand.u32 %v1862, 4294901760
    %1864 = vmatmul.mubr.f32.gmra.mxu0 %v1863
    %v1865 = vpop.f32.mrf.mxu0
    %v1866 = vadd.f32 0.0, %v1865
    %v1867 = vpop.f32.mrf.mxu0
    %1868 = vmatprep.mubr.f32.mxu0 0.0
    %v1869 = vand.u32 %v1748, 4294901760
    %v1870 = vsub.f32 %v1748, %v1869
    %v1871 = vand.u32 %v1870, 4294901760
    %v1872 = vsub.f32 %v1870, %v1871
    %v1873 = vand.u32 %v1872, 4294901760
    %1874 = vmatmul.mubr.f32.gmra.mxu0 %v1873
    %v1875 = vpop.f32.mrf.mxu0
    %v1876 = vadd.f32 0.0, %v1875
    %v1877 = vpop.f32.mrf.mxu0
    %1878 = vmatprep.mubr.f32.mxu0 0.0
    %v1879 = vand.u32 %v1750, 4294901760
    %v1880 = vsub.f32 %v1750, %v1879
    %v1881 = vand.u32 %v1880, 4294901760
    %v1882 = vsub.f32 %v1880, %v1881
    %v1883 = vand.u32 %v1882, 4294901760
    %1884 = vmatmul.mubr.f32.gmra.mxu0 %v1883
    %v1885 = vpop.f32.mrf.mxu0
    %v1886 = vadd.f32 0.0, %v1885
    %v1887 = vpop.f32.mrf.mxu0
    %1888 = vmatprep.mubr.f32.mxu0 0.0
    %v1889 = vand.u32 %v1752, 4294901760
    %v1890 = vsub.f32 %v1752, %v1889
    %v1891 = vand.u32 %v1890, 4294901760
    %v1892 = vsub.f32 %v1890, %v1891
    %v1893 = vand.u32 %v1892, 4294901760
    %1894 = vmatmul.mubr.f32.gmra.mxu0 %v1893
    %v1895 = vpop.f32.mrf.mxu0
    %v1896 = vadd.f32 0.0, %v1895
    %v1897 = vpop.f32.mrf.mxu0
    %1898 = vmatprep.mubr.f32.mxu0 0.0
    %v1899 = vand.u32 %v1754, 4294901760
    %v1900 = vsub.f32 %v1754, %v1899
    %v1901 = vand.u32 %v1900, 4294901760
    %v1902 = vsub.f32 %v1900, %v1901
    %v1903 = vand.u32 %v1902, 4294901760
    %1904 = vmatmul.mubr.f32.gmra.mxu0 %v1903
    %v1905 = vpop.f32.mrf.mxu0
    %v1906 = vadd.f32 0.0, %v1905
    %v1907 = vpop.f32.mrf.mxu0
    %1908 = vdwg.mxu0
    %1909 = vmatprep.subr.mxu0 0.0
    %1910 = vmatpush1.msra.mxu0 0.0
    %1911 = vmatprep.subr.mxu0 0.0
    %1912 = vmatpush1.msra.mxu0 0.0
    %1913 = vmatprep.subr.mxu0 0.0
    %1914 = vmatpush1.msra.mxu0 0.0
    %1915 = vmatprep.subr.mxu0 0.0
    %1916 = vmatpush1.msra.mxu0 0.0
    %1917 = vmatprep.subr.mxu0 0.0
    %1918 = vmatpush1.msra.mxu0 0.0
    %1919 = vmatprep.subr.mxu0 0.0
    %1920 = vmatpush1.msra.mxu0 0.0
    %1921 = vmatprep.subr.mxu0 0.0
    %1922 = vmatpush1.msra.mxu0 0.0
    %1923 = vmatprep.subr.mxu0 0.0
    %1924 = vmatpush1.msra.mxu0 0.0
    %1925 = vmatprep.subr.mxu0 0.0
    %v1926 = vand.u32 %v80, 4294901760
    %v1927 = vsub.f32 %v80, %v1926
    %v1928 = vand.u32 %v1927, 4294901760
    %v1929 = vsub.f32 %v1927, %v1928
    %v1930 = vand.u32 %v1929, 4294901760
    %1931 = vmatpush1.msra.mxu0 %v1930
    %1932 = vmatprep.subr.mxu0 0.0
    %v1933 = vand.u32 %v79, 4294901760
    %v1934 = vsub.f32 %v79, %v1933
    %v1935 = vand.u32 %v1934, 4294901760
    %v1936 = vsub.f32 %v1934, %v1935
    %v1937 = vand.u32 %v1936, 4294901760
    %1938 = vmatpush1.msra.mxu0 %v1937
    %1939 = vmatprep.subr.mxu0 0.0
    %v1940 = vand.u32 %v78, 4294901760
    %v1941 = vsub.f32 %v78, %v1940
    %v1942 = vand.u32 %v1941, 4294901760
    %v1943 = vsub.f32 %v1941, %v1942
    %v1944 = vand.u32 %v1943, 4294901760
    %1945 = vmatpush1.msra.mxu0 %v1944
    %1946 = vmatprep.subr.mxu0 0.0
    %v1947 = vand.u32 %v77, 4294901760
    %v1948 = vsub.f32 %v77, %v1947
    %v1949 = vand.u32 %v1948, 4294901760
    %v1950 = vsub.f32 %v1948, %v1949
    %v1951 = vand.u32 %v1950, 4294901760
    %1952 = vmatpush1.msra.mxu0 %v1951
    %1953 = vmatprep.subr.mxu0 0.0
    %v1954 = vand.u32 %v76, 4294901760
    %v1955 = vsub.f32 %v76, %v1954
    %v1956 = vand.u32 %v1955, 4294901760
    %v1957 = vsub.f32 %v1955, %v1956
    %v1958 = vand.u32 %v1957, 4294901760
    %1959 = vmatpush1.msra.mxu0 %v1958
    %1960 = vmatprep.subr.mxu0 0.0
    %v1961 = vand.u32 %v75, 4294901760
    %v1962 = vsub.f32 %v75, %v1961
    %v1963 = vand.u32 %v1962, 4294901760
    %v1964 = vsub.f32 %v1962, %v1963
    %v1965 = vand.u32 %v1964, 4294901760
    %1966 = vmatpush1.msra.mxu0 %v1965
    %1967 = vmatprep.subr.mxu0 0.0
    %v1968 = vand.u32 %v74, 4294901760
    %v1969 = vsub.f32 %v74, %v1968
    %v1970 = vand.u32 %v1969, 4294901760
    %v1971 = vsub.f32 %v1969, %v1970
    %v1972 = vand.u32 %v1971, 4294901760
    %1973 = vmatpush1.msra.mxu0 %v1972
    %1974 = vmatprep.subr.mxu0 0.0
    %v1975 = vand.u32 %v73, 4294901760
    %v1976 = vsub.f32 %v73, %v1975
    %v1977 = vand.u32 %v1976, 4294901760
    %v1978 = vsub.f32 %v1976, %v1977
    %v1979 = vand.u32 %v1978, 4294901760
    %1980 = vmatpush1.msra.mxu0 %v1979
    %1981 = vmatprep.subr.mxu0 0.0
    %1982 = vmatpush2.msra.mxu0 0.0
    %1983 = vmatprep.subr.mxu0 0.0
    %1984 = vmatpush2.msra.mxu0 0.0
    %1985 = vmatprep.subr.mxu0 0.0
    %1986 = vmatpush2.msra.mxu0 0.0
    %1987 = vmatprep.subr.mxu0 0.0
    %1988 = vmatpush2.msra.mxu0 0.0
    %1989 = vmatprep.subr.mxu0 0.0
    %1990 = vmatpush2.msra.mxu0 0.0
    %1991 = vmatprep.subr.mxu0 0.0
    %1992 = vmatpush2.msra.mxu0 0.0
    %1993 = vmatprep.subr.mxu0 0.0
    %1994 = vmatpush2.msra.mxu0 0.0
    %1995 = vmatprep.subr.mxu0 0.0
    %1996 = vmatpush2.msra.mxu0 0.0
    %1997 = vmatprep.subr.mxu0 0.0
    %1998 = vmatpush2.msra.mxu0 0.0
    %1999 = vmatprep.subr.mxu0 0.0
    %2000 = vmatpush2.msra.mxu0 0.0
    %2001 = vmatprep.subr.mxu0 0.0
    %2002 = vmatpush2.msra.mxu0 0.0
    %2003 = vmatprep.subr.mxu0 0.0
    %2004 = vmatpush2.msra.mxu0 0.0
    %2005 = vmatprep.subr.mxu0 0.0
    %2006 = vmatpush2.msra.mxu0 0.0
    %2007 = vmatprep.subr.mxu0 0.0
    %2008 = vmatpush2.msra.mxu0 0.0
    %2009 = vmatprep.subr.mxu0 0.0
    %2010 = vmatpush2.msra.mxu0 0.0
    %2011 = vmatprep.subr.mxu0 0.0
    %2012 = vmatpush2.msra.mxu0 0.0
    %2013 = vmatprep.mubr.f32.mxu0 0.0
    %v2014 = vand.u32 %v1740, 4294901760
    %2015 = vmatmul.mubr.f32.gmra.mxu0 %v2014
    %v2016 = vpop.f32.mrf.mxu0
    %v2017 = vadd.f32 %v1836, %v2016
    %v2018 = vpop.f32.mrf.mxu0
    %2019 = vmatprep.mubr.f32.mxu0 0.0
    %v2020 = vand.u32 %v1742, 4294901760
    %2021 = vmatmul.mubr.f32.gmra.mxu0 %v2020
    %v2022 = vpop.f32.mrf.mxu0
    %v2023 = vadd.f32 %v1846, %v2022
    %v2024 = vpop.f32.mrf.mxu0
    %2025 = vmatprep.mubr.f32.mxu0 0.0
    %v2026 = vand.u32 %v1744, 4294901760
    %2027 = vmatmul.mubr.f32.gmra.mxu0 %v2026
    %v2028 = vpop.f32.mrf.mxu0
    %v2029 = vadd.f32 %v1856, %v2028
    %v2030 = vpop.f32.mrf.mxu0
    %2031 = vmatprep.mubr.f32.mxu0 0.0
    %v2032 = vand.u32 %v1746, 4294901760
    %2033 = vmatmul.mubr.f32.gmra.mxu0 %v2032
    %v2034 = vpop.f32.mrf.mxu0
    %v2035 = vadd.f32 %v1866, %v2034
    %v2036 = vpop.f32.mrf.mxu0
    %2037 = vmatprep.mubr.f32.mxu0 0.0
    %v2038 = vand.u32 %v1748, 4294901760
    %2039 = vmatmul.mubr.f32.gmra.mxu0 %v2038
    %v2040 = vpop.f32.mrf.mxu0
    %v2041 = vadd.f32 %v1876, %v2040
    %v2042 = vpop.f32.mrf.mxu0
    %2043 = vmatprep.mubr.f32.mxu0 0.0
    %v2044 = vand.u32 %v1750, 4294901760
    %2045 = vmatmul.mubr.f32.gmra.mxu0 %v2044
    %v2046 = vpop.f32.mrf.mxu0
    %v2047 = vadd.f32 %v1886, %v2046
    %v2048 = vpop.f32.mrf.mxu0
    %2049 = vmatprep.mubr.f32.mxu0 0.0
    %v2050 = vand.u32 %v1752, 4294901760
    %2051 = vmatmul.mubr.f32.gmra.mxu0 %v2050
    %v2052 = vpop.f32.mrf.mxu0
    %v2053 = vadd.f32 %v1896, %v2052
    %v2054 = vpop.f32.mrf.mxu0
    %2055 = vmatprep.mubr.f32.mxu0 0.0
    %v2056 = vand.u32 %v1754, 4294901760
    %2057 = vmatmul.mubr.f32.gmra.mxu0 %v2056
    %v2058 = vpop.f32.mrf.mxu0
    %v2059 = vadd.f32 %v1906, %v2058
    %v2060 = vpop.f32.mrf.mxu0
    %2061 = vdwg.mxu0
    %2062 = vmatprep.subr.mxu0 0.0
    %2063 = vmatpush1.msra.mxu0 0.0
    %2064 = vmatprep.subr.mxu0 0.0
    %2065 = vmatpush1.msra.mxu0 0.0
    %2066 = vmatprep.subr.mxu0 0.0
    %2067 = vmatpush1.msra.mxu0 0.0
    %2068 = vmatprep.subr.mxu0 0.0
    %2069 = vmatpush1.msra.mxu0 0.0
    %2070 = vmatprep.subr.mxu0 0.0
    %2071 = vmatpush1.msra.mxu0 0.0
    %2072 = vmatprep.subr.mxu0 0.0
    %2073 = vmatpush1.msra.mxu0 0.0
    %2074 = vmatprep.subr.mxu0 0.0
    %2075 = vmatpush1.msra.mxu0 0.0
    %2076 = vmatprep.subr.mxu0 0.0
    %2077 = vmatpush1.msra.mxu0 0.0
    %2078 = vmatprep.subr.mxu0 0.0
    %v2079 = vand.u32 %v80, 4294901760
    %v2080 = vsub.f32 %v80, %v2079
    %2081 = vmatpush1.msra.mxu0 %v2080
    %2082 = vmatprep.subr.mxu0 0.0
    %v2083 = vand.u32 %v79, 4294901760
    %v2084 = vsub.f32 %v79, %v2083
    %2085 = vmatpush1.msra.mxu0 %v2084
    %2086 = vmatprep.subr.mxu0 0.0
    %v2087 = vand.u32 %v78, 4294901760
    %v2088 = vsub.f32 %v78, %v2087
    %2089 = vmatpush1.msra.mxu0 %v2088
    %2090 = vmatprep.subr.mxu0 0.0
    %v2091 = vand.u32 %v77, 4294901760
    %v2092 = vsub.f32 %v77, %v2091
    %2093 = vmatpush1.msra.mxu0 %v2092
    %2094 = vmatprep.subr.mxu0 0.0
    %v2095 = vand.u32 %v76, 4294901760
    %v2096 = vsub.f32 %v76, %v2095
    %2097 = vmatpush1.msra.mxu0 %v2096
    %2098 = vmatprep.subr.mxu0 0.0
    %v2099 = vand.u32 %v75, 4294901760
    %v2100 = vsub.f32 %v75, %v2099
    %2101 = vmatpush1.msra.mxu0 %v2100
    %2102 = vmatprep.subr.mxu0 0.0
    %v2103 = vand.u32 %v74, 4294901760
    %v2104 = vsub.f32 %v74, %v2103
    %2105 = vmatpush1.msra.mxu0 %v2104
    %2106 = vmatprep.subr.mxu0 0.0
    %v2107 = vand.u32 %v73, 4294901760
    %v2108 = vsub.f32 %v73, %v2107
    %2109 = vmatpush1.msra.mxu0 %v2108
    %2110 = vmatprep.subr.mxu0 0.0
    %2111 = vmatpush2.msra.mxu0 0.0
    %2112 = vmatprep.subr.mxu0 0.0
    %2113 = vmatpush2.msra.mxu0 0.0
    %2114 = vmatprep.subr.mxu0 0.0
    %2115 = vmatpush2.msra.mxu0 0.0
    %2116 = vmatprep.subr.mxu0 0.0
    %2117 = vmatpush2.msra.mxu0 0.0
    %2118 = vmatprep.subr.mxu0 0.0
    %2119 = vmatpush2.msra.mxu0 0.0
    %2120 = vmatprep.subr.mxu0 0.0
    %2121 = vmatpush2.msra.mxu0 0.0
    %2122 = vmatprep.subr.mxu0 0.0
    %2123 = vmatpush2.msra.mxu0 0.0
    %2124 = vmatprep.subr.mxu0 0.0
    %2125 = vmatpush2.msra.mxu0 0.0
    %2126 = vmatprep.subr.mxu0 0.0
    %2127 = vmatpush2.msra.mxu0 0.0
    %2128 = vmatprep.subr.mxu0 0.0
    %2129 = vmatpush2.msra.mxu0 0.0
    %2130 = vmatprep.subr.mxu0 0.0
    %2131 = vmatpush2.msra.mxu0 0.0
    %2132 = vmatprep.subr.mxu0 0.0
    %2133 = vmatpush2.msra.mxu0 0.0
    %2134 = vmatprep.subr.mxu0 0.0
    %2135 = vmatpush2.msra.mxu0 0.0
    %2136 = vmatprep.subr.mxu0 0.0
    %2137 = vmatpush2.msra.mxu0 0.0
    %2138 = vmatprep.subr.mxu0 0.0
    %2139 = vmatpush2.msra.mxu0 0.0
    %2140 = vmatprep.subr.mxu0 0.0
    %2141 = vmatpush2.msra.mxu0 0.0
    %2142 = vmatprep.mubr.f32.mxu0 0.0
    %v2143 = vand.u32 %v1740, 4294901760
    %v2144 = vsub.f32 %v1740, %v2143
    %2145 = vmatmul.mubr.f32.gmra.mxu0 %v2144
    %v2146 = vpop.f32.mrf.mxu0
    %v2147 = vadd.f32 %v2017, %v2146
    %v2148 = vpop.f32.mrf.mxu0
    %2149 = vmatprep.mubr.f32.mxu0 0.0
    %v2150 = vand.u32 %v1742, 4294901760
    %v2151 = vsub.f32 %v1742, %v2150
    %2152 = vmatmul.mubr.f32.gmra.mxu0 %v2151
    %v2153 = vpop.f32.mrf.mxu0
    %v2154 = vadd.f32 %v2023, %v2153
    %v2155 = vpop.f32.mrf.mxu0
    %2156 = vmatprep.mubr.f32.mxu0 0.0
    %v2157 = vand.u32 %v1744, 4294901760
    %v2158 = vsub.f32 %v1744, %v2157
    %2159 = vmatmul.mubr.f32.gmra.mxu0 %v2158
    %v2160 = vpop.f32.mrf.mxu0
    %v2161 = vadd.f32 %v2029, %v2160
    %v2162 = vpop.f32.mrf.mxu0
    %2163 = vmatprep.mubr.f32.mxu0 0.0
    %v2164 = vand.u32 %v1746, 4294901760
    %v2165 = vsub.f32 %v1746, %v2164
    %2166 = vmatmul.mubr.f32.gmra.mxu0 %v2165
    %v2167 = vpop.f32.mrf.mxu0
    %v2168 = vadd.f32 %v2035, %v2167
    %v2169 = vpop.f32.mrf.mxu0
    %2170 = vmatprep.mubr.f32.mxu0 0.0
    %v2171 = vand.u32 %v1748, 4294901760
    %v2172 = vsub.f32 %v1748, %v2171
    %2173 = vmatmul.mubr.f32.gmra.mxu0 %v2172
    %v2174 = vpop.f32.mrf.mxu0
    %v2175 = vadd.f32 %v2041, %v2174
    %v2176 = vpop.f32.mrf.mxu0
    %2177 = vmatprep.mubr.f32.mxu0 0.0
    %v2178 = vand.u32 %v1750, 4294901760
    %v2179 = vsub.f32 %v1750, %v2178
    %2180 = vmatmul.mubr.f32.gmra.mxu0 %v2179
    %v2181 = vpop.f32.mrf.mxu0
    %v2182 = vadd.f32 %v2047, %v2181
    %v2183 = vpop.f32.mrf.mxu0
    %2184 = vmatprep.mubr.f32.mxu0 0.0
    %v2185 = vand.u32 %v1752, 4294901760
    %v2186 = vsub.f32 %v1752, %v2185
    %2187 = vmatmul.mubr.f32.gmra.mxu0 %v2186
    %v2188 = vpop.f32.mrf.mxu0
    %v2189 = vadd.f32 %v2053, %v2188
    %v2190 = vpop.f32.mrf.mxu0
    %2191 = vmatprep.mubr.f32.mxu0 0.0
    %v2192 = vand.u32 %v1754, 4294901760
    %v2193 = vsub.f32 %v1754, %v2192
    %2194 = vmatmul.mubr.f32.gmra.mxu0 %v2193
    %v2195 = vpop.f32.mrf.mxu0
    %v2196 = vadd.f32 %v2059, %v2195
    %v2197 = vpop.f32.mrf.mxu0
    %2198 = vdwg.mxu0
    %2199 = vmatprep.subr.mxu0 0.0
    %2200 = vmatpush1.msra.mxu0 0.0
    %2201 = vmatprep.subr.mxu0 0.0
    %2202 = vmatpush1.msra.mxu0 0.0
    %2203 = vmatprep.subr.mxu0 0.0
    %2204 = vmatpush1.msra.mxu0 0.0
    %2205 = vmatprep.subr.mxu0 0.0
    %2206 = vmatpush1.msra.mxu0 0.0
    %2207 = vmatprep.subr.mxu0 0.0
    %2208 = vmatpush1.msra.mxu0 0.0
    %2209 = vmatprep.subr.mxu0 0.0
    %2210 = vmatpush1.msra.mxu0 0.0
    %2211 = vmatprep.subr.mxu0 0.0
    %2212 = vmatpush1.msra.mxu0 0.0
    %2213 = vmatprep.subr.mxu0 0.0
    %2214 = vmatpush1.msra.mxu0 0.0
    %2215 = vmatprep.subr.mxu0 0.0
    %v2216 = vand.u32 %v80, 4294901760
    %2217 = vmatpush1.msra.mxu0 %v2216
    %2218 = vmatprep.subr.mxu0 0.0
    %v2219 = vand.u32 %v79, 4294901760
    %2220 = vmatpush1.msra.mxu0 %v2219
    %2221 = vmatprep.subr.mxu0 0.0
    %v2222 = vand.u32 %v78, 4294901760
    %2223 = vmatpush1.msra.mxu0 %v2222
    %2224 = vmatprep.subr.mxu0 0.0
    %v2225 = vand.u32 %v77, 4294901760
    %2226 = vmatpush1.msra.mxu0 %v2225
    %2227 = vmatprep.subr.mxu0 0.0
    %v2228 = vand.u32 %v76, 4294901760
    %2229 = vmatpush1.msra.mxu0 %v2228
    %2230 = vmatprep.subr.mxu0 0.0
    %v2231 = vand.u32 %v75, 4294901760
    %2232 = vmatpush1.msra.mxu0 %v2231
    %2233 = vmatprep.subr.mxu0 0.0
    %v2234 = vand.u32 %v74, 4294901760
    %2235 = vmatpush1.msra.mxu0 %v2234
    %2236 = vmatprep.subr.mxu0 0.0
    %v2237 = vand.u32 %v73, 4294901760
    %2238 = vmatpush1.msra.mxu0 %v2237
    %2239 = vmatprep.subr.mxu0 0.0
    %2240 = vmatpush2.msra.mxu0 0.0
    %2241 = vmatprep.subr.mxu0 0.0
    %2242 = vmatpush2.msra.mxu0 0.0
    %2243 = vmatprep.subr.mxu0 0.0
    %2244 = vmatpush2.msra.mxu0 0.0
    %2245 = vmatprep.subr.mxu0 0.0
    %2246 = vmatpush2.msra.mxu0 0.0
    %2247 = vmatprep.subr.mxu0 0.0
    %2248 = vmatpush2.msra.mxu0 0.0
    %2249 = vmatprep.subr.mxu0 0.0
    %2250 = vmatpush2.msra.mxu0 0.0
    %2251 = vmatprep.subr.mxu0 0.0
    %2252 = vmatpush2.msra.mxu0 0.0
    %2253 = vmatprep.subr.mxu0 0.0
    %2254 = vmatpush2.msra.mxu0 0.0
    %2255 = vmatprep.subr.mxu0 0.0
    %2256 = vmatpush2.msra.mxu0 0.0
    %2257 = vmatprep.subr.mxu0 0.0
    %2258 = vmatpush2.msra.mxu0 0.0
    %2259 = vmatprep.subr.mxu0 0.0
    %2260 = vmatpush2.msra.mxu0 0.0
    %2261 = vmatprep.subr.mxu0 0.0
    %2262 = vmatpush2.msra.mxu0 0.0
    %2263 = vmatprep.subr.mxu0 0.0
    %2264 = vmatpush2.msra.mxu0 0.0
    %2265 = vmatprep.subr.mxu0 0.0
    %2266 = vmatpush2.msra.mxu0 0.0
    %2267 = vmatprep.subr.mxu0 0.0
    %2268 = vmatpush2.msra.mxu0 0.0
    %2269 = vmatprep.subr.mxu0 0.0
    %2270 = vmatpush2.msra.mxu0 0.0
    %2271 = vmatprep.mubr.f32.mxu0 0.0
    %v2272 = vand.u32 %v1740, 4294901760
    %v2273 = vsub.f32 %v1740, %v2272
    %v2274 = vand.u32 %v2273, 4294901760
    %2275 = vmatmul.mubr.f32.gmra.mxu0 %v2274
    %v2276 = vpop.f32.mrf.mxu0
    %v2277 = vadd.f32 %v2147, %v2276
    %v2278 = vpop.f32.mrf.mxu0
    %2279 = vmatprep.mubr.f32.mxu0 0.0
    %v2280 = vand.u32 %v1742, 4294901760
    %v2281 = vsub.f32 %v1742, %v2280
    %v2282 = vand.u32 %v2281, 4294901760
    %2283 = vmatmul.mubr.f32.gmra.mxu0 %v2282
    %v2284 = vpop.f32.mrf.mxu0
    %v2285 = vadd.f32 %v2154, %v2284
    %v2286 = vpop.f32.mrf.mxu0
    %2287 = vmatprep.mubr.f32.mxu0 0.0
    %v2288 = vand.u32 %v1744, 4294901760
    %v2289 = vsub.f32 %v1744, %v2288
    %v2290 = vand.u32 %v2289, 4294901760
    %2291 = vmatmul.mubr.f32.gmra.mxu0 %v2290
    %v2292 = vpop.f32.mrf.mxu0
    %v2293 = vadd.f32 %v2161, %v2292
    %v2294 = vpop.f32.mrf.mxu0
    %2295 = vmatprep.mubr.f32.mxu0 0.0
    %v2296 = vand.u32 %v1746, 4294901760
    %v2297 = vsub.f32 %v1746, %v2296
    %v2298 = vand.u32 %v2297, 4294901760
    %2299 = vmatmul.mubr.f32.gmra.mxu0 %v2298
    %v2300 = vpop.f32.mrf.mxu0
    %v2301 = vadd.f32 %v2168, %v2300
    %v2302 = vpop.f32.mrf.mxu0
    %2303 = vmatprep.mubr.f32.mxu0 0.0
    %v2304 = vand.u32 %v1748, 4294901760
    %v2305 = vsub.f32 %v1748, %v2304
    %v2306 = vand.u32 %v2305, 4294901760
    %2307 = vmatmul.mubr.f32.gmra.mxu0 %v2306
    %v2308 = vpop.f32.mrf.mxu0
    %v2309 = vadd.f32 %v2175, %v2308
    %v2310 = vpop.f32.mrf.mxu0
    %2311 = vmatprep.mubr.f32.mxu0 0.0
    %v2312 = vand.u32 %v1750, 4294901760
    %v2313 = vsub.f32 %v1750, %v2312
    %v2314 = vand.u32 %v2313, 4294901760
    %2315 = vmatmul.mubr.f32.gmra.mxu0 %v2314
    %v2316 = vpop.f32.mrf.mxu0
    %v2317 = vadd.f32 %v2182, %v2316
    %v2318 = vpop.f32.mrf.mxu0
    %2319 = vmatprep.mubr.f32.mxu0 0.0
    %v2320 = vand.u32 %v1752, 4294901760
    %v2321 = vsub.f32 %v1752, %v2320
    %v2322 = vand.u32 %v2321, 4294901760
    %2323 = vmatmul.mubr.f32.gmra.mxu0 %v2322
    %v2324 = vpop.f32.mrf.mxu0
    %v2325 = vadd.f32 %v2189, %v2324
    %v2326 = vpop.f32.mrf.mxu0
    %2327 = vmatprep.mubr.f32.mxu0 0.0
    %v2328 = vand.u32 %v1754, 4294901760
    %v2329 = vsub.f32 %v1754, %v2328
    %v2330 = vand.u32 %v2329, 4294901760
    %2331 = vmatmul.mubr.f32.gmra.mxu0 %v2330
    %v2332 = vpop.f32.mrf.mxu0
    %v2333 = vadd.f32 %v2196, %v2332
    %v2334 = vpop.f32.mrf.mxu0
    %2335 = vdwg.mxu0
    %2336 = vmatprep.subr.mxu0 0.0
    %2337 = vmatpush1.msra.mxu0 0.0
    %2338 = vmatprep.subr.mxu0 0.0
    %2339 = vmatpush1.msra.mxu0 0.0
    %2340 = vmatprep.subr.mxu0 0.0
    %2341 = vmatpush1.msra.mxu0 0.0
    %2342 = vmatprep.subr.mxu0 0.0
    %2343 = vmatpush1.msra.mxu0 0.0
    %2344 = vmatprep.subr.mxu0 0.0
    %2345 = vmatpush1.msra.mxu0 0.0
    %2346 = vmatprep.subr.mxu0 0.0
    %2347 = vmatpush1.msra.mxu0 0.0
    %2348 = vmatprep.subr.mxu0 0.0
    %2349 = vmatpush1.msra.mxu0 0.0
    %2350 = vmatprep.subr.mxu0 0.0
    %2351 = vmatpush1.msra.mxu0 0.0
    %2352 = vmatprep.subr.mxu0 0.0
    %v2353 = vand.u32 %v80, 4294901760
    %v2354 = vsub.f32 %v80, %v2353
    %v2355 = vand.u32 %v2354, 4294901760
    %2356 = vmatpush1.msra.mxu0 %v2355
    %2357 = vmatprep.subr.mxu0 0.0
    %v2358 = vand.u32 %v79, 4294901760
    %v2359 = vsub.f32 %v79, %v2358
    %v2360 = vand.u32 %v2359, 4294901760
    %2361 = vmatpush1.msra.mxu0 %v2360
    %2362 = vmatprep.subr.mxu0 0.0
    %v2363 = vand.u32 %v78, 4294901760
    %v2364 = vsub.f32 %v78, %v2363
    %v2365 = vand.u32 %v2364, 4294901760
    %2366 = vmatpush1.msra.mxu0 %v2365
    %2367 = vmatprep.subr.mxu0 0.0
    %v2368 = vand.u32 %v77, 4294901760
    %v2369 = vsub.f32 %v77, %v2368
    %v2370 = vand.u32 %v2369, 4294901760
    %2371 = vmatpush1.msra.mxu0 %v2370
    %2372 = vmatprep.subr.mxu0 0.0
    %v2373 = vand.u32 %v76, 4294901760
    %v2374 = vsub.f32 %v76, %v2373
    %v2375 = vand.u32 %v2374, 4294901760
    %2376 = vmatpush1.msra.mxu0 %v2375
    %2377 = vmatprep.subr.mxu0 0.0
    %v2378 = vand.u32 %v75, 4294901760
    %v2379 = vsub.f32 %v75, %v2378
    %v2380 = vand.u32 %v2379, 4294901760
    %2381 = vmatpush1.msra.mxu0 %v2380
    %2382 = vmatprep.subr.mxu0 0.0
    %v2383 = vand.u32 %v74, 4294901760
    %v2384 = vsub.f32 %v74, %v2383
    %v2385 = vand.u32 %v2384, 4294901760
    %2386 = vmatpush1.msra.mxu0 %v2385
    %2387 = vmatprep.subr.mxu0 0.0
    %v2388 = vand.u32 %v73, 4294901760
    %v2389 = vsub.f32 %v73, %v2388
    %v2390 = vand.u32 %v2389, 4294901760
    %2391 = vmatpush1.msra.mxu0 %v2390
    %2392 = vmatprep.subr.mxu0 0.0
    %2393 = vmatpush2.msra.mxu0 0.0
    %2394 = vmatprep.subr.mxu0 0.0
    %2395 = vmatpush2.msra.mxu0 0.0
    %2396 = vmatprep.subr.mxu0 0.0
    %2397 = vmatpush2.msra.mxu0 0.0
    %2398 = vmatprep.subr.mxu0 0.0
    %2399 = vmatpush2.msra.mxu0 0.0
    %2400 = vmatprep.subr.mxu0 0.0
    %2401 = vmatpush2.msra.mxu0 0.0
    %2402 = vmatprep.subr.mxu0 0.0
    %2403 = vmatpush2.msra.mxu0 0.0
    %2404 = vmatprep.subr.mxu0 0.0
    %2405 = vmatpush2.msra.mxu0 0.0
    %2406 = vmatprep.subr.mxu0 0.0
    %2407 = vmatpush2.msra.mxu0 0.0
    %2408 = vmatprep.subr.mxu0 0.0
    %2409 = vmatpush2.msra.mxu0 0.0
    %2410 = vmatprep.subr.mxu0 0.0
    %2411 = vmatpush2.msra.mxu0 0.0
    %2412 = vmatprep.subr.mxu0 0.0
    %2413 = vmatpush2.msra.mxu0 0.0
    %2414 = vmatprep.subr.mxu0 0.0
    %2415 = vmatpush2.msra.mxu0 0.0
    %2416 = vmatprep.subr.mxu0 0.0
    %2417 = vmatpush2.msra.mxu0 0.0
    %2418 = vmatprep.subr.mxu0 0.0
    %2419 = vmatpush2.msra.mxu0 0.0
    %2420 = vmatprep.subr.mxu0 0.0
    %2421 = vmatpush2.msra.mxu0 0.0
    %2422 = vmatprep.subr.mxu0 0.0
    %2423 = vmatpush2.msra.mxu0 0.0
    %2424 = vmatprep.mubr.f32.mxu0 0.0
    %v2425 = vand.u32 %v1740, 4294901760
    %2426 = vmatmul.mubr.f32.gmra.mxu0 %v2425
    %v2427 = vpop.f32.mrf.mxu0
    %v2428 = vadd.f32 %v2277, %v2427
    %v2429 = vpop.f32.mrf.mxu0
    %2430 = vmatprep.mubr.f32.mxu0 0.0
    %v2431 = vand.u32 %v1742, 4294901760
    %2432 = vmatmul.mubr.f32.gmra.mxu0 %v2431
    %v2433 = vpop.f32.mrf.mxu0
    %v2434 = vadd.f32 %v2285, %v2433
    %v2435 = vpop.f32.mrf.mxu0
    %2436 = vmatprep.mubr.f32.mxu0 0.0
    %v2437 = vand.u32 %v1744, 4294901760
    %2438 = vmatmul.mubr.f32.gmra.mxu0 %v2437
    %v2439 = vpop.f32.mrf.mxu0
    %v2440 = vadd.f32 %v2293, %v2439
    %v2441 = vpop.f32.mrf.mxu0
    %2442 = vmatprep.mubr.f32.mxu0 0.0
    %v2443 = vand.u32 %v1746, 4294901760
    %2444 = vmatmul.mubr.f32.gmra.mxu0 %v2443
    %v2445 = vpop.f32.mrf.mxu0
    %v2446 = vadd.f32 %v2301, %v2445
    %v2447 = vpop.f32.mrf.mxu0
    %2448 = vmatprep.mubr.f32.mxu0 0.0
    %v2449 = vand.u32 %v1748, 4294901760
    %2450 = vmatmul.mubr.f32.gmra.mxu0 %v2449
    %v2451 = vpop.f32.mrf.mxu0
    %v2452 = vadd.f32 %v2309, %v2451
    %v2453 = vpop.f32.mrf.mxu0
    %2454 = vmatprep.mubr.f32.mxu0 0.0
    %v2455 = vand.u32 %v1750, 4294901760
    %2456 = vmatmul.mubr.f32.gmra.mxu0 %v2455
    %v2457 = vpop.f32.mrf.mxu0
    %v2458 = vadd.f32 %v2317, %v2457
    %v2459 = vpop.f32.mrf.mxu0
    %2460 = vmatprep.mubr.f32.mxu0 0.0
    %v2461 = vand.u32 %v1752, 4294901760
    %2462 = vmatmul.mubr.f32.gmra.mxu0 %v2461
    %v2463 = vpop.f32.mrf.mxu0
    %v2464 = vadd.f32 %v2325, %v2463
    %v2465 = vpop.f32.mrf.mxu0
    %2466 = vmatprep.mubr.f32.mxu0 0.0
    %v2467 = vand.u32 %v1754, 4294901760
    %2468 = vmatmul.mubr.f32.gmra.mxu0 %v2467
    %v2469 = vpop.f32.mrf.mxu0
    %v2470 = vadd.f32 %v2333, %v2469
    %v2471 = vpop.f32.mrf.mxu0
    %2472 = vdwg.mxu0
    %2473 = vmatprep.subr.mxu0 0.0
    %2474 = vmatpush1.msra.mxu0 0.0
    %2475 = vmatprep.subr.mxu0 0.0
    %2476 = vmatpush1.msra.mxu0 0.0
    %2477 = vmatprep.subr.mxu0 0.0
    %2478 = vmatpush1.msra.mxu0 0.0
    %2479 = vmatprep.subr.mxu0 0.0
    %2480 = vmatpush1.msra.mxu0 0.0
    %2481 = vmatprep.subr.mxu0 0.0
    %2482 = vmatpush1.msra.mxu0 0.0
    %2483 = vmatprep.subr.mxu0 0.0
    %2484 = vmatpush1.msra.mxu0 0.0
    %2485 = vmatprep.subr.mxu0 0.0
    %2486 = vmatpush1.msra.mxu0 0.0
    %2487 = vmatprep.subr.mxu0 0.0
    %2488 = vmatpush1.msra.mxu0 0.0
    %2489 = vmatprep.subr.mxu0 0.0
    %v2490 = vand.u32 %v80, 4294901760
    %2491 = vmatpush1.msra.mxu0 %v2490
    %2492 = vmatprep.subr.mxu0 0.0
    %v2493 = vand.u32 %v79, 4294901760
    %2494 = vmatpush1.msra.mxu0 %v2493
    %2495 = vmatprep.subr.mxu0 0.0
    %v2496 = vand.u32 %v78, 4294901760
    %2497 = vmatpush1.msra.mxu0 %v2496
    %2498 = vmatprep.subr.mxu0 0.0
    %v2499 = vand.u32 %v77, 4294901760
    %2500 = vmatpush1.msra.mxu0 %v2499
    %2501 = vmatprep.subr.mxu0 0.0
    %v2502 = vand.u32 %v76, 4294901760
    %2503 = vmatpush1.msra.mxu0 %v2502
    %2504 = vmatprep.subr.mxu0 0.0
    %v2505 = vand.u32 %v75, 4294901760
    %2506 = vmatpush1.msra.mxu0 %v2505
    %2507 = vmatprep.subr.mxu0 0.0
    %v2508 = vand.u32 %v74, 4294901760
    %2509 = vmatpush1.msra.mxu0 %v2508
    %2510 = vmatprep.subr.mxu0 0.0
    %v2511 = vand.u32 %v73, 4294901760
    %2512 = vmatpush1.msra.mxu0 %v2511
    %2513 = vmatprep.subr.mxu0 0.0
    %2514 = vmatpush2.msra.mxu0 0.0
    %2515 = vmatprep.subr.mxu0 0.0
    %2516 = vmatpush2.msra.mxu0 0.0
    %2517 = vmatprep.subr.mxu0 0.0
    %2518 = vmatpush2.msra.mxu0 0.0
    %2519 = vmatprep.subr.mxu0 0.0
    %2520 = vmatpush2.msra.mxu0 0.0
    %2521 = vmatprep.subr.mxu0 0.0
    %2522 = vmatpush2.msra.mxu0 0.0
    %2523 = vmatprep.subr.mxu0 0.0
    %2524 = vmatpush2.msra.mxu0 0.0
    %2525 = vmatprep.subr.mxu0 0.0
    %2526 = vmatpush2.msra.mxu0 0.0
    %2527 = vmatprep.subr.mxu0 0.0
    %2528 = vmatpush2.msra.mxu0 0.0
    %2529 = vmatprep.subr.mxu0 0.0
    %2530 = vmatpush2.msra.mxu0 0.0
    %2531 = vmatprep.subr.mxu0 0.0
    %2532 = vmatpush2.msra.mxu0 0.0
    %2533 = vmatprep.subr.mxu0 0.0
    %2534 = vmatpush2.msra.mxu0 0.0
    %2535 = vmatprep.subr.mxu0 0.0
    %2536 = vmatpush2.msra.mxu0 0.0
    %2537 = vmatprep.subr.mxu0 0.0
    %2538 = vmatpush2.msra.mxu0 0.0
    %2539 = vmatprep.subr.mxu0 0.0
    %2540 = vmatpush2.msra.mxu0 0.0
    %2541 = vmatprep.subr.mxu0 0.0
    %2542 = vmatpush2.msra.mxu0 0.0
    %2543 = vmatprep.subr.mxu0 0.0
    %2544 = vmatpush2.msra.mxu0 0.0
    %2545 = vmatprep.mubr.f32.mxu0 0.0
    %v2546 = vand.u32 %v1740, 4294901760
    %2547 = vmatmul.mubr.f32.gmra.mxu0 %v2546
    %v2548 = vpop.f32.mrf.mxu0
    %v2549 = vadd.f32 %v2428, %v2548
    %v2550 = vpop.f32.mrf.mxu0
    %2551 = vmatprep.mubr.f32.mxu0 0.0
    %v2552 = vand.u32 %v1742, 4294901760
    %2553 = vmatmul.mubr.f32.gmra.mxu0 %v2552
    %v2554 = vpop.f32.mrf.mxu0
    %v2555 = vadd.f32 %v2434, %v2554
    %v2556 = vpop.f32.mrf.mxu0
    %2557 = vmatprep.mubr.f32.mxu0 0.0
    %v2558 = vand.u32 %v1744, 4294901760
    %2559 = vmatmul.mubr.f32.gmra.mxu0 %v2558
    %v2560 = vpop.f32.mrf.mxu0
    %v2561 = vadd.f32 %v2440, %v2560
    %v2562 = vpop.f32.mrf.mxu0
    %2563 = vmatprep.mubr.f32.mxu0 0.0
    %v2564 = vand.u32 %v1746, 4294901760
    %2565 = vmatmul.mubr.f32.gmra.mxu0 %v2564
    %v2566 = vpop.f32.mrf.mxu0
    %v2567 = vadd.f32 %v2446, %v2566
    %v2568 = vpop.f32.mrf.mxu0
    %2569 = vmatprep.mubr.f32.mxu0 0.0
    %v2570 = vand.u32 %v1748, 4294901760
    %2571 = vmatmul.mubr.f32.gmra.mxu0 %v2570
    %v2572 = vpop.f32.mrf.mxu0
    %v2573 = vadd.f32 %v2452, %v2572
    %v2574 = vpop.f32.mrf.mxu0
    %2575 = vmatprep.mubr.f32.mxu0 0.0
    %v2576 = vand.u32 %v1750, 4294901760
    %2577 = vmatmul.mubr.f32.gmra.mxu0 %v2576
    %v2578 = vpop.f32.mrf.mxu0
    %v2579 = vadd.f32 %v2458, %v2578
    %v2580 = vpop.f32.mrf.mxu0
    %2581 = vmatprep.mubr.f32.mxu0 0.0
    %v2582 = vand.u32 %v1752, 4294901760
    %2583 = vmatmul.mubr.f32.gmra.mxu0 %v2582
    %v2584 = vpop.f32.mrf.mxu0
    %v2585 = vadd.f32 %v2464, %v2584
    %v2586 = vpop.f32.mrf.mxu0
    %2587 = vmatprep.mubr.f32.mxu0 0.0
    %v2588 = vand.u32 %v1754, 4294901760
    %2589 = vmatmul.mubr.f32.gmra.mxu0 %v2588
    %v2590 = vpop.f32.mrf.mxu0
    %v2591 = vadd.f32 %v2470, %v2590
    %v2592 = vpop.f32.mrf.mxu0
    %2593 = vdwg.mxu0
    %v2594 = vld [vmem:[#allocation7 + $0x128] sm:$0xff]
    %v2595 = vadd.f32 %v1713, %v2594
    %v2596 = vsel %vm1151, %v2595, -inf
    %2597 = vmax.xlane.f32.xlu0 %v2596
    %v2598 = vpop.xlane.xlu0 %2597
    %v2599 = vsub.f32 %v2595, %v2598
    %v2600 = vmul.f32 %v2599, 1.442695
    %v2601 = vpow.pop %v2600
    %v2603 = vsel %vm1151, %v2601, 0
    %2605 = vmatprep.subr.mxu0 0.0
    %2606 = vmatpush1.msra.mxu0 0.0
    %2607 = vmatprep.subr.mxu0 0.0
    %2608 = vmatpush1.msra.mxu0 0.0
    %2609 = vmatprep.subr.mxu0 0.0
    %2610 = vmatpush1.msra.mxu0 0.0
    %2611 = vmatprep.subr.mxu0 0.0
    %2612 = vmatpush1.msra.mxu0 0.0
    %2613 = vmatprep.subr.mxu0 0.0
    %2614 = vmatpush1.msra.mxu0 0.0
    %2615 = vmatprep.subr.mxu0 0.0
    %2616 = vmatpush1.msra.mxu0 0.0
    %2617 = vmatprep.subr.mxu0 0.0
    %2618 = vmatpush1.msra.mxu0 0.0
    %2619 = vmatprep.subr.mxu0 0.0
    %2620 = vmatpush1.msra.mxu0 0.0
    %2621 = vmatprep.subr.mxu0 0.0
    %v2622 = vand.u32 %v88, 4294901760
    %2623 = vmatpush1.msra.mxu0 %v2622
    %2624 = vmatprep.subr.mxu0 0.0
    %v2625 = vand.u32 %v87, 4294901760
    %2626 = vmatpush1.msra.mxu0 %v2625
    %2627 = vmatprep.subr.mxu0 0.0
    %v2628 = vand.u32 %v86, 4294901760
    %2629 = vmatpush1.msra.mxu0 %v2628
    %2630 = vmatprep.subr.mxu0 0.0
    %v2631 = vand.u32 %v85, 4294901760
    %2632 = vmatpush1.msra.mxu0 %v2631
    %2633 = vmatprep.subr.mxu0 0.0
    %v2634 = vand.u32 %v84, 4294901760
    %2635 = vmatpush1.msra.mxu0 %v2634
    %2636 = vmatprep.subr.mxu0 0.0
    %v2637 = vand.u32 %v83, 4294901760
    %2638 = vmatpush1.msra.mxu0 %v2637
    %2639 = vmatprep.subr.mxu0 0.0
    %v2640 = vand.u32 %v82, 4294901760
    %2641 = vmatpush1.msra.mxu0 %v2640
    %2642 = vmatprep.subr.mxu0 0.0
    %v2643 = vand.u32 %v81, 4294901760
    %2644 = vmatpush1.msra.mxu0 %v2643
    %2645 = vmatprep.subr.mxu0 0.0
    %2646 = vmatpush2.msra.mxu0 0.0
    %2647 = vmatprep.subr.mxu0 0.0
    %2648 = vmatpush2.msra.mxu0 0.0
    %2649 = vmatprep.subr.mxu0 0.0
    %2650 = vmatpush2.msra.mxu0 0.0
    %2651 = vmatprep.subr.mxu0 0.0
    %2652 = vmatpush2.msra.mxu0 0.0
    %2653 = vmatprep.subr.mxu0 0.0
    %2654 = vmatpush2.msra.mxu0 0.0
    %2655 = vmatprep.subr.mxu0 0.0
    %2656 = vmatpush2.msra.mxu0 0.0
    %2657 = vmatprep.subr.mxu0 0.0
    %2658 = vmatpush2.msra.mxu0 0.0
    %2659 = vmatprep.subr.mxu0 0.0
    %2660 = vmatpush2.msra.mxu0 0.0
    %2661 = vmatprep.subr.mxu0 0.0
    %2662 = vmatpush2.msra.mxu0 0.0
    %2663 = vmatprep.subr.mxu0 0.0
    %2664 = vmatpush2.msra.mxu0 0.0
    %2665 = vmatprep.subr.mxu0 0.0
    %2666 = vmatpush2.msra.mxu0 0.0
    %2667 = vmatprep.subr.mxu0 0.0
    %2668 = vmatpush2.msra.mxu0 0.0
    %2669 = vmatprep.subr.mxu0 0.0
    %2670 = vmatpush2.msra.mxu0 0.0
    %2671 = vmatprep.subr.mxu0 0.0
    %2672 = vmatpush2.msra.mxu0 0.0
    %2673 = vmatprep.subr.mxu0 0.0
    %2674 = vmatpush2.msra.mxu0 0.0
    %2675 = vmatprep.subr.mxu0 0.0
    %2676 = vmatpush2.msra.mxu0 0.0
    %2677 = vmatprep.mubr.f32.mxu0 0.0
    %v2678 = vand.u32 %v2603, 4294901760
    %v2679 = vsub.f32 %v2603, %v2678
    %v2680 = vand.u32 %v2679, 4294901760
    %v2681 = vsub.f32 %v2679, %v2680
    %v2682 = vand.u32 %v2681, 4294901760
    %2683 = vmatmul.mubr.f32.gmra.mxu0 %v2682
    %v2684 = vpop.f32.mrf.mxu0
    %v2685 = vadd.f32 0.0, %v2684
    %v2686 = vpop.f32.mrf.mxu0
    %2687 = vdwg.mxu0
    %2688 = vmatprep.subr.mxu0 0.0
    %2689 = vmatpush1.msra.mxu0 0.0
    %2690 = vmatprep.subr.mxu0 0.0
    %2691 = vmatpush1.msra.mxu0 0.0
    %2692 = vmatprep.subr.mxu0 0.0
    %2693 = vmatpush1.msra.mxu0 0.0
    %2694 = vmatprep.subr.mxu0 0.0
    %2695 = vmatpush1.msra.mxu0 0.0
    %2696 = vmatprep.subr.mxu0 0.0
    %2697 = vmatpush1.msra.mxu0 0.0
    %2698 = vmatprep.subr.mxu0 0.0
    %2699 = vmatpush1.msra.mxu0 0.0
    %2700 = vmatprep.subr.mxu0 0.0
    %2701 = vmatpush1.msra.mxu0 0.0
    %2702 = vmatprep.subr.mxu0 0.0
    %2703 = vmatpush1.msra.mxu0 0.0
    %2704 = vmatprep.subr.mxu0 0.0
    %v2705 = vand.u32 %v88, 4294901760
    %v2706 = vsub.f32 %v88, %v2705
    %v2707 = vand.u32 %v2706, 4294901760
    %v2708 = vsub.f32 %v2706, %v2707
    %v2709 = vand.u32 %v2708, 4294901760
    %2710 = vmatpush1.msra.mxu0 %v2709
    %2711 = vmatprep.subr.mxu0 0.0
    %v2712 = vand.u32 %v87, 4294901760
    %v2713 = vsub.f32 %v87, %v2712
    %v2714 = vand.u32 %v2713, 4294901760
    %v2715 = vsub.f32 %v2713, %v2714
    %v2716 = vand.u32 %v2715, 4294901760
    %2717 = vmatpush1.msra.mxu0 %v2716
    %2718 = vmatprep.subr.mxu0 0.0
    %v2719 = vand.u32 %v86, 4294901760
    %v2720 = vsub.f32 %v86, %v2719
    %v2721 = vand.u32 %v2720, 4294901760
    %v2722 = vsub.f32 %v2720, %v2721
    %v2723 = vand.u32 %v2722, 4294901760
    %2724 = vmatpush1.msra.mxu0 %v2723
    %2725 = vmatprep.subr.mxu0 0.0
    %v2726 = vand.u32 %v85, 4294901760
    %v2727 = vsub.f32 %v85, %v2726
    %v2728 = vand.u32 %v2727, 4294901760
    %v2729 = vsub.f32 %v2727, %v2728
    %v2730 = vand.u32 %v2729, 4294901760
    %2731 = vmatpush1.msra.mxu0 %v2730
    %2732 = vmatprep.subr.mxu0 0.0
    %v2733 = vand.u32 %v84, 4294901760
    %v2734 = vsub.f32 %v84, %v2733
    %v2735 = vand.u32 %v2734, 4294901760
    %v2736 = vsub.f32 %v2734, %v2735
    %v2737 = vand.u32 %v2736, 4294901760
    %2738 = vmatpush1.msra.mxu0 %v2737
    %2739 = vmatprep.subr.mxu0 0.0
    %v2740 = vand.u32 %v83, 4294901760
    %v2741 = vsub.f32 %v83, %v2740
    %v2742 = vand.u32 %v2741, 4294901760
    %v2743 = vsub.f32 %v2741, %v2742
    %v2744 = vand.u32 %v2743, 4294901760
    %2745 = vmatpush1.msra.mxu0 %v2744
    %2746 = vmatprep.subr.mxu0 0.0
    %v2747 = vand.u32 %v82, 4294901760
    %v2748 = vsub.f32 %v82, %v2747
    %v2749 = vand.u32 %v2748, 4294901760
    %v2750 = vsub.f32 %v2748, %v2749
    %v2751 = vand.u32 %v2750, 4294901760
    %2752 = vmatpush1.msra.mxu0 %v2751
    %2753 = vmatprep.subr.mxu0 0.0
    %v2754 = vand.u32 %v81, 4294901760
    %v2755 = vsub.f32 %v81, %v2754
    %v2756 = vand.u32 %v2755, 4294901760
    %v2757 = vsub.f32 %v2755, %v2756
    %v2758 = vand.u32 %v2757, 4294901760
    %2759 = vmatpush1.msra.mxu0 %v2758
    %2760 = vmatprep.subr.mxu0 0.0
    %2761 = vmatpush2.msra.mxu0 0.0
    %2762 = vmatprep.subr.mxu0 0.0
    %2763 = vmatpush2.msra.mxu0 0.0
    %2764 = vmatprep.subr.mxu0 0.0
    %2765 = vmatpush2.msra.mxu0 0.0
    %2766 = vmatprep.subr.mxu0 0.0
    %2767 = vmatpush2.msra.mxu0 0.0
    %2768 = vmatprep.subr.mxu0 0.0
    %2769 = vmatpush2.msra.mxu0 0.0
    %2770 = vmatprep.subr.mxu0 0.0
    %2771 = vmatpush2.msra.mxu0 0.0
    %2772 = vmatprep.subr.mxu0 0.0
    %2773 = vmatpush2.msra.mxu0 0.0
    %2774 = vmatprep.subr.mxu0 0.0
    %2775 = vmatpush2.msra.mxu0 0.0
    %2776 = vmatprep.subr.mxu0 0.0
    %2777 = vmatpush2.msra.mxu0 0.0
    %2778 = vmatprep.subr.mxu0 0.0
    %2779 = vmatpush2.msra.mxu0 0.0
    %2780 = vmatprep.subr.mxu0 0.0
    %2781 = vmatpush2.msra.mxu0 0.0
    %2782 = vmatprep.subr.mxu0 0.0
    %2783 = vmatpush2.msra.mxu0 0.0
    %2784 = vmatprep.subr.mxu0 0.0
    %2785 = vmatpush2.msra.mxu0 0.0
    %2786 = vmatprep.subr.mxu0 0.0
    %2787 = vmatpush2.msra.mxu0 0.0
    %2788 = vmatprep.subr.mxu0 0.0
    %2789 = vmatpush2.msra.mxu0 0.0
    %2790 = vmatprep.subr.mxu0 0.0
    %2791 = vmatpush2.msra.mxu0 0.0
    %2792 = vmatprep.mubr.f32.mxu0 0.0
    %v2793 = vand.u32 %v2603, 4294901760
    %2794 = vmatmul.mubr.f32.gmra.mxu0 %v2793
    %v2795 = vpop.f32.mrf.mxu0
    %v2796 = vadd.f32 %v2685, %v2795
    %v2797 = vpop.f32.mrf.mxu0
    %2798 = vdwg.mxu0
    %2799 = vmatprep.subr.mxu0 0.0
    %2800 = vmatpush1.msra.mxu0 0.0
    %2801 = vmatprep.subr.mxu0 0.0
    %2802 = vmatpush1.msra.mxu0 0.0
    %2803 = vmatprep.subr.mxu0 0.0
    %2804 = vmatpush1.msra.mxu0 0.0
    %2805 = vmatprep.subr.mxu0 0.0
    %2806 = vmatpush1.msra.mxu0 0.0
    %2807 = vmatprep.subr.mxu0 0.0
    %2808 = vmatpush1.msra.mxu0 0.0
    %2809 = vmatprep.subr.mxu0 0.0
    %2810 = vmatpush1.msra.mxu0 0.0
    %2811 = vmatprep.subr.mxu0 0.0
    %2812 = vmatpush1.msra.mxu0 0.0
    %2813 = vmatprep.subr.mxu0 0.0
    %2814 = vmatpush1.msra.mxu0 0.0
    %2815 = vmatprep.subr.mxu0 0.0
    %v2816 = vand.u32 %v88, 4294901760
    %v2817 = vsub.f32 %v88, %v2816
    %2818 = vmatpush1.msra.mxu0 %v2817
    %2819 = vmatprep.subr.mxu0 0.0
    %v2820 = vand.u32 %v87, 4294901760
    %v2821 = vsub.f32 %v87, %v2820
    %2822 = vmatpush1.msra.mxu0 %v2821
    %2823 = vmatprep.subr.mxu0 0.0
    %v2824 = vand.u32 %v86, 4294901760
    %v2825 = vsub.f32 %v86, %v2824
    %2826 = vmatpush1.msra.mxu0 %v2825
    %2827 = vmatprep.subr.mxu0 0.0
    %v2828 = vand.u32 %v85, 4294901760
    %v2829 = vsub.f32 %v85, %v2828
    %2830 = vmatpush1.msra.mxu0 %v2829
    %2831 = vmatprep.subr.mxu0 0.0
    %v2832 = vand.u32 %v84, 4294901760
    %v2833 = vsub.f32 %v84, %v2832
    %2834 = vmatpush1.msra.mxu0 %v2833
    %2835 = vmatprep.subr.mxu0 0.0
    %v2836 = vand.u32 %v83, 4294901760
    %v2837 = vsub.f32 %v83, %v2836
    %2838 = vmatpush1.msra.mxu0 %v2837
    %2839 = vmatprep.subr.mxu0 0.0
    %v2840 = vand.u32 %v82, 4294901760
    %v2841 = vsub.f32 %v82, %v2840
    %2842 = vmatpush1.msra.mxu0 %v2841
    %2843 = vmatprep.subr.mxu0 0.0
    %v2844 = vand.u32 %v81, 4294901760
    %v2845 = vsub.f32 %v81, %v2844
    %2846 = vmatpush1.msra.mxu0 %v2845
    %2847 = vmatprep.subr.mxu0 0.0
    %2848 = vmatpush2.msra.mxu0 0.0
    %2849 = vmatprep.subr.mxu0 0.0
    %2850 = vmatpush2.msra.mxu0 0.0
    %2851 = vmatprep.subr.mxu0 0.0
    %2852 = vmatpush2.msra.mxu0 0.0
    %2853 = vmatprep.subr.mxu0 0.0
    %2854 = vmatpush2.msra.mxu0 0.0
    %2855 = vmatprep.subr.mxu0 0.0
    %2856 = vmatpush2.msra.mxu0 0.0
    %2857 = vmatprep.subr.mxu0 0.0
    %2858 = vmatpush2.msra.mxu0 0.0
    %2859 = vmatprep.subr.mxu0 0.0
    %2860 = vmatpush2.msra.mxu0 0.0
    %2861 = vmatprep.subr.mxu0 0.0
    %2862 = vmatpush2.msra.mxu0 0.0
    %2863 = vmatprep.subr.mxu0 0.0
    %2864 = vmatpush2.msra.mxu0 0.0
    %2865 = vmatprep.subr.mxu0 0.0
    %2866 = vmatpush2.msra.mxu0 0.0
    %2867 = vmatprep.subr.mxu0 0.0
    %2868 = vmatpush2.msra.mxu0 0.0
    %2869 = vmatprep.subr.mxu0 0.0
    %2870 = vmatpush2.msra.mxu0 0.0
    %2871 = vmatprep.subr.mxu0 0.0
    %2872 = vmatpush2.msra.mxu0 0.0
    %2873 = vmatprep.subr.mxu0 0.0
    %2874 = vmatpush2.msra.mxu0 0.0
    %2875 = vmatprep.subr.mxu0 0.0
    %2876 = vmatpush2.msra.mxu0 0.0
    %2877 = vmatprep.subr.mxu0 0.0
    %2878 = vmatpush2.msra.mxu0 0.0
    %2879 = vmatprep.mubr.f32.mxu0 0.0
    %v2880 = vand.u32 %v2603, 4294901760
    %v2881 = vsub.f32 %v2603, %v2880
    %2882 = vmatmul.mubr.f32.gmra.mxu0 %v2881
    %v2883 = vpop.f32.mrf.mxu0
    %v2884 = vadd.f32 %v2796, %v2883
    %v2885 = vpop.f32.mrf.mxu0
    %2886 = vdwg.mxu0
    %2887 = vmatprep.subr.mxu0 0.0
    %2888 = vmatpush1.msra.mxu0 0.0
    %2889 = vmatprep.subr.mxu0 0.0
    %2890 = vmatpush1.msra.mxu0 0.0
    %2891 = vmatprep.subr.mxu0 0.0
    %2892 = vmatpush1.msra.mxu0 0.0
    %2893 = vmatprep.subr.mxu0 0.0
    %2894 = vmatpush1.msra.mxu0 0.0
    %2895 = vmatprep.subr.mxu0 0.0
    %2896 = vmatpush1.msra.mxu0 0.0
    %2897 = vmatprep.subr.mxu0 0.0
    %2898 = vmatpush1.msra.mxu0 0.0
    %2899 = vmatprep.subr.mxu0 0.0
    %2900 = vmatpush1.msra.mxu0 0.0
    %2901 = vmatprep.subr.mxu0 0.0
    %2902 = vmatpush1.msra.mxu0 0.0
    %2903 = vmatprep.subr.mxu0 0.0
    %v2904 = vand.u32 %v88, 4294901760
    %2905 = vmatpush1.msra.mxu0 %v2904
    %2906 = vmatprep.subr.mxu0 0.0
    %v2907 = vand.u32 %v87, 4294901760
    %2908 = vmatpush1.msra.mxu0 %v2907
    %2909 = vmatprep.subr.mxu0 0.0
    %v2910 = vand.u32 %v86, 4294901760
    %2911 = vmatpush1.msra.mxu0 %v2910
    %2912 = vmatprep.subr.mxu0 0.0
    %v2913 = vand.u32 %v85, 4294901760
    %2914 = vmatpush1.msra.mxu0 %v2913
    %2915 = vmatprep.subr.mxu0 0.0
    %v2916 = vand.u32 %v84, 4294901760
    %2917 = vmatpush1.msra.mxu0 %v2916
    %2918 = vmatprep.subr.mxu0 0.0
    %v2919 = vand.u32 %v83, 4294901760
    %2920 = vmatpush1.msra.mxu0 %v2919
    %2921 = vmatprep.subr.mxu0 0.0
    %v2922 = vand.u32 %v82, 4294901760
    %2923 = vmatpush1.msra.mxu0 %v2922
    %2924 = vmatprep.subr.mxu0 0.0
    %v2925 = vand.u32 %v81, 4294901760
    %2926 = vmatpush1.msra.mxu0 %v2925
    %2927 = vmatprep.subr.mxu0 0.0
    %2928 = vmatpush2.msra.mxu0 0.0
    %2929 = vmatprep.subr.mxu0 0.0
    %2930 = vmatpush2.msra.mxu0 0.0
    %2931 = vmatprep.subr.mxu0 0.0
    %2932 = vmatpush2.msra.mxu0 0.0
    %2933 = vmatprep.subr.mxu0 0.0
    %2934 = vmatpush2.msra.mxu0 0.0
    %2935 = vmatprep.subr.mxu0 0.0
    %2936 = vmatpush2.msra.mxu0 0.0
    %2937 = vmatprep.subr.mxu0 0.0
    %2938 = vmatpush2.msra.mxu0 0.0
    %2939 = vmatprep.subr.mxu0 0.0
    %2940 = vmatpush2.msra.mxu0 0.0
    %2941 = vmatprep.subr.mxu0 0.0
    %2942 = vmatpush2.msra.mxu0 0.0
    %2943 = vmatprep.subr.mxu0 0.0
    %2944 = vmatpush2.msra.mxu0 0.0
    %2945 = vmatprep.subr.mxu0 0.0
    %2946 = vmatpush2.msra.mxu0 0.0
    %2947 = vmatprep.subr.mxu0 0.0
    %2948 = vmatpush2.msra.mxu0 0.0
    %2949 = vmatprep.subr.mxu0 0.0
    %2950 = vmatpush2.msra.mxu0 0.0
    %2951 = vmatprep.subr.mxu0 0.0
    %2952 = vmatpush2.msra.mxu0 0.0
    %2953 = vmatprep.subr.mxu0 0.0
    %2954 = vmatpush2.msra.mxu0 0.0
    %2955 = vmatprep.subr.mxu0 0.0
    %2956 = vmatpush2.msra.mxu0 0.0
    %2957 = vmatprep.subr.mxu0 0.0
    %2958 = vmatpush2.msra.mxu0 0.0
    %2959 = vmatprep.mubr.f32.mxu0 0.0
    %v2960 = vand.u32 %v2603, 4294901760
    %v2961 = vsub.f32 %v2603, %v2960
    %v2962 = vand.u32 %v2961, 4294901760
    %2963 = vmatmul.mubr.f32.gmra.mxu0 %v2962
    %v2964 = vpop.f32.mrf.mxu0
    %v2965 = vadd.f32 %v2884, %v2964
    %v2966 = vpop.f32.mrf.mxu0
    %2967 = vdwg.mxu0
    %2968 = vmatprep.subr.mxu0 0.0
    %2969 = vmatpush1.msra.mxu0 0.0
    %2970 = vmatprep.subr.mxu0 0.0
    %2971 = vmatpush1.msra.mxu0 0.0
    %2972 = vmatprep.subr.mxu0 0.0
    %2973 = vmatpush1.msra.mxu0 0.0
    %2974 = vmatprep.subr.mxu0 0.0
    %2975 = vmatpush1.msra.mxu0 0.0
    %2976 = vmatprep.subr.mxu0 0.0
    %2977 = vmatpush1.msra.mxu0 0.0
    %2978 = vmatprep.subr.mxu0 0.0
    %2979 = vmatpush1.msra.mxu0 0.0
    %2980 = vmatprep.subr.mxu0 0.0
    %2981 = vmatpush1.msra.mxu0 0.0
    %2982 = vmatprep.subr.mxu0 0.0
    %2983 = vmatpush1.msra.mxu0 0.0
    %2984 = vmatprep.subr.mxu0 0.0
    %v2985 = vand.u32 %v88, 4294901760
    %v2986 = vsub.f32 %v88, %v2985
    %v2987 = vand.u32 %v2986, 4294901760
    %2988 = vmatpush1.msra.mxu0 %v2987
    %2989 = vmatprep.subr.mxu0 0.0
    %v2990 = vand.u32 %v87, 4294901760
    %v2991 = vsub.f32 %v87, %v2990
    %v2992 = vand.u32 %v2991, 4294901760
    %2993 = vmatpush1.msra.mxu0 %v2992
    %2994 = vmatprep.subr.mxu0 0.0
    %v2995 = vand.u32 %v86, 4294901760
    %v2996 = vsub.f32 %v86, %v2995
    %v2997 = vand.u32 %v2996, 4294901760
    %2998 = vmatpush1.msra.mxu0 %v2997
    %2999 = vmatprep.subr.mxu0 0.0
    %v3000 = vand.u32 %v85, 4294901760
    %v3001 = vsub.f32 %v85, %v3000
    %v3002 = vand.u32 %v3001, 4294901760
    %3003 = vmatpush1.msra.mxu0 %v3002
    %3004 = vmatprep.subr.mxu0 0.0
    %v3005 = vand.u32 %v84, 4294901760
    %v3006 = vsub.f32 %v84, %v3005
    %v3007 = vand.u32 %v3006, 4294901760
    %3008 = vmatpush1.msra.mxu0 %v3007
    %3009 = vmatprep.subr.mxu0 0.0
    %v3010 = vand.u32 %v83, 4294901760
    %v3011 = vsub.f32 %v83, %v3010
    %v3012 = vand.u32 %v3011, 4294901760
    %3013 = vmatpush1.msra.mxu0 %v3012
    %3014 = vmatprep.subr.mxu0 0.0
    %v3015 = vand.u32 %v82, 4294901760
    %v3016 = vsub.f32 %v82, %v3015
    %v3017 = vand.u32 %v3016, 4294901760
    %3018 = vmatpush1.msra.mxu0 %v3017
    %3019 = vmatprep.subr.mxu0 0.0
    %v3020 = vand.u32 %v81, 4294901760
    %v3021 = vsub.f32 %v81, %v3020
    %v3022 = vand.u32 %v3021, 4294901760
    %3023 = vmatpush1.msra.mxu0 %v3022
    %3024 = vmatprep.subr.mxu0 0.0
    %3025 = vmatpush2.msra.mxu0 0.0
    %3026 = vmatprep.subr.mxu0 0.0
    %3027 = vmatpush2.msra.mxu0 0.0
    %3028 = vmatprep.subr.mxu0 0.0
    %3029 = vmatpush2.msra.mxu0 0.0
    %3030 = vmatprep.subr.mxu0 0.0
    %3031 = vmatpush2.msra.mxu0 0.0
    %3032 = vmatprep.subr.mxu0 0.0
    %3033 = vmatpush2.msra.mxu0 0.0
    %3034 = vmatprep.subr.mxu0 0.0
    %3035 = vmatpush2.msra.mxu0 0.0
    %3036 = vmatprep.subr.mxu0 0.0
    %3037 = vmatpush2.msra.mxu0 0.0
    %3038 = vmatprep.subr.mxu0 0.0
    %3039 = vmatpush2.msra.mxu0 0.0
    %3040 = vmatprep.subr.mxu0 0.0
    %3041 = vmatpush2.msra.mxu0 0.0
    %3042 = vmatprep.subr.mxu0 0.0
    %3043 = vmatpush2.msra.mxu0 0.0
    %3044 = vmatprep.subr.mxu0 0.0
    %3045 = vmatpush2.msra.mxu0 0.0
    %3046 = vmatprep.subr.mxu0 0.0
    %3047 = vmatpush2.msra.mxu0 0.0
    %3048 = vmatprep.subr.mxu0 0.0
    %3049 = vmatpush2.msra.mxu0 0.0
    %3050 = vmatprep.subr.mxu0 0.0
    %3051 = vmatpush2.msra.mxu0 0.0
    %3052 = vmatprep.subr.mxu0 0.0
    %3053 = vmatpush2.msra.mxu0 0.0
    %3054 = vmatprep.subr.mxu0 0.0
    %3055 = vmatpush2.msra.mxu0 0.0
    %3056 = vmatprep.mubr.f32.mxu0 0.0
    %v3057 = vand.u32 %v2603, 4294901760
    %3058 = vmatmul.mubr.f32.gmra.mxu0 %v3057
    %v3059 = vpop.f32.mrf.mxu0
    %v3060 = vadd.f32 %v2965, %v3059
    %v3061 = vpop.f32.mrf.mxu0
    %3062 = vdwg.mxu0
    %3063 = vmatprep.subr.mxu0 0.0
    %3064 = vmatpush1.msra.mxu0 0.0
    %3065 = vmatprep.subr.mxu0 0.0
    %3066 = vmatpush1.msra.mxu0 0.0
    %3067 = vmatprep.subr.mxu0 0.0
    %3068 = vmatpush1.msra.mxu0 0.0
    %3069 = vmatprep.subr.mxu0 0.0
    %3070 = vmatpush1.msra.mxu0 0.0
    %3071 = vmatprep.subr.mxu0 0.0
    %3072 = vmatpush1.msra.mxu0 0.0
    %3073 = vmatprep.subr.mxu0 0.0
    %3074 = vmatpush1.msra.mxu0 0.0
    %3075 = vmatprep.subr.mxu0 0.0
    %3076 = vmatpush1.msra.mxu0 0.0
    %3077 = vmatprep.subr.mxu0 0.0
    %3078 = vmatpush1.msra.mxu0 0.0
    %3079 = vmatprep.subr.mxu0 0.0
    %v3080 = vand.u32 %v88, 4294901760
    %3081 = vmatpush1.msra.mxu0 %v3080
    %3082 = vmatprep.subr.mxu0 0.0
    %v3083 = vand.u32 %v87, 4294901760
    %3084 = vmatpush1.msra.mxu0 %v3083
    %3085 = vmatprep.subr.mxu0 0.0
    %v3086 = vand.u32 %v86, 4294901760
    %3087 = vmatpush1.msra.mxu0 %v3086
    %3088 = vmatprep.subr.mxu0 0.0
    %v3089 = vand.u32 %v85, 4294901760
    %3090 = vmatpush1.msra.mxu0 %v3089
    %3091 = vmatprep.subr.mxu0 0.0
    %v3092 = vand.u32 %v84, 4294901760
    %3093 = vmatpush1.msra.mxu0 %v3092
    %3094 = vmatprep.subr.mxu0 0.0
    %v3095 = vand.u32 %v83, 4294901760
    %3096 = vmatpush1.msra.mxu0 %v3095
    %3097 = vmatprep.subr.mxu0 0.0
    %v3098 = vand.u32 %v82, 4294901760
    %3099 = vmatpush1.msra.mxu0 %v3098
    %3100 = vmatprep.subr.mxu0 0.0
    %v3101 = vand.u32 %v81, 4294901760
    %3102 = vmatpush1.msra.mxu0 %v3101
    %3103 = vmatprep.subr.mxu0 0.0
    %3104 = vmatpush2.msra.mxu0 0.0
    %3105 = vmatprep.subr.mxu0 0.0
    %3106 = vmatpush2.msra.mxu0 0.0
    %3107 = vmatprep.subr.mxu0 0.0
    %3108 = vmatpush2.msra.mxu0 0.0
    %3109 = vmatprep.subr.mxu0 0.0
    %3110 = vmatpush2.msra.mxu0 0.0
    %3111 = vmatprep.subr.mxu0 0.0
    %3112 = vmatpush2.msra.mxu0 0.0
    %3113 = vmatprep.subr.mxu0 0.0
    %3114 = vmatpush2.msra.mxu0 0.0
    %3115 = vmatprep.subr.mxu0 0.0
    %3116 = vmatpush2.msra.mxu0 0.0
    %3117 = vmatprep.subr.mxu0 0.0
    %3118 = vmatpush2.msra.mxu0 0.0
    %3119 = vmatprep.subr.mxu0 0.0
    %3120 = vmatpush2.msra.mxu0 0.0
    %3121 = vmatprep.subr.mxu0 0.0
    %3122 = vmatpush2.msra.mxu0 0.0
    %3123 = vmatprep.subr.mxu0 0.0
    %3124 = vmatpush2.msra.mxu0 0.0
    %3125 = vmatprep.subr.mxu0 0.0
    %3126 = vmatpush2.msra.mxu0 0.0
    %3127 = vmatprep.subr.mxu0 0.0
    %3128 = vmatpush2.msra.mxu0 0.0
    %3129 = vmatprep.subr.mxu0 0.0
    %3130 = vmatpush2.msra.mxu0 0.0
    %3131 = vmatprep.subr.mxu0 0.0
    %3132 = vmatpush2.msra.mxu0 0.0
    %3133 = vmatprep.subr.mxu0 0.0
    %3134 = vmatpush2.msra.mxu0 0.0
    %3135 = vmatprep.mubr.f32.mxu0 0.0
    %v3136 = vand.u32 %v2603, 4294901760
    %3137 = vmatmul.mubr.f32.gmra.mxu0 %v3136
    %v3138 = vpop.f32.mrf.mxu0
    %v3139 = vadd.f32 %v3060, %v3138
    %v3140 = vpop.f32.mrf.mxu0
    %3141 = vdwg.mxu0
    %v3142 = vrcp.pop %v3139
    %v3143 = vmul.f32 %v2601, %v3142
    %v3144 = vlaneseq
    %v3145 = vshrl.u32 %v3144, 7
    %v3146 = vsub.s32 0, %v3145
    %v3147 = vrot.slane %v54, %v3146
    %v3149 = vsel %vm1151, %v3143, 0
    %3151 = vmatprep.subr.mxu0 0.0
    %3152 = vmatpush1.msra.mxu0 0.0
    %3153 = vmatprep.subr.mxu0 0.0
    %3154 = vmatpush1.msra.mxu0 0.0
    %3155 = vmatprep.subr.mxu0 0.0
    %3156 = vmatpush1.msra.mxu0 0.0
    %3157 = vmatprep.subr.mxu0 0.0
    %3158 = vmatpush1.msra.mxu0 0.0
    %3159 = vmatprep.subr.mxu0 0.0
    %3160 = vmatpush1.msra.mxu0 0.0
    %3161 = vmatprep.subr.mxu0 0.0
    %3162 = vmatpush1.msra.mxu0 0.0
    %3163 = vmatprep.subr.mxu0 0.0
    %3164 = vmatpush1.msra.mxu0 0.0
    %3165 = vmatprep.subr.mxu0 0.0
    %3166 = vmatpush1.msra.mxu0 0.0
    %3167 = vmatprep.subr.mxu0 0.0
    %v3168 = vand.u32 %v2591, 4294901760
    %3169 = vmatpush1.msra.mxu0 %v3168
    %3170 = vmatprep.subr.mxu0 0.0
    %v3171 = vand.u32 %v2585, 4294901760
    %3172 = vmatpush1.msra.mxu0 %v3171
    %3173 = vmatprep.subr.mxu0 0.0
    %v3174 = vand.u32 %v2579, 4294901760
    %3175 = vmatpush1.msra.mxu0 %v3174
    %3176 = vmatprep.subr.mxu0 0.0
    %v3177 = vand.u32 %v2573, 4294901760
    %3178 = vmatpush1.msra.mxu0 %v3177
    %3179 = vmatprep.subr.mxu0 0.0
    %v3180 = vand.u32 %v2567, 4294901760
    %3181 = vmatpush1.msra.mxu0 %v3180
    %3182 = vmatprep.subr.mxu0 0.0
    %v3183 = vand.u32 %v2561, 4294901760
    %3184 = vmatpush1.msra.mxu0 %v3183
    %3185 = vmatprep.subr.mxu0 0.0
    %v3186 = vand.u32 %v2555, 4294901760
    %3187 = vmatpush1.msra.mxu0 %v3186
    %3188 = vmatprep.subr.mxu0 0.0
    %v3189 = vand.u32 %v2549, 4294901760
    %3190 = vmatpush1.msra.mxu0 %v3189
    %3191 = vmatprep.subr.mxu0 0.0
    %3192 = vmatpush2.msra.mxu0 0.0
    %3193 = vmatprep.subr.mxu0 0.0
    %3194 = vmatpush2.msra.mxu0 0.0
    %3195 = vmatprep.subr.mxu0 0.0
    %3196 = vmatpush2.msra.mxu0 0.0
    %3197 = vmatprep.subr.mxu0 0.0
    %3198 = vmatpush2.msra.mxu0 0.0
    %3199 = vmatprep.subr.mxu0 0.0
    %3200 = vmatpush2.msra.mxu0 0.0
    %3201 = vmatprep.subr.mxu0 0.0
    %3202 = vmatpush2.msra.mxu0 0.0
    %3203 = vmatprep.subr.mxu0 0.0
    %3204 = vmatpush2.msra.mxu0 0.0
    %3205 = vmatprep.subr.mxu0 0.0
    %3206 = vmatpush2.msra.mxu0 0.0
    %3207 = vmatprep.subr.mxu0 0.0
    %3208 = vmatpush2.msra.mxu0 0.0
    %3209 = vmatprep.subr.mxu0 0.0
    %3210 = vmatpush2.msra.mxu0 0.0
    %3211 = vmatprep.subr.mxu0 0.0
    %3212 = vmatpush2.msra.mxu0 0.0
    %3213 = vmatprep.subr.mxu0 0.0
    %3214 = vmatpush2.msra.mxu0 0.0
    %3215 = vmatprep.subr.mxu0 0.0
    %3216 = vmatpush2.msra.mxu0 0.0
    %3217 = vmatprep.subr.mxu0 0.0
    %3218 = vmatpush2.msra.mxu0 0.0
    %3219 = vmatprep.subr.mxu0 0.0
    %3220 = vmatpush2.msra.mxu0 0.0
    %3221 = vmatprep.subr.mxu0 0.0
    %3222 = vmatpush2.msra.mxu0 0.0
    %3223 = vmatprep.mubr.f32.mxu0 0.0
    %v3224 = vand.u32 %v3149, 4294901760
    %v3225 = vsub.f32 %v3149, %v3224
    %v3226 = vand.u32 %v3225, 4294901760
    %v3227 = vsub.f32 %v3225, %v3226
    %v3228 = vand.u32 %v3227, 4294901760
    %3229 = vmatmul.mubr.f32.gmra.mxu0 %v3228
    %v3230 = vpop.f32.mrf.mxu0
    %v3231 = vadd.f32 %v3147, %v3230
    %v3232 = vpop.f32.mrf.mxu0
    %3233 = vdwg.mxu0
    %3234 = vmatprep.subr.mxu0 0.0
    %3235 = vmatpush1.msra.mxu0 0.0
    %3236 = vmatprep.subr.mxu0 0.0
    %3237 = vmatpush1.msra.mxu0 0.0
    %3238 = vmatprep.subr.mxu0 0.0
    %3239 = vmatpush1.msra.mxu0 0.0
    %3240 = vmatprep.subr.mxu0 0.0
    %3241 = vmatpush1.msra.mxu0 0.0
    %3242 = vmatprep.subr.mxu0 0.0
    %3243 = vmatpush1.msra.mxu0 0.0
    %3244 = vmatprep.subr.mxu0 0.0
    %3245 = vmatpush1.msra.mxu0 0.0
    %3246 = vmatprep.subr.mxu0 0.0
    %3247 = vmatpush1.msra.mxu0 0.0
    %3248 = vmatprep.subr.mxu0 0.0
    %3249 = vmatpush1.msra.mxu0 0.0
    %3250 = vmatprep.subr.mxu0 0.0
    %v3251 = vand.u32 %v2591, 4294901760
    %v3252 = vsub.f32 %v2591, %v3251
    %v3253 = vand.u32 %v3252, 4294901760
    %v3254 = vsub.f32 %v3252, %v3253
    %v3255 = vand.u32 %v3254, 4294901760
    %3256 = vmatpush1.msra.mxu0 %v3255
    %3257 = vmatprep.subr.mxu0 0.0
    %v3258 = vand.u32 %v2585, 4294901760
    %v3259 = vsub.f32 %v2585, %v3258
    %v3260 = vand.u32 %v3259, 4294901760
    %v3261 = vsub.f32 %v3259, %v3260
    %v3262 = vand.u32 %v3261, 4294901760
    %3263 = vmatpush1.msra.mxu0 %v3262
    %3264 = vmatprep.subr.mxu0 0.0
    %v3265 = vand.u32 %v2579, 4294901760
    %v3266 = vsub.f32 %v2579, %v3265
    %v3267 = vand.u32 %v3266, 4294901760
    %v3268 = vsub.f32 %v3266, %v3267
    %v3269 = vand.u32 %v3268, 4294901760
    %3270 = vmatpush1.msra.mxu0 %v3269
    %3271 = vmatprep.subr.mxu0 0.0
    %v3272 = vand.u32 %v2573, 4294901760
    %v3273 = vsub.f32 %v2573, %v3272
    %v3274 = vand.u32 %v3273, 4294901760
    %v3275 = vsub.f32 %v3273, %v3274
    %v3276 = vand.u32 %v3275, 4294901760
    %3277 = vmatpush1.msra.mxu0 %v3276
    %3278 = vmatprep.subr.mxu0 0.0
    %v3279 = vand.u32 %v2567, 4294901760
    %v3280 = vsub.f32 %v2567, %v3279
    %v3281 = vand.u32 %v3280, 4294901760
    %v3282 = vsub.f32 %v3280, %v3281
    %v3283 = vand.u32 %v3282, 4294901760
    %3284 = vmatpush1.msra.mxu0 %v3283
    %3285 = vmatprep.subr.mxu0 0.0
    %v3286 = vand.u32 %v2561, 4294901760
    %v3287 = vsub.f32 %v2561, %v3286
    %v3288 = vand.u32 %v3287, 4294901760
    %v3289 = vsub.f32 %v3287, %v3288
    %v3290 = vand.u32 %v3289, 4294901760
    %3291 = vmatpush1.msra.mxu0 %v3290
    %3292 = vmatprep.subr.mxu0 0.0
    %v3293 = vand.u32 %v2555, 4294901760
    %v3294 = vsub.f32 %v2555, %v3293
    %v3295 = vand.u32 %v3294, 4294901760
    %v3296 = vsub.f32 %v3294, %v3295
    %v3297 = vand.u32 %v3296, 4294901760
    %3298 = vmatpush1.msra.mxu0 %v3297
    %3299 = vmatprep.subr.mxu0 0.0
    %v3300 = vand.u32 %v2549, 4294901760
    %v3301 = vsub.f32 %v2549, %v3300
    %v3302 = vand.u32 %v3301, 4294901760
    %v3303 = vsub.f32 %v3301, %v3302
    %v3304 = vand.u32 %v3303, 4294901760
    %3305 = vmatpush1.msra.mxu0 %v3304
    %3306 = vmatprep.subr.mxu0 0.0
    %3307 = vmatpush2.msra.mxu0 0.0
    %3308 = vmatprep.subr.mxu0 0.0
    %3309 = vmatpush2.msra.mxu0 0.0
    %3310 = vmatprep.subr.mxu0 0.0
    %3311 = vmatpush2.msra.mxu0 0.0
    %3312 = vmatprep.subr.mxu0 0.0
    %3313 = vmatpush2.msra.mxu0 0.0
    %3314 = vmatprep.subr.mxu0 0.0
    %3315 = vmatpush2.msra.mxu0 0.0
    %3316 = vmatprep.subr.mxu0 0.0
    %3317 = vmatpush2.msra.mxu0 0.0
    %3318 = vmatprep.subr.mxu0 0.0
    %3319 = vmatpush2.msra.mxu0 0.0
    %3320 = vmatprep.subr.mxu0 0.0
    %3321 = vmatpush2.msra.mxu0 0.0
    %3322 = vmatprep.subr.mxu0 0.0
    %3323 = vmatpush2.msra.mxu0 0.0
    %3324 = vmatprep.subr.mxu0 0.0
    %3325 = vmatpush2.msra.mxu0 0.0
    %3326 = vmatprep.subr.mxu0 0.0
    %3327 = vmatpush2.msra.mxu0 0.0
    %3328 = vmatprep.subr.mxu0 0.0
    %3329 = vmatpush2.msra.mxu0 0.0
    %3330 = vmatprep.subr.mxu0 0.0
    %3331 = vmatpush2.msra.mxu0 0.0
    %3332 = vmatprep.subr.mxu0 0.0
    %3333 = vmatpush2.msra.mxu0 0.0
    %3334 = vmatprep.subr.mxu0 0.0
    %3335 = vmatpush2.msra.mxu0 0.0
    %3336 = vmatprep.subr.mxu0 0.0
    %3337 = vmatpush2.msra.mxu0 0.0
    %3338 = vmatprep.mubr.f32.mxu0 0.0
    %v3339 = vand.u32 %v3149, 4294901760
    %3340 = vmatmul.mubr.f32.gmra.mxu0 %v3339
    %v3341 = vpop.f32.mrf.mxu0
    %v3342 = vadd.f32 %v3231, %v3341
    %v3343 = vpop.f32.mrf.mxu0
    %3344 = vdwg.mxu0
    %3345 = vmatprep.subr.mxu0 0.0
    %3346 = vmatpush1.msra.mxu0 0.0
    %3347 = vmatprep.subr.mxu0 0.0
    %3348 = vmatpush1.msra.mxu0 0.0
    %3349 = vmatprep.subr.mxu0 0.0
    %3350 = vmatpush1.msra.mxu0 0.0
    %3351 = vmatprep.subr.mxu0 0.0
    %3352 = vmatpush1.msra.mxu0 0.0
    %3353 = vmatprep.subr.mxu0 0.0
    %3354 = vmatpush1.msra.mxu0 0.0
    %3355 = vmatprep.subr.mxu0 0.0
    %3356 = vmatpush1.msra.mxu0 0.0
    %3357 = vmatprep.subr.mxu0 0.0
    %3358 = vmatpush1.msra.mxu0 0.0
    %3359 = vmatprep.subr.mxu0 0.0
    %3360 = vmatpush1.msra.mxu0 0.0
    %3361 = vmatprep.subr.mxu0 0.0
    %v3362 = vand.u32 %v2591, 4294901760
    %v3363 = vsub.f32 %v2591, %v3362
    %3364 = vmatpush1.msra.mxu0 %v3363
    %3365 = vmatprep.subr.mxu0 0.0
    %v3366 = vand.u32 %v2585, 4294901760
    %v3367 = vsub.f32 %v2585, %v3366
    %3368 = vmatpush1.msra.mxu0 %v3367
    %3369 = vmatprep.subr.mxu0 0.0
    %v3370 = vand.u32 %v2579, 4294901760
    %v3371 = vsub.f32 %v2579, %v3370
    %3372 = vmatpush1.msra.mxu0 %v3371
    %3373 = vmatprep.subr.mxu0 0.0
    %v3374 = vand.u32 %v2573, 4294901760
    %v3375 = vsub.f32 %v2573, %v3374
    %3376 = vmatpush1.msra.mxu0 %v3375
    %3377 = vmatprep.subr.mxu0 0.0
    %v3378 = vand.u32 %v2567, 4294901760
    %v3379 = vsub.f32 %v2567, %v3378
    %3380 = vmatpush1.msra.mxu0 %v3379
    %3381 = vmatprep.subr.mxu0 0.0
    %v3382 = vand.u32 %v2561, 4294901760
    %v3383 = vsub.f32 %v2561, %v3382
    %3384 = vmatpush1.msra.mxu0 %v3383
    %3385 = vmatprep.subr.mxu0 0.0
    %v3386 = vand.u32 %v2555, 4294901760
    %v3387 = vsub.f32 %v2555, %v3386
    %3388 = vmatpush1.msra.mxu0 %v3387
    %3389 = vmatprep.subr.mxu0 0.0
    %v3390 = vand.u32 %v2549, 4294901760
    %v3391 = vsub.f32 %v2549, %v3390
    %3392 = vmatpush1.msra.mxu0 %v3391
    %3393 = vmatprep.subr.mxu0 0.0
    %3394 = vmatpush2.msra.mxu0 0.0
    %3395 = vmatprep.subr.mxu0 0.0
    %3396 = vmatpush2.msra.mxu0 0.0
    %3397 = vmatprep.subr.mxu0 0.0
    %3398 = vmatpush2.msra.mxu0 0.0
    %3399 = vmatprep.subr.mxu0 0.0
    %3400 = vmatpush2.msra.mxu0 0.0
    %3401 = vmatprep.subr.mxu0 0.0
    %3402 = vmatpush2.msra.mxu0 0.0
    %3403 = vmatprep.subr.mxu0 0.0
    %3404 = vmatpush2.msra.mxu0 0.0
    %3405 = vmatprep.subr.mxu0 0.0
    %3406 = vmatpush2.msra.mxu0 0.0
    %3407 = vmatprep.subr.mxu0 0.0
    %3408 = vmatpush2.msra.mxu0 0.0
    %3409 = vmatprep.subr.mxu0 0.0
    %3410 = vmatpush2.msra.mxu0 0.0
    %3411 = vmatprep.subr.mxu0 0.0
    %3412 = vmatpush2.msra.mxu0 0.0
    %3413 = vmatprep.subr.mxu0 0.0
    %3414 = vmatpush2.msra.mxu0 0.0
    %3415 = vmatprep.subr.mxu0 0.0
    %3416 = vmatpush2.msra.mxu0 0.0
    %3417 = vmatprep.subr.mxu0 0.0
    %3418 = vmatpush2.msra.mxu0 0.0
    %3419 = vmatprep.subr.mxu0 0.0
    %3420 = vmatpush2.msra.mxu0 0.0
    %3421 = vmatprep.subr.mxu0 0.0
    %3422 = vmatpush2.msra.mxu0 0.0
    %3423 = vmatprep.subr.mxu0 0.0
    %3424 = vmatpush2.msra.mxu0 0.0
    %3425 = vmatprep.mubr.f32.mxu0 0.0
    %v3426 = vand.u32 %v3149, 4294901760
    %v3427 = vsub.f32 %v3149, %v3426
    %3428 = vmatmul.mubr.f32.gmra.mxu0 %v3427
    %v3429 = vpop.f32.mrf.mxu0
    %v3430 = vadd.f32 %v3342, %v3429
    %v3431 = vpop.f32.mrf.mxu0
    %3432 = vdwg.mxu0
    %3433 = vmatprep.subr.mxu0 0.0
    %3434 = vmatpush1.msra.mxu0 0.0
    %3435 = vmatprep.subr.mxu0 0.0
    %3436 = vmatpush1.msra.mxu0 0.0
    %3437 = vmatprep.subr.mxu0 0.0
    %3438 = vmatpush1.msra.mxu0 0.0
    %3439 = vmatprep.subr.mxu0 0.0
    %3440 = vmatpush1.msra.mxu0 0.0
    %3441 = vmatprep.subr.mxu0 0.0
    %3442 = vmatpush1.msra.mxu0 0.0
    %3443 = vmatprep.subr.mxu0 0.0
    %3444 = vmatpush1.msra.mxu0 0.0
    %3445 = vmatprep.subr.mxu0 0.0
    %3446 = vmatpush1.msra.mxu0 0.0
    %3447 = vmatprep.subr.mxu0 0.0
    %3448 = vmatpush1.msra.mxu0 0.0
    %3449 = vmatprep.subr.mxu0 0.0
    %v3450 = vand.u32 %v2591, 4294901760
    %3451 = vmatpush1.msra.mxu0 %v3450
    %3452 = vmatprep.subr.mxu0 0.0
    %v3453 = vand.u32 %v2585, 4294901760
    %3454 = vmatpush1.msra.mxu0 %v3453
    %3455 = vmatprep.subr.mxu0 0.0
    %v3456 = vand.u32 %v2579, 4294901760
    %3457 = vmatpush1.msra.mxu0 %v3456
    %3458 = vmatprep.subr.mxu0 0.0
    %v3459 = vand.u32 %v2573, 4294901760
    %3460 = vmatpush1.msra.mxu0 %v3459
    %3461 = vmatprep.subr.mxu0 0.0
    %v3462 = vand.u32 %v2567, 4294901760
    %3463 = vmatpush1.msra.mxu0 %v3462
    %3464 = vmatprep.subr.mxu0 0.0
    %v3465 = vand.u32 %v2561, 4294901760
    %3466 = vmatpush1.msra.mxu0 %v3465
    %3467 = vmatprep.subr.mxu0 0.0
    %v3468 = vand.u32 %v2555, 4294901760
    %3469 = vmatpush1.msra.mxu0 %v3468
    %3470 = vmatprep.subr.mxu0 0.0
    %v3471 = vand.u32 %v2549, 4294901760
    %3472 = vmatpush1.msra.mxu0 %v3471
    %3473 = vmatprep.subr.mxu0 0.0
    %3474 = vmatpush2.msra.mxu0 0.0
    %3475 = vmatprep.subr.mxu0 0.0
    %3476 = vmatpush2.msra.mxu0 0.0
    %3477 = vmatprep.subr.mxu0 0.0
    %3478 = vmatpush2.msra.mxu0 0.0
    %3479 = vmatprep.subr.mxu0 0.0
    %3480 = vmatpush2.msra.mxu0 0.0
    %3481 = vmatprep.subr.mxu0 0.0
    %3482 = vmatpush2.msra.mxu0 0.0
    %3483 = vmatprep.subr.mxu0 0.0
    %3484 = vmatpush2.msra.mxu0 0.0
    %3485 = vmatprep.subr.mxu0 0.0
    %3486 = vmatpush2.msra.mxu0 0.0
    %3487 = vmatprep.subr.mxu0 0.0
    %3488 = vmatpush2.msra.mxu0 0.0
    %3489 = vmatprep.subr.mxu0 0.0
    %3490 = vmatpush2.msra.mxu0 0.0
    %3491 = vmatprep.subr.mxu0 0.0
    %3492 = vmatpush2.msra.mxu0 0.0
    %3493 = vmatprep.subr.mxu0 0.0
    %3494 = vmatpush2.msra.mxu0 0.0
    %3495 = vmatprep.subr.mxu0 0.0
    %3496 = vmatpush2.msra.mxu0 0.0
    %3497 = vmatprep.subr.mxu0 0.0
    %3498 = vmatpush2.msra.mxu0 0.0
    %3499 = vmatprep.subr.mxu0 0.0
    %3500 = vmatpush2.msra.mxu0 0.0
    %3501 = vmatprep.subr.mxu0 0.0
    %3502 = vmatpush2.msra.mxu0 0.0
    %3503 = vmatprep.subr.mxu0 0.0
    %3504 = vmatpush2.msra.mxu0 0.0
    %3505 = vmatprep.mubr.f32.mxu0 0.0
    %v3506 = vand.u32 %v3149, 4294901760
    %v3507 = vsub.f32 %v3149, %v3506
    %v3508 = vand.u32 %v3507, 4294901760
    %3509 = vmatmul.mubr.f32.gmra.mxu0 %v3508
    %v3510 = vpop.f32.mrf.mxu0
    %v3511 = vadd.f32 %v3430, %v3510
    %v3512 = vpop.f32.mrf.mxu0
    %3513 = vdwg.mxu0
    %3514 = vmatprep.subr.mxu0 0.0
    %3515 = vmatpush1.msra.mxu0 0.0
    %3516 = vmatprep.subr.mxu0 0.0
    %3517 = vmatpush1.msra.mxu0 0.0
    %3518 = vmatprep.subr.mxu0 0.0
    %3519 = vmatpush1.msra.mxu0 0.0
    %3520 = vmatprep.subr.mxu0 0.0
    %3521 = vmatpush1.msra.mxu0 0.0
    %3522 = vmatprep.subr.mxu0 0.0
    %3523 = vmatpush1.msra.mxu0 0.0
    %3524 = vmatprep.subr.mxu0 0.0
    %3525 = vmatpush1.msra.mxu0 0.0
    %3526 = vmatprep.subr.mxu0 0.0
    %3527 = vmatpush1.msra.mxu0 0.0
    %3528 = vmatprep.subr.mxu0 0.0
    %3529 = vmatpush1.msra.mxu0 0.0
    %3530 = vmatprep.subr.mxu0 0.0
    %v3531 = vand.u32 %v2591, 4294901760
    %v3532 = vsub.f32 %v2591, %v3531
    %v3533 = vand.u32 %v3532, 4294901760
    %3534 = vmatpush1.msra.mxu0 %v3533
    %3535 = vmatprep.subr.mxu0 0.0
    %v3536 = vand.u32 %v2585, 4294901760
    %v3537 = vsub.f32 %v2585, %v3536
    %v3538 = vand.u32 %v3537, 4294901760
    %3539 = vmatpush1.msra.mxu0 %v3538
    %3540 = vmatprep.subr.mxu0 0.0
    %v3541 = vand.u32 %v2579, 4294901760
    %v3542 = vsub.f32 %v2579, %v3541
    %v3543 = vand.u32 %v3542, 4294901760
    %3544 = vmatpush1.msra.mxu0 %v3543
    %3545 = vmatprep.subr.mxu0 0.0
    %v3546 = vand.u32 %v2573, 4294901760
    %v3547 = vsub.f32 %v2573, %v3546
    %v3548 = vand.u32 %v3547, 4294901760
    %3549 = vmatpush1.msra.mxu0 %v3548
    %3550 = vmatprep.subr.mxu0 0.0
    %v3551 = vand.u32 %v2567, 4294901760
    %v3552 = vsub.f32 %v2567, %v3551
    %v3553 = vand.u32 %v3552, 4294901760
    %3554 = vmatpush1.msra.mxu0 %v3553
    %3555 = vmatprep.subr.mxu0 0.0
    %v3556 = vand.u32 %v2561, 4294901760
    %v3557 = vsub.f32 %v2561, %v3556
    %v3558 = vand.u32 %v3557, 4294901760
    %3559 = vmatpush1.msra.mxu0 %v3558
    %3560 = vmatprep.subr.mxu0 0.0
    %v3561 = vand.u32 %v2555, 4294901760
    %v3562 = vsub.f32 %v2555, %v3561
    %v3563 = vand.u32 %v3562, 4294901760
    %3564 = vmatpush1.msra.mxu0 %v3563
    %3565 = vmatprep.subr.mxu0 0.0
    %v3566 = vand.u32 %v2549, 4294901760
    %v3567 = vsub.f32 %v2549, %v3566
    %v3568 = vand.u32 %v3567, 4294901760
    %3569 = vmatpush1.msra.mxu0 %v3568
    %3570 = vmatprep.subr.mxu0 0.0
    %3571 = vmatpush2.msra.mxu0 0.0
    %3572 = vmatprep.subr.mxu0 0.0
    %3573 = vmatpush2.msra.mxu0 0.0
    %3574 = vmatprep.subr.mxu0 0.0
    %3575 = vmatpush2.msra.mxu0 0.0
    %3576 = vmatprep.subr.mxu0 0.0
    %3577 = vmatpush2.msra.mxu0 0.0
    %3578 = vmatprep.subr.mxu0 0.0
    %3579 = vmatpush2.msra.mxu0 0.0
    %3580 = vmatprep.subr.mxu0 0.0
    %3581 = vmatpush2.msra.mxu0 0.0
    %3582 = vmatprep.subr.mxu0 0.0
    %3583 = vmatpush2.msra.mxu0 0.0
    %3584 = vmatprep.subr.mxu0 0.0
    %3585 = vmatpush2.msra.mxu0 0.0
    %3586 = vmatprep.subr.mxu0 0.0
    %3587 = vmatpush2.msra.mxu0 0.0
    %3588 = vmatprep.subr.mxu0 0.0
    %3589 = vmatpush2.msra.mxu0 0.0
    %3590 = vmatprep.subr.mxu0 0.0
    %3591 = vmatpush2.msra.mxu0 0.0
    %3592 = vmatprep.subr.mxu0 0.0
    %3593 = vmatpush2.msra.mxu0 0.0
    %3594 = vmatprep.subr.mxu0 0.0
    %3595 = vmatpush2.msra.mxu0 0.0
    %3596 = vmatprep.subr.mxu0 0.0
    %3597 = vmatpush2.msra.mxu0 0.0
    %3598 = vmatprep.subr.mxu0 0.0
    %3599 = vmatpush2.msra.mxu0 0.0
    %3600 = vmatprep.subr.mxu0 0.0
    %3601 = vmatpush2.msra.mxu0 0.0
    %3602 = vmatprep.mubr.f32.mxu0 0.0
    %v3603 = vand.u32 %v3149, 4294901760
    %3604 = vmatmul.mubr.f32.gmra.mxu0 %v3603
    %v3605 = vpop.f32.mrf.mxu0
    %v3606 = vadd.f32 %v3511, %v3605
    %v3607 = vpop.f32.mrf.mxu0
    %3608 = vdwg.mxu0
    %3609 = vmatprep.subr.mxu0 0.0
    %3610 = vmatpush1.msra.mxu0 0.0
    %3611 = vmatprep.subr.mxu0 0.0
    %3612 = vmatpush1.msra.mxu0 0.0
    %3613 = vmatprep.subr.mxu0 0.0
    %3614 = vmatpush1.msra.mxu0 0.0
    %3615 = vmatprep.subr.mxu0 0.0
    %3616 = vmatpush1.msra.mxu0 0.0
    %3617 = vmatprep.subr.mxu0 0.0
    %3618 = vmatpush1.msra.mxu0 0.0
    %3619 = vmatprep.subr.mxu0 0.0
    %3620 = vmatpush1.msra.mxu0 0.0
    %3621 = vmatprep.subr.mxu0 0.0
    %3622 = vmatpush1.msra.mxu0 0.0
    %3623 = vmatprep.subr.mxu0 0.0
    %3624 = vmatpush1.msra.mxu0 0.0
    %3625 = vmatprep.subr.mxu0 0.0
    %v3626 = vand.u32 %v2591, 4294901760
    %3627 = vmatpush1.msra.mxu0 %v3626
    %3628 = vmatprep.subr.mxu0 0.0
    %v3629 = vand.u32 %v2585, 4294901760
    %3630 = vmatpush1.msra.mxu0 %v3629
    %3631 = vmatprep.subr.mxu0 0.0
    %v3632 = vand.u32 %v2579, 4294901760
    %3633 = vmatpush1.msra.mxu0 %v3632
    %3634 = vmatprep.subr.mxu0 0.0
    %v3635 = vand.u32 %v2573, 4294901760
    %3636 = vmatpush1.msra.mxu0 %v3635
    %3637 = vmatprep.subr.mxu0 0.0
    %v3638 = vand.u32 %v2567, 4294901760
    %3639 = vmatpush1.msra.mxu0 %v3638
    %3640 = vmatprep.subr.mxu0 0.0
    %v3641 = vand.u32 %v2561, 4294901760
    %3642 = vmatpush1.msra.mxu0 %v3641
    %3643 = vmatprep.subr.mxu0 0.0
    %v3644 = vand.u32 %v2555, 4294901760
    %3645 = vmatpush1.msra.mxu0 %v3644
    %3646 = vmatprep.subr.mxu0 0.0
    %v3647 = vand.u32 %v2549, 4294901760
    %3648 = vmatpush1.msra.mxu0 %v3647
    %3649 = vmatprep.subr.mxu0 0.0
    %3650 = vmatpush2.msra.mxu0 0.0
    %3651 = vmatprep.subr.mxu0 0.0
    %3652 = vmatpush2.msra.mxu0 0.0
    %3653 = vmatprep.subr.mxu0 0.0
    %3654 = vmatpush2.msra.mxu0 0.0
    %3655 = vmatprep.subr.mxu0 0.0
    %3656 = vmatpush2.msra.mxu0 0.0
    %3657 = vmatprep.subr.mxu0 0.0
    %3658 = vmatpush2.msra.mxu0 0.0
    %3659 = vmatprep.subr.mxu0 0.0
    %3660 = vmatpush2.msra.mxu0 0.0
    %3661 = vmatprep.subr.mxu0 0.0
    %3662 = vmatpush2.msra.mxu0 0.0
    %3663 = vmatprep.subr.mxu0 0.0
    %3664 = vmatpush2.msra.mxu0 0.0
    %3665 = vmatprep.subr.mxu0 0.0
    %3666 = vmatpush2.msra.mxu0 0.0
    %3667 = vmatprep.subr.mxu0 0.0
    %3668 = vmatpush2.msra.mxu0 0.0
    %3669 = vmatprep.subr.mxu0 0.0
    %3670 = vmatpush2.msra.mxu0 0.0
    %3671 = vmatprep.subr.mxu0 0.0
    %3672 = vmatpush2.msra.mxu0 0.0
    %3673 = vmatprep.subr.mxu0 0.0
    %3674 = vmatpush2.msra.mxu0 0.0
    %3675 = vmatprep.subr.mxu0 0.0
    %3676 = vmatpush2.msra.mxu0 0.0
    %3677 = vmatprep.subr.mxu0 0.0
    %3678 = vmatpush2.msra.mxu0 0.0
    %3679 = vmatprep.subr.mxu0 0.0
    %3680 = vmatpush2.msra.mxu0 0.0
    %3681 = vmatprep.mubr.f32.mxu0 0.0
    %v3682 = vand.u32 %v3149, 4294901760
    %3683 = vmatmul.mubr.f32.gmra.mxu0 %v3682
    %v3684 = vpop.f32.mrf.mxu0
    %v3685 = vadd.f32 %v3606, %v3684
    %v3686 = vpop.f32.mrf.mxu0
    %3687 = vdwg.mxu0
    %v3688 = vld [vmem:[#allocation7 + $0x130] sm:$0xff]
    %v3689 = vadd.f32 %v1713, %v3688
    %v3690 = vsel %vm1151, %v3689, -inf
    %3691 = vmax.xlane.f32.xlu0 %v3690
    %v3692 = vpop.xlane.xlu0 %3691
    %v3693 = vsub.f32 %v3689, %v3692
    %v3694 = vmul.f32 %v3693, 1.442695
    %v3695 = vpow.pop %v3694
    %v3697 = vsel %vm1151, %v3695, 0
    %3699 = vmatprep.subr.mxu0 0.0
    %3700 = vmatpush1.msra.mxu0 0.0
    %3701 = vmatprep.subr.mxu0 0.0
    %3702 = vmatpush1.msra.mxu0 0.0
    %3703 = vmatprep.subr.mxu0 0.0
    %3704 = vmatpush1.msra.mxu0 0.0
    %3705 = vmatprep.subr.mxu0 0.0
    %3706 = vmatpush1.msra.mxu0 0.0
    %3707 = vmatprep.subr.mxu0 0.0
    %3708 = vmatpush1.msra.mxu0 0.0
    %3709 = vmatprep.subr.mxu0 0.0
    %3710 = vmatpush1.msra.mxu0 0.0
    %3711 = vmatprep.subr.mxu0 0.0
    %3712 = vmatpush1.msra.mxu0 0.0
    %3713 = vmatprep.subr.mxu0 0.0
    %3714 = vmatpush1.msra.mxu0 0.0
    %3715 = vmatprep.subr.mxu0 0.0
    %v3716 = vand.u32 %v88, 4294901760
    %3717 = vmatpush1.msra.mxu0 %v3716
    %3718 = vmatprep.subr.mxu0 0.0
    %v3719 = vand.u32 %v87, 4294901760
    %3720 = vmatpush1.msra.mxu0 %v3719
    %3721 = vmatprep.subr.mxu0 0.0
    %v3722 = vand.u32 %v86, 4294901760
    %3723 = vmatpush1.msra.mxu0 %v3722
    %3724 = vmatprep.subr.mxu0 0.0
    %v3725 = vand.u32 %v85, 4294901760
    %3726 = vmatpush1.msra.mxu0 %v3725
    %3727 = vmatprep.subr.mxu0 0.0
    %v3728 = vand.u32 %v84, 4294901760
    %3729 = vmatpush1.msra.mxu0 %v3728
    %3730 = vmatprep.subr.mxu0 0.0
    %v3731 = vand.u32 %v83, 4294901760
    %3732 = vmatpush1.msra.mxu0 %v3731
    %3733 = vmatprep.subr.mxu0 0.0
    %v3734 = vand.u32 %v82, 4294901760
    %3735 = vmatpush1.msra.mxu0 %v3734
    %3736 = vmatprep.subr.mxu0 0.0
    %v3737 = vand.u32 %v81, 4294901760
    %3738 = vmatpush1.msra.mxu0 %v3737
    %3739 = vmatprep.subr.mxu0 0.0
    %3740 = vmatpush2.msra.mxu0 0.0
    %3741 = vmatprep.subr.mxu0 0.0
    %3742 = vmatpush2.msra.mxu0 0.0
    %3743 = vmatprep.subr.mxu0 0.0
    %3744 = vmatpush2.msra.mxu0 0.0
    %3745 = vmatprep.subr.mxu0 0.0
    %3746 = vmatpush2.msra.mxu0 0.0
    %3747 = vmatprep.subr.mxu0 0.0
    %3748 = vmatpush2.msra.mxu0 0.0
    %3749 = vmatprep.subr.mxu0 0.0
    %3750 = vmatpush2.msra.mxu0 0.0
    %3751 = vmatprep.subr.mxu0 0.0
    %3752 = vmatpush2.msra.mxu0 0.0
    %3753 = vmatprep.subr.mxu0 0.0
    %3754 = vmatpush2.msra.mxu0 0.0
    %3755 = vmatprep.subr.mxu0 0.0
    %3756 = vmatpush2.msra.mxu0 0.0
    %3757 = vmatprep.subr.mxu0 0.0
    %3758 = vmatpush2.msra.mxu0 0.0
    %3759 = vmatprep.subr.mxu0 0.0
    %3760 = vmatpush2.msra.mxu0 0.0
    %3761 = vmatprep.subr.mxu0 0.0
    %3762 = vmatpush2.msra.mxu0 0.0
    %3763 = vmatprep.subr.mxu0 0.0
    %3764 = vmatpush2.msra.mxu0 0.0
    %3765 = vmatprep.subr.mxu0 0.0
    %3766 = vmatpush2.msra.mxu0 0.0
    %3767 = vmatprep.subr.mxu0 0.0
    %3768 = vmatpush2.msra.mxu0 0.0
    %3769 = vmatprep.subr.mxu0 0.0
    %3770 = vmatpush2.msra.mxu0 0.0
    %3771 = vmatprep.mubr.f32.mxu0 0.0
    %v3772 = vand.u32 %v3697, 4294901760
    %v3773 = vsub.f32 %v3697, %v3772
    %v3774 = vand.u32 %v3773, 4294901760
    %v3775 = vsub.f32 %v3773, %v3774
    %v3776 = vand.u32 %v3775, 4294901760
    %3777 = vmatmul.mubr.f32.gmra.mxu0 %v3776
    %v3778 = vpop.f32.mrf.mxu0
    %v3779 = vadd.f32 0.0, %v3778
    %v3780 = vpop.f32.mrf.mxu0
    %3781 = vdwg.mxu0
    %3782 = vmatprep.subr.mxu0 0.0
    %3783 = vmatpush1.msra.mxu0 0.0
    %3784 = vmatprep.subr.mxu0 0.0
    %3785 = vmatpush1.msra.mxu0 0.0
    %3786 = vmatprep.subr.mxu0 0.0
    %3787 = vmatpush1.msra.mxu0 0.0
    %3788 = vmatprep.subr.mxu0 0.0
    %3789 = vmatpush1.msra.mxu0 0.0
    %3790 = vmatprep.subr.mxu0 0.0
    %3791 = vmatpush1.msra.mxu0 0.0
    %3792 = vmatprep.subr.mxu0 0.0
    %3793 = vmatpush1.msra.mxu0 0.0
    %3794 = vmatprep.subr.mxu0 0.0
    %3795 = vmatpush1.msra.mxu0 0.0
    %3796 = vmatprep.subr.mxu0 0.0
    %3797 = vmatpush1.msra.mxu0 0.0
    %3798 = vmatprep.subr.mxu0 0.0
    %v3799 = vand.u32 %v88, 4294901760
    %v3800 = vsub.f32 %v88, %v3799
    %v3801 = vand.u32 %v3800, 4294901760
    %v3802 = vsub.f32 %v3800, %v3801
    %v3803 = vand.u32 %v3802, 4294901760
    %3804 = vmatpush1.msra.mxu0 %v3803
    %3805 = vmatprep.subr.mxu0 0.0
    %v3806 = vand.u32 %v87, 4294901760
    %v3807 = vsub.f32 %v87, %v3806
    %v3808 = vand.u32 %v3807, 4294901760
    %v3809 = vsub.f32 %v3807, %v3808
    %v3810 = vand.u32 %v3809, 4294901760
    %3811 = vmatpush1.msra.mxu0 %v3810
    %3812 = vmatprep.subr.mxu0 0.0
    %v3813 = vand.u32 %v86, 4294901760
    %v3814 = vsub.f32 %v86, %v3813
    %v3815 = vand.u32 %v3814, 4294901760
    %v3816 = vsub.f32 %v3814, %v3815
    %v3817 = vand.u32 %v3816, 4294901760
    %3818 = vmatpush1.msra.mxu0 %v3817
    %3819 = vmatprep.subr.mxu0 0.0
    %v3820 = vand.u32 %v85, 4294901760
    %v3821 = vsub.f32 %v85, %v3820
    %v3822 = vand.u32 %v3821, 4294901760
    %v3823 = vsub.f32 %v3821, %v3822
    %v3824 = vand.u32 %v3823, 4294901760
    %3825 = vmatpush1.msra.mxu0 %v3824
    %3826 = vmatprep.subr.mxu0 0.0
    %v3827 = vand.u32 %v84, 4294901760
    %v3828 = vsub.f32 %v84, %v3827
    %v3829 = vand.u32 %v3828, 4294901760
    %v3830 = vsub.f32 %v3828, %v3829
    %v3831 = vand.u32 %v3830, 4294901760
    %3832 = vmatpush1.msra.mxu0 %v3831
    %3833 = vmatprep.subr.mxu0 0.0
    %v3834 = vand.u32 %v83, 4294901760
    %v3835 = vsub.f32 %v83, %v3834
    %v3836 = vand.u32 %v3835, 4294901760
    %v3837 = vsub.f32 %v3835, %v3836
    %v3838 = vand.u32 %v3837, 4294901760
    %3839 = vmatpush1.msra.mxu0 %v3838
    %3840 = vmatprep.subr.mxu0 0.0
    %v3841 = vand.u32 %v82, 4294901760
    %v3842 = vsub.f32 %v82, %v3841
    %v3843 = vand.u32 %v3842, 4294901760
    %v3844 = vsub.f32 %v3842, %v3843
    %v3845 = vand.u32 %v3844, 4294901760
    %3846 = vmatpush1.msra.mxu0 %v3845
    %3847 = vmatprep.subr.mxu0 0.0
    %v3848 = vand.u32 %v81, 4294901760
    %v3849 = vsub.f32 %v81, %v3848
    %v3850 = vand.u32 %v3849, 4294901760
    %v3851 = vsub.f32 %v3849, %v3850
    %v3852 = vand.u32 %v3851, 4294901760
    %3853 = vmatpush1.msra.mxu0 %v3852
    %3854 = vmatprep.subr.mxu0 0.0
    %3855 = vmatpush2.msra.mxu0 0.0
    %3856 = vmatprep.subr.mxu0 0.0
    %3857 = vmatpush2.msra.mxu0 0.0
    %3858 = vmatprep.subr.mxu0 0.0
    %3859 = vmatpush2.msra.mxu0 0.0
    %3860 = vmatprep.subr.mxu0 0.0
    %3861 = vmatpush2.msra.mxu0 0.0
    %3862 = vmatprep.subr.mxu0 0.0
    %3863 = vmatpush2.msra.mxu0 0.0
    %3864 = vmatprep.subr.mxu0 0.0
    %3865 = vmatpush2.msra.mxu0 0.0
    %3866 = vmatprep.subr.mxu0 0.0
    %3867 = vmatpush2.msra.mxu0 0.0
    %3868 = vmatprep.subr.mxu0 0.0
    %3869 = vmatpush2.msra.mxu0 0.0
    %3870 = vmatprep.subr.mxu0 0.0
    %3871 = vmatpush2.msra.mxu0 0.0
    %3872 = vmatprep.subr.mxu0 0.0
    %3873 = vmatpush2.msra.mxu0 0.0
    %3874 = vmatprep.subr.mxu0 0.0
    %3875 = vmatpush2.msra.mxu0 0.0
    %3876 = vmatprep.subr.mxu0 0.0
    %3877 = vmatpush2.msra.mxu0 0.0
    %3878 = vmatprep.subr.mxu0 0.0
    %3879 = vmatpush2.msra.mxu0 0.0
    %3880 = vmatprep.subr.mxu0 0.0
    %3881 = vmatpush2.msra.mxu0 0.0
    %3882 = vmatprep.subr.mxu0 0.0
    %3883 = vmatpush2.msra.mxu0 0.0
    %3884 = vmatprep.subr.mxu0 0.0
    %3885 = vmatpush2.msra.mxu0 0.0
    %3886 = vmatprep.mubr.f32.mxu0 0.0
    %v3887 = vand.u32 %v3697, 4294901760
    %3888 = vmatmul.mubr.f32.gmra.mxu0 %v3887
    %v3889 = vpop.f32.mrf.mxu0
    %v3890 = vadd.f32 %v3779, %v3889
    %v3891 = vpop.f32.mrf.mxu0
    %3892 = vdwg.mxu0
    %3893 = vmatprep.subr.mxu0 0.0
    %3894 = vmatpush1.msra.mxu0 0.0
    %3895 = vmatprep.subr.mxu0 0.0
    %3896 = vmatpush1.msra.mxu0 0.0
    %3897 = vmatprep.subr.mxu0 0.0
    %3898 = vmatpush1.msra.mxu0 0.0
    %3899 = vmatprep.subr.mxu0 0.0
    %3900 = vmatpush1.msra.mxu0 0.0
    %3901 = vmatprep.subr.mxu0 0.0
    %3902 = vmatpush1.msra.mxu0 0.0
    %3903 = vmatprep.subr.mxu0 0.0
    %3904 = vmatpush1.msra.mxu0 0.0
    %3905 = vmatprep.subr.mxu0 0.0
    %3906 = vmatpush1.msra.mxu0 0.0
    %3907 = vmatprep.subr.mxu0 0.0
    %3908 = vmatpush1.msra.mxu0 0.0
    %3909 = vmatprep.subr.mxu0 0.0
    %v3910 = vand.u32 %v88, 4294901760
    %v3911 = vsub.f32 %v88, %v3910
    %3912 = vmatpush1.msra.mxu0 %v3911
    %3913 = vmatprep.subr.mxu0 0.0
    %v3914 = vand.u32 %v87, 4294901760
    %v3915 = vsub.f32 %v87, %v3914
    %3916 = vmatpush1.msra.mxu0 %v3915
    %3917 = vmatprep.subr.mxu0 0.0
    %v3918 = vand.u32 %v86, 4294901760
    %v3919 = vsub.f32 %v86, %v3918
    %3920 = vmatpush1.msra.mxu0 %v3919
    %3921 = vmatprep.subr.mxu0 0.0
    %v3922 = vand.u32 %v85, 4294901760
    %v3923 = vsub.f32 %v85, %v3922
    %3924 = vmatpush1.msra.mxu0 %v3923
    %3925 = vmatprep.subr.mxu0 0.0
    %v3926 = vand.u32 %v84, 4294901760
    %v3927 = vsub.f32 %v84, %v3926
    %3928 = vmatpush1.msra.mxu0 %v3927
    %3929 = vmatprep.subr.mxu0 0.0
    %v3930 = vand.u32 %v83, 4294901760
    %v3931 = vsub.f32 %v83, %v3930
    %3932 = vmatpush1.msra.mxu0 %v3931
    %3933 = vmatprep.subr.mxu0 0.0
    %v3934 = vand.u32 %v82, 4294901760
    %v3935 = vsub.f32 %v82, %v3934
    %3936 = vmatpush1.msra.mxu0 %v3935
    %3937 = vmatprep.subr.mxu0 0.0
    %v3938 = vand.u32 %v81, 4294901760
    %v3939 = vsub.f32 %v81, %v3938
    %3940 = vmatpush1.msra.mxu0 %v3939
    %3941 = vmatprep.subr.mxu0 0.0
    %3942 = vmatpush2.msra.mxu0 0.0
    %3943 = vmatprep.subr.mxu0 0.0
    %3944 = vmatpush2.msra.mxu0 0.0
    %3945 = vmatprep.subr.mxu0 0.0
    %3946 = vmatpush2.msra.mxu0 0.0
    %3947 = vmatprep.subr.mxu0 0.0
    %3948 = vmatpush2.msra.mxu0 0.0
    %3949 = vmatprep.subr.mxu0 0.0
    %3950 = vmatpush2.msra.mxu0 0.0
    %3951 = vmatprep.subr.mxu0 0.0
    %3952 = vmatpush2.msra.mxu0 0.0
    %3953 = vmatprep.subr.mxu0 0.0
    %3954 = vmatpush2.msra.mxu0 0.0
    %3955 = vmatprep.subr.mxu0 0.0
    %3956 = vmatpush2.msra.mxu0 0.0
    %3957 = vmatprep.subr.mxu0 0.0
    %3958 = vmatpush2.msra.mxu0 0.0
    %3959 = vmatprep.subr.mxu0 0.0
    %3960 = vmatpush2.msra.mxu0 0.0
    %3961 = vmatprep.subr.mxu0 0.0
    %3962 = vmatpush2.msra.mxu0 0.0
    %3963 = vmatprep.subr.mxu0 0.0
    %3964 = vmatpush2.msra.mxu0 0.0
    %3965 = vmatprep.subr.mxu0 0.0
    %3966 = vmatpush2.msra.mxu0 0.0
    %3967 = vmatprep.subr.mxu0 0.0
    %3968 = vmatpush2.msra.mxu0 0.0
    %3969 = vmatprep.subr.mxu0 0.0
    %3970 = vmatpush2.msra.mxu0 0.0
    %3971 = vmatprep.subr.mxu0 0.0
    %3972 = vmatpush2.msra.mxu0 0.0
    %3973 = vmatprep.mubr.f32.mxu0 0.0
    %v3974 = vand.u32 %v3697, 4294901760
    %v3975 = vsub.f32 %v3697, %v3974
    %3976 = vmatmul.mubr.f32.gmra.mxu0 %v3975
    %v3977 = vpop.f32.mrf.mxu0
    %v3978 = vadd.f32 %v3890, %v3977
    %v3979 = vpop.f32.mrf.mxu0
    %3980 = vdwg.mxu0
    %3981 = vmatprep.subr.mxu0 0.0
    %3982 = vmatpush1.msra.mxu0 0.0
    %3983 = vmatprep.subr.mxu0 0.0
    %3984 = vmatpush1.msra.mxu0 0.0
    %3985 = vmatprep.subr.mxu0 0.0
    %3986 = vmatpush1.msra.mxu0 0.0
    %3987 = vmatprep.subr.mxu0 0.0
    %3988 = vmatpush1.msra.mxu0 0.0
    %3989 = vmatprep.subr.mxu0 0.0
    %3990 = vmatpush1.msra.mxu0 0.0
    %3991 = vmatprep.subr.mxu0 0.0
    %3992 = vmatpush1.msra.mxu0 0.0
    %3993 = vmatprep.subr.mxu0 0.0
    %3994 = vmatpush1.msra.mxu0 0.0
    %3995 = vmatprep.subr.mxu0 0.0
    %3996 = vmatpush1.msra.mxu0 0.0
    %3997 = vmatprep.subr.mxu0 0.0
    %v3998 = vand.u32 %v88, 4294901760
    %3999 = vmatpush1.msra.mxu0 %v3998
    %4000 = vmatprep.subr.mxu0 0.0
    %v4001 = vand.u32 %v87, 4294901760
    %4002 = vmatpush1.msra.mxu0 %v4001
    %4003 = vmatprep.subr.mxu0 0.0
    %v4004 = vand.u32 %v86, 4294901760
    %4005 = vmatpush1.msra.mxu0 %v4004
    %4006 = vmatprep.subr.mxu0 0.0
    %v4007 = vand.u32 %v85, 4294901760
    %4008 = vmatpush1.msra.mxu0 %v4007
    %4009 = vmatprep.subr.mxu0 0.0
    %v4010 = vand.u32 %v84, 4294901760
    %4011 = vmatpush1.msra.mxu0 %v4010
    %4012 = vmatprep.subr.mxu0 0.0
    %v4013 = vand.u32 %v83, 4294901760
    %4014 = vmatpush1.msra.mxu0 %v4013
    %4015 = vmatprep.subr.mxu0 0.0
    %v4016 = vand.u32 %v82, 4294901760
    %4017 = vmatpush1.msra.mxu0 %v4016
    %4018 = vmatprep.subr.mxu0 0.0
    %v4019 = vand.u32 %v81, 4294901760
    %4020 = vmatpush1.msra.mxu0 %v4019
    %4021 = vmatprep.subr.mxu0 0.0
    %4022 = vmatpush2.msra.mxu0 0.0
    %4023 = vmatprep.subr.mxu0 0.0
    %4024 = vmatpush2.msra.mxu0 0.0
    %4025 = vmatprep.subr.mxu0 0.0
    %4026 = vmatpush2.msra.mxu0 0.0
    %4027 = vmatprep.subr.mxu0 0.0
    %4028 = vmatpush2.msra.mxu0 0.0
    %4029 = vmatprep.subr.mxu0 0.0
    %4030 = vmatpush2.msra.mxu0 0.0
    %4031 = vmatprep.subr.mxu0 0.0
    %4032 = vmatpush2.msra.mxu0 0.0
    %4033 = vmatprep.subr.mxu0 0.0
    %4034 = vmatpush2.msra.mxu0 0.0
    %4035 = vmatprep.subr.mxu0 0.0
    %4036 = vmatpush2.msra.mxu0 0.0
    %4037 = vmatprep.subr.mxu0 0.0
    %4038 = vmatpush2.msra.mxu0 0.0
    %4039 = vmatprep.subr.mxu0 0.0
    %4040 = vmatpush2.msra.mxu0 0.0
    %4041 = vmatprep.subr.mxu0 0.0
    %4042 = vmatpush2.msra.mxu0 0.0
    %4043 = vmatprep.subr.mxu0 0.0
    %4044 = vmatpush2.msra.mxu0 0.0
    %4045 = vmatprep.subr.mxu0 0.0
    %4046 = vmatpush2.msra.mxu0 0.0
    %4047 = vmatprep.subr.mxu0 0.0
    %4048 = vmatpush2.msra.mxu0 0.0
    %4049 = vmatprep.subr.mxu0 0.0
    %4050 = vmatpush2.msra.mxu0 0.0
    %4051 = vmatprep.subr.mxu0 0.0
    %4052 = vmatpush2.msra.mxu0 0.0
    %4053 = vmatprep.mubr.f32.mxu0 0.0
    %v4054 = vand.u32 %v3697, 4294901760
    %v4055 = vsub.f32 %v3697, %v4054
    %v4056 = vand.u32 %v4055, 4294901760
    %4057 = vmatmul.mubr.f32.gmra.mxu0 %v4056
    %v4058 = vpop.f32.mrf.mxu0
    %v4059 = vadd.f32 %v3978, %v4058
    %v4060 = vpop.f32.mrf.mxu0
    %4061 = vdwg.mxu0
    %4062 = vmatprep.subr.mxu0 0.0
    %4063 = vmatpush1.msra.mxu0 0.0
    %4064 = vmatprep.subr.mxu0 0.0
    %4065 = vmatpush1.msra.mxu0 0.0
    %4066 = vmatprep.subr.mxu0 0.0
    %4067 = vmatpush1.msra.mxu0 0.0
    %4068 = vmatprep.subr.mxu0 0.0
    %4069 = vmatpush1.msra.mxu0 0.0
    %4070 = vmatprep.subr.mxu0 0.0
    %4071 = vmatpush1.msra.mxu0 0.0
    %4072 = vmatprep.subr.mxu0 0.0
    %4073 = vmatpush1.msra.mxu0 0.0
    %4074 = vmatprep.subr.mxu0 0.0
    %4075 = vmatpush1.msra.mxu0 0.0
    %4076 = vmatprep.subr.mxu0 0.0
    %4077 = vmatpush1.msra.mxu0 0.0
    %4078 = vmatprep.subr.mxu0 0.0
    %v4079 = vand.u32 %v88, 4294901760
    %v4080 = vsub.f32 %v88, %v4079
    %v4081 = vand.u32 %v4080, 4294901760
    %4082 = vmatpush1.msra.mxu0 %v4081
    %4083 = vmatprep.subr.mxu0 0.0
    %v4084 = vand.u32 %v87, 4294901760
    %v4085 = vsub.f32 %v87, %v4084
    %v4086 = vand.u32 %v4085, 4294901760
    %4087 = vmatpush1.msra.mxu0 %v4086
    %4088 = vmatprep.subr.mxu0 0.0
    %v4089 = vand.u32 %v86, 4294901760
    %v4090 = vsub.f32 %v86, %v4089
    %v4091 = vand.u32 %v4090, 4294901760
    %4092 = vmatpush1.msra.mxu0 %v4091
    %4093 = vmatprep.subr.mxu0 0.0
    %v4094 = vand.u32 %v85, 4294901760
    %v4095 = vsub.f32 %v85, %v4094
    %v4096 = vand.u32 %v4095, 4294901760
    %4097 = vmatpush1.msra.mxu0 %v4096
    %4098 = vmatprep.subr.mxu0 0.0
    %v4099 = vand.u32 %v84, 4294901760
    %v4100 = vsub.f32 %v84, %v4099
    %v4101 = vand.u32 %v4100, 4294901760
    %4102 = vmatpush1.msra.mxu0 %v4101
    %4103 = vmatprep.subr.mxu0 0.0
    %v4104 = vand.u32 %v83, 4294901760
    %v4105 = vsub.f32 %v83, %v4104
    %v4106 = vand.u32 %v4105, 4294901760
    %4107 = vmatpush1.msra.mxu0 %v4106
    %4108 = vmatprep.subr.mxu0 0.0
    %v4109 = vand.u32 %v82, 4294901760
    %v4110 = vsub.f32 %v82, %v4109
    %v4111 = vand.u32 %v4110, 4294901760
    %4112 = vmatpush1.msra.mxu0 %v4111
    %4113 = vmatprep.subr.mxu0 0.0
    %v4114 = vand.u32 %v81, 4294901760
    %v4115 = vsub.f32 %v81, %v4114
    %v4116 = vand.u32 %v4115, 4294901760
    %4117 = vmatpush1.msra.mxu0 %v4116
    %4118 = vmatprep.subr.mxu0 0.0
    %4119 = vmatpush2.msra.mxu0 0.0
    %4120 = vmatprep.subr.mxu0 0.0
    %4121 = vmatpush2.msra.mxu0 0.0
    %4122 = vmatprep.subr.mxu0 0.0
    %4123 = vmatpush2.msra.mxu0 0.0
    %4124 = vmatprep.subr.mxu0 0.0
    %4125 = vmatpush2.msra.mxu0 0.0
    %4126 = vmatprep.subr.mxu0 0.0
    %4127 = vmatpush2.msra.mxu0 0.0
    %4128 = vmatprep.subr.mxu0 0.0
    %4129 = vmatpush2.msra.mxu0 0.0
    %4130 = vmatprep.subr.mxu0 0.0
    %4131 = vmatpush2.msra.mxu0 0.0
    %4132 = vmatprep.subr.mxu0 0.0
    %4133 = vmatpush2.msra.mxu0 0.0
    %4134 = vmatprep.subr.mxu0 0.0
    %4135 = vmatpush2.msra.mxu0 0.0
    %4136 = vmatprep.subr.mxu0 0.0
    %4137 = vmatpush2.msra.mxu0 0.0
    %4138 = vmatprep.subr.mxu0 0.0
    %4139 = vmatpush2.msra.mxu0 0.0
    %4140 = vmatprep.subr.mxu0 0.0
    %4141 = vmatpush2.msra.mxu0 0.0
    %4142 = vmatprep.subr.mxu0 0.0
    %4143 = vmatpush2.msra.mxu0 0.0
    %4144 = vmatprep.subr.mxu0 0.0
    %4145 = vmatpush2.msra.mxu0 0.0
    %4146 = vmatprep.subr.mxu0 0.0
    %4147 = vmatpush2.msra.mxu0 0.0
    %4148 = vmatprep.subr.mxu0 0.0
    %4149 = vmatpush2.msra.mxu0 0.0
    %4150 = vmatprep.mubr.f32.mxu0 0.0
    %v4151 = vand.u32 %v3697, 4294901760
    %4152 = vmatmul.mubr.f32.gmra.mxu0 %v4151
    %v4153 = vpop.f32.mrf.mxu0
    %v4154 = vadd.f32 %v4059, %v4153
    %v4155 = vpop.f32.mrf.mxu0
    %4156 = vdwg.mxu0
    %4157 = vmatprep.subr.mxu0 0.0
    %4158 = vmatpush1.msra.mxu0 0.0
    %4159 = vmatprep.subr.mxu0 0.0
    %4160 = vmatpush1.msra.mxu0 0.0
    %4161 = vmatprep.subr.mxu0 0.0
    %4162 = vmatpush1.msra.mxu0 0.0
    %4163 = vmatprep.subr.mxu0 0.0
    %4164 = vmatpush1.msra.mxu0 0.0
    %4165 = vmatprep.subr.mxu0 0.0
    %4166 = vmatpush1.msra.mxu0 0.0
    %4167 = vmatprep.subr.mxu0 0.0
    %4168 = vmatpush1.msra.mxu0 0.0
    %4169 = vmatprep.subr.mxu0 0.0
    %4170 = vmatpush1.msra.mxu0 0.0
    %4171 = vmatprep.subr.mxu0 0.0
    %4172 = vmatpush1.msra.mxu0 0.0
    %4173 = vmatprep.subr.mxu0 0.0
    %v4174 = vand.u32 %v88, 4294901760
    %4175 = vmatpush1.msra.mxu0 %v4174
    %4176 = vmatprep.subr.mxu0 0.0
    %v4177 = vand.u32 %v87, 4294901760
    %4178 = vmatpush1.msra.mxu0 %v4177
    %4179 = vmatprep.subr.mxu0 0.0
    %v4180 = vand.u32 %v86, 4294901760
    %4181 = vmatpush1.msra.mxu0 %v4180
    %4182 = vmatprep.subr.mxu0 0.0
    %v4183 = vand.u32 %v85, 4294901760
    %4184 = vmatpush1.msra.mxu0 %v4183
    %4185 = vmatprep.subr.mxu0 0.0
    %v4186 = vand.u32 %v84, 4294901760
    %4187 = vmatpush1.msra.mxu0 %v4186
    %4188 = vmatprep.subr.mxu0 0.0
    %v4189 = vand.u32 %v83, 4294901760
    %4190 = vmatpush1.msra.mxu0 %v4189
    %4191 = vmatprep.subr.mxu0 0.0
    %v4192 = vand.u32 %v82, 4294901760
    %4193 = vmatpush1.msra.mxu0 %v4192
    %4194 = vmatprep.subr.mxu0 0.0
    %v4195 = vand.u32 %v81, 4294901760
    %4196 = vmatpush1.msra.mxu0 %v4195
    %4197 = vmatprep.subr.mxu0 0.0
    %4198 = vmatpush2.msra.mxu0 0.0
    %4199 = vmatprep.subr.mxu0 0.0
    %4200 = vmatpush2.msra.mxu0 0.0
    %4201 = vmatprep.subr.mxu0 0.0
    %4202 = vmatpush2.msra.mxu0 0.0
    %4203 = vmatprep.subr.mxu0 0.0
    %4204 = vmatpush2.msra.mxu0 0.0
    %4205 = vmatprep.subr.mxu0 0.0
    %4206 = vmatpush2.msra.mxu0 0.0
    %4207 = vmatprep.subr.mxu0 0.0
    %4208 = vmatpush2.msra.mxu0 0.0
    %4209 = vmatprep.subr.mxu0 0.0
    %4210 = vmatpush2.msra.mxu0 0.0
    %4211 = vmatprep.subr.mxu0 0.0
    %4212 = vmatpush2.msra.mxu0 0.0
    %4213 = vmatprep.subr.mxu0 0.0
    %4214 = vmatpush2.msra.mxu0 0.0
    %4215 = vmatprep.subr.mxu0 0.0
    %4216 = vmatpush2.msra.mxu0 0.0
    %4217 = vmatprep.subr.mxu0 0.0
    %4218 = vmatpush2.msra.mxu0 0.0
    %4219 = vmatprep.subr.mxu0 0.0
    %4220 = vmatpush2.msra.mxu0 0.0
    %4221 = vmatprep.subr.mxu0 0.0
    %4222 = vmatpush2.msra.mxu0 0.0
    %4223 = vmatprep.subr.mxu0 0.0
    %4224 = vmatpush2.msra.mxu0 0.0
    %4225 = vmatprep.subr.mxu0 0.0
    %4226 = vmatpush2.msra.mxu0 0.0
    %4227 = vmatprep.subr.mxu0 0.0
    %4228 = vmatpush2.msra.mxu0 0.0
    %4229 = vmatprep.mubr.f32.mxu0 0.0
    %v4230 = vand.u32 %v3697, 4294901760
    %4231 = vmatmul.mubr.f32.gmra.mxu0 %v4230
    %v4232 = vpop.f32.mrf.mxu0
    %v4233 = vadd.f32 %v4154, %v4232
    %v4234 = vpop.f32.mrf.mxu0
    %4235 = vdwg.mxu0
    %v4236 = vrcp.pop %v4233
    %v4237 = vmul.f32 %v3695, %v4236
    %v4239 = vsel %vm1151, %v4237, 0
    %4241 = vmatprep.subr.mxu0 0.0
    %4242 = vmatpush1.msra.mxu0 0.0
    %4243 = vmatprep.subr.mxu0 0.0
    %4244 = vmatpush1.msra.mxu0 0.0
    %4245 = vmatprep.subr.mxu0 0.0
    %4246 = vmatpush1.msra.mxu0 0.0
    %4247 = vmatprep.subr.mxu0 0.0
    %4248 = vmatpush1.msra.mxu0 0.0
    %4249 = vmatprep.subr.mxu0 0.0
    %4250 = vmatpush1.msra.mxu0 0.0
    %4251 = vmatprep.subr.mxu0 0.0
    %4252 = vmatpush1.msra.mxu0 0.0
    %4253 = vmatprep.subr.mxu0 0.0
    %4254 = vmatpush1.msra.mxu0 0.0
    %4255 = vmatprep.subr.mxu0 0.0
    %4256 = vmatpush1.msra.mxu0 0.0
    %4257 = vmatprep.subr.mxu0 0.0
    %v4258 = vand.u32 %v2591, 4294901760
    %4259 = vmatpush1.msra.mxu0 %v4258
    %4260 = vmatprep.subr.mxu0 0.0
    %v4261 = vand.u32 %v2585, 4294901760
    %4262 = vmatpush1.msra.mxu0 %v4261
    %4263 = vmatprep.subr.mxu0 0.0
    %v4264 = vand.u32 %v2579, 4294901760
    %4265 = vmatpush1.msra.mxu0 %v4264
    %4266 = vmatprep.subr.mxu0 0.0
    %v4267 = vand.u32 %v2573, 4294901760
    %4268 = vmatpush1.msra.mxu0 %v4267
    %4269 = vmatprep.subr.mxu0 0.0
    %v4270 = vand.u32 %v2567, 4294901760
    %4271 = vmatpush1.msra.mxu0 %v4270
    %4272 = vmatprep.subr.mxu0 0.0
    %v4273 = vand.u32 %v2561, 4294901760
    %4274 = vmatpush1.msra.mxu0 %v4273
    %4275 = vmatprep.subr.mxu0 0.0
    %v4276 = vand.u32 %v2555, 4294901760
    %4277 = vmatpush1.msra.mxu0 %v4276
    %4278 = vmatprep.subr.mxu0 0.0
    %v4279 = vand.u32 %v2549, 4294901760
    %4280 = vmatpush1.msra.mxu0 %v4279
    %4281 = vmatprep.subr.mxu0 0.0
    %4282 = vmatpush2.msra.mxu0 0.0
    %4283 = vmatprep.subr.mxu0 0.0
    %4284 = vmatpush2.msra.mxu0 0.0
    %4285 = vmatprep.subr.mxu0 0.0
    %4286 = vmatpush2.msra.mxu0 0.0
    %4287 = vmatprep.subr.mxu0 0.0
    %4288 = vmatpush2.msra.mxu0 0.0
    %4289 = vmatprep.subr.mxu0 0.0
    %4290 = vmatpush2.msra.mxu0 0.0
    %4291 = vmatprep.subr.mxu0 0.0
    %4292 = vmatpush2.msra.mxu0 0.0
    %4293 = vmatprep.subr.mxu0 0.0
    %4294 = vmatpush2.msra.mxu0 0.0
    %4295 = vmatprep.subr.mxu0 0.0
    %4296 = vmatpush2.msra.mxu0 0.0
    %4297 = vmatprep.subr.mxu0 0.0
    %4298 = vmatpush2.msra.mxu0 0.0
    %4299 = vmatprep.subr.mxu0 0.0
    %4300 = vmatpush2.msra.mxu0 0.0
    %4301 = vmatprep.subr.mxu0 0.0
    %4302 = vmatpush2.msra.mxu0 0.0
    %4303 = vmatprep.subr.mxu0 0.0
    %4304 = vmatpush2.msra.mxu0 0.0
    %4305 = vmatprep.subr.mxu0 0.0
    %4306 = vmatpush2.msra.mxu0 0.0
    %4307 = vmatprep.subr.mxu0 0.0
    %4308 = vmatpush2.msra.mxu0 0.0
    %4309 = vmatprep.subr.mxu0 0.0
    %4310 = vmatpush2.msra.mxu0 0.0
    %4311 = vmatprep.subr.mxu0 0.0
    %4312 = vmatpush2.msra.mxu0 0.0
    %4313 = vmatprep.mubr.f32.mxu0 0.0
    %v4314 = vand.u32 %v4239, 4294901760
    %v4315 = vsub.f32 %v4239, %v4314
    %v4316 = vand.u32 %v4315, 4294901760
    %v4317 = vsub.f32 %v4315, %v4316
    %v4318 = vand.u32 %v4317, 4294901760
    %4319 = vmatmul.mubr.f32.gmra.mxu0 %v4318
    %v4320 = vpop.f32.mrf.mxu0
    %v4321 = vadd.f32 %v3147, %v4320
    %v4322 = vpop.f32.mrf.mxu0
    %4323 = vdwg.mxu0
    %4324 = vmatprep.subr.mxu0 0.0
    %4325 = vmatpush1.msra.mxu0 0.0
    %4326 = vmatprep.subr.mxu0 0.0
    %4327 = vmatpush1.msra.mxu0 0.0
    %4328 = vmatprep.subr.mxu0 0.0
    %4329 = vmatpush1.msra.mxu0 0.0
    %4330 = vmatprep.subr.mxu0 0.0
    %4331 = vmatpush1.msra.mxu0 0.0
    %4332 = vmatprep.subr.mxu0 0.0
    %4333 = vmatpush1.msra.mxu0 0.0
    %4334 = vmatprep.subr.mxu0 0.0
    %4335 = vmatpush1.msra.mxu0 0.0
    %4336 = vmatprep.subr.mxu0 0.0
    %4337 = vmatpush1.msra.mxu0 0.0
    %4338 = vmatprep.subr.mxu0 0.0
    %4339 = vmatpush1.msra.mxu0 0.0
    %4340 = vmatprep.subr.mxu0 0.0
    %v4341 = vand.u32 %v2591, 4294901760
    %v4342 = vsub.f32 %v2591, %v4341
    %v4343 = vand.u32 %v4342, 4294901760
    %v4344 = vsub.f32 %v4342, %v4343
    %v4345 = vand.u32 %v4344, 4294901760
    %4346 = vmatpush1.msra.mxu0 %v4345
    %4347 = vmatprep.subr.mxu0 0.0
    %v4348 = vand.u32 %v2585, 4294901760
    %v4349 = vsub.f32 %v2585, %v4348
    %v4350 = vand.u32 %v4349, 4294901760
    %v4351 = vsub.f32 %v4349, %v4350
    %v4352 = vand.u32 %v4351, 4294901760
    %4353 = vmatpush1.msra.mxu0 %v4352
    %4354 = vmatprep.subr.mxu0 0.0
    %v4355 = vand.u32 %v2579, 4294901760
    %v4356 = vsub.f32 %v2579, %v4355
    %v4357 = vand.u32 %v4356, 4294901760
    %v4358 = vsub.f32 %v4356, %v4357
    %v4359 = vand.u32 %v4358, 4294901760
    %4360 = vmatpush1.msra.mxu0 %v4359
    %4361 = vmatprep.subr.mxu0 0.0
    %v4362 = vand.u32 %v2573, 4294901760
    %v4363 = vsub.f32 %v2573, %v4362
    %v4364 = vand.u32 %v4363, 4294901760
    %v4365 = vsub.f32 %v4363, %v4364
    %v4366 = vand.u32 %v4365, 4294901760
    %4367 = vmatpush1.msra.mxu0 %v4366
    %4368 = vmatprep.subr.mxu0 0.0
    %v4369 = vand.u32 %v2567, 4294901760
    %v4370 = vsub.f32 %v2567, %v4369
    %v4371 = vand.u32 %v4370, 4294901760
    %v4372 = vsub.f32 %v4370, %v4371
    %v4373 = vand.u32 %v4372, 4294901760
    %4374 = vmatpush1.msra.mxu0 %v4373
    %4375 = vmatprep.subr.mxu0 0.0
    %v4376 = vand.u32 %v2561, 4294901760
    %v4377 = vsub.f32 %v2561, %v4376
    %v4378 = vand.u32 %v4377, 4294901760
    %v4379 = vsub.f32 %v4377, %v4378
    %v4380 = vand.u32 %v4379, 4294901760
    %4381 = vmatpush1.msra.mxu0 %v4380
    %4382 = vmatprep.subr.mxu0 0.0
    %v4383 = vand.u32 %v2555, 4294901760
    %v4384 = vsub.f32 %v2555, %v4383
    %v4385 = vand.u32 %v4384, 4294901760
    %v4386 = vsub.f32 %v4384, %v4385
    %v4387 = vand.u32 %v4386, 4294901760
    %4388 = vmatpush1.msra.mxu0 %v4387
    %4389 = vmatprep.subr.mxu0 0.0
    %v4390 = vand.u32 %v2549, 4294901760
    %v4391 = vsub.f32 %v2549, %v4390
    %v4392 = vand.u32 %v4391, 4294901760
    %v4393 = vsub.f32 %v4391, %v4392
    %v4394 = vand.u32 %v4393, 4294901760
    %4395 = vmatpush1.msra.mxu0 %v4394
    %4396 = vmatprep.subr.mxu0 0.0
    %4397 = vmatpush2.msra.mxu0 0.0
    %4398 = vmatprep.subr.mxu0 0.0
    %4399 = vmatpush2.msra.mxu0 0.0
    %4400 = vmatprep.subr.mxu0 0.0
    %4401 = vmatpush2.msra.mxu0 0.0
    %4402 = vmatprep.subr.mxu0 0.0
    %4403 = vmatpush2.msra.mxu0 0.0
    %4404 = vmatprep.subr.mxu0 0.0
    %4405 = vmatpush2.msra.mxu0 0.0
    %4406 = vmatprep.subr.mxu0 0.0
    %4407 = vmatpush2.msra.mxu0 0.0
    %4408 = vmatprep.subr.mxu0 0.0
    %4409 = vmatpush2.msra.mxu0 0.0
    %4410 = vmatprep.subr.mxu0 0.0
    %4411 = vmatpush2.msra.mxu0 0.0
    %4412 = vmatprep.subr.mxu0 0.0
    %4413 = vmatpush2.msra.mxu0 0.0
    %4414 = vmatprep.subr.mxu0 0.0
    %4415 = vmatpush2.msra.mxu0 0.0
    %4416 = vmatprep.subr.mxu0 0.0
    %4417 = vmatpush2.msra.mxu0 0.0
    %4418 = vmatprep.subr.mxu0 0.0
    %4419 = vmatpush2.msra.mxu0 0.0
    %4420 = vmatprep.subr.mxu0 0.0
    %4421 = vmatpush2.msra.mxu0 0.0
    %4422 = vmatprep.subr.mxu0 0.0
    %4423 = vmatpush2.msra.mxu0 0.0
    %4424 = vmatprep.subr.mxu0 0.0
    %4425 = vmatpush2.msra.mxu0 0.0
    %4426 = vmatprep.subr.mxu0 0.0
    %4427 = vmatpush2.msra.mxu0 0.0
    %4428 = vmatprep.mubr.f32.mxu0 0.0
    %v4429 = vand.u32 %v4239, 4294901760
    %4430 = vmatmul.mubr.f32.gmra.mxu0 %v4429
    %v4431 = vpop.f32.mrf.mxu0
    %v4432 = vadd.f32 %v4321, %v4431
    %v4433 = vpop.f32.mrf.mxu0
    %4434 = vdwg.mxu0
    %4435 = vmatprep.subr.mxu0 0.0
    %4436 = vmatpush1.msra.mxu0 0.0
    %4437 = vmatprep.subr.mxu0 0.0
    %4438 = vmatpush1.msra.mxu0 0.0
    %4439 = vmatprep.subr.mxu0 0.0
    %4440 = vmatpush1.msra.mxu0 0.0
    %4441 = vmatprep.subr.mxu0 0.0
    %4442 = vmatpush1.msra.mxu0 0.0
    %4443 = vmatprep.subr.mxu0 0.0
    %4444 = vmatpush1.msra.mxu0 0.0
    %4445 = vmatprep.subr.mxu0 0.0
    %4446 = vmatpush1.msra.mxu0 0.0
    %4447 = vmatprep.subr.mxu0 0.0
    %4448 = vmatpush1.msra.mxu0 0.0
    %4449 = vmatprep.subr.mxu0 0.0
    %4450 = vmatpush1.msra.mxu0 0.0
    %4451 = vmatprep.subr.mxu0 0.0
    %v4452 = vand.u32 %v2591, 4294901760
    %v4453 = vsub.f32 %v2591, %v4452
    %4454 = vmatpush1.msra.mxu0 %v4453
    %4455 = vmatprep.subr.mxu0 0.0
    %v4456 = vand.u32 %v2585, 4294901760
    %v4457 = vsub.f32 %v2585, %v4456
    %4458 = vmatpush1.msra.mxu0 %v4457
    %4459 = vmatprep.subr.mxu0 0.0
    %v4460 = vand.u32 %v2579, 4294901760
    %v4461 = vsub.f32 %v2579, %v4460
    %4462 = vmatpush1.msra.mxu0 %v4461
    %4463 = vmatprep.subr.mxu0 0.0
    %v4464 = vand.u32 %v2573, 4294901760
    %v4465 = vsub.f32 %v2573, %v4464
    %4466 = vmatpush1.msra.mxu0 %v4465
    %4467 = vmatprep.subr.mxu0 0.0
    %v4468 = vand.u32 %v2567, 4294901760
    %v4469 = vsub.f32 %v2567, %v4468
    %4470 = vmatpush1.msra.mxu0 %v4469
    %4471 = vmatprep.subr.mxu0 0.0
    %v4472 = vand.u32 %v2561, 4294901760
    %v4473 = vsub.f32 %v2561, %v4472
    %4474 = vmatpush1.msra.mxu0 %v4473
    %4475 = vmatprep.subr.mxu0 0.0
    %v4476 = vand.u32 %v2555, 4294901760
    %v4477 = vsub.f32 %v2555, %v4476
    %4478 = vmatpush1.msra.mxu0 %v4477
    %4479 = vmatprep.subr.mxu0 0.0
    %v4480 = vand.u32 %v2549, 4294901760
    %v4481 = vsub.f32 %v2549, %v4480
    %4482 = vmatpush1.msra.mxu0 %v4481
    %4483 = vmatprep.subr.mxu0 0.0
    %4484 = vmatpush2.msra.mxu0 0.0
    %4485 = vmatprep.subr.mxu0 0.0
    %4486 = vmatpush2.msra.mxu0 0.0
    %4487 = vmatprep.subr.mxu0 0.0
    %4488 = vmatpush2.msra.mxu0 0.0
    %4489 = vmatprep.subr.mxu0 0.0
    %4490 = vmatpush2.msra.mxu0 0.0
    %4491 = vmatprep.subr.mxu0 0.0
    %4492 = vmatpush2.msra.mxu0 0.0
    %4493 = vmatprep.subr.mxu0 0.0
    %4494 = vmatpush2.msra.mxu0 0.0
    %4495 = vmatprep.subr.mxu0 0.0
    %4496 = vmatpush2.msra.mxu0 0.0
    %4497 = vmatprep.subr.mxu0 0.0
    %4498 = vmatpush2.msra.mxu0 0.0
    %4499 = vmatprep.subr.mxu0 0.0
    %4500 = vmatpush2.msra.mxu0 0.0
    %4501 = vmatprep.subr.mxu0 0.0
    %4502 = vmatpush2.msra.mxu0 0.0
    %4503 = vmatprep.subr.mxu0 0.0
    %4504 = vmatpush2.msra.mxu0 0.0
    %4505 = vmatprep.subr.mxu0 0.0
    %4506 = vmatpush2.msra.mxu0 0.0
    %4507 = vmatprep.subr.mxu0 0.0
    %4508 = vmatpush2.msra.mxu0 0.0
    %4509 = vmatprep.subr.mxu0 0.0
    %4510 = vmatpush2.msra.mxu0 0.0
    %4511 = vmatprep.subr.mxu0 0.0
    %4512 = vmatpush2.msra.mxu0 0.0
    %4513 = vmatprep.subr.mxu0 0.0
    %4514 = vmatpush2.msra.mxu0 0.0
    %4515 = vmatprep.mubr.f32.mxu0 0.0
    %v4516 = vand.u32 %v4239, 4294901760
    %v4517 = vsub.f32 %v4239, %v4516
    %4518 = vmatmul.mubr.f32.gmra.mxu0 %v4517
    %v4519 = vpop.f32.mrf.mxu0
    %v4520 = vadd.f32 %v4432, %v4519
    %v4521 = vpop.f32.mrf.mxu0
    %4522 = vdwg.mxu0
    %4523 = vmatprep.subr.mxu0 0.0
    %4524 = vmatpush1.msra.mxu0 0.0
    %4525 = vmatprep.subr.mxu0 0.0
    %4526 = vmatpush1.msra.mxu0 0.0
    %4527 = vmatprep.subr.mxu0 0.0
    %4528 = vmatpush1.msra.mxu0 0.0
    %4529 = vmatprep.subr.mxu0 0.0
    %4530 = vmatpush1.msra.mxu0 0.0
    %4531 = vmatprep.subr.mxu0 0.0
    %4532 = vmatpush1.msra.mxu0 0.0
    %4533 = vmatprep.subr.mxu0 0.0
    %4534 = vmatpush1.msra.mxu0 0.0
    %4535 = vmatprep.subr.mxu0 0.0
    %4536 = vmatpush1.msra.mxu0 0.0
    %4537 = vmatprep.subr.mxu0 0.0
    %4538 = vmatpush1.msra.mxu0 0.0
    %4539 = vmatprep.subr.mxu0 0.0
    %v4540 = vand.u32 %v2591, 4294901760
    %4541 = vmatpush1.msra.mxu0 %v4540
    %4542 = vmatprep.subr.mxu0 0.0
    %v4543 = vand.u32 %v2585, 4294901760
    %4544 = vmatpush1.msra.mxu0 %v4543
    %4545 = vmatprep.subr.mxu0 0.0
    %v4546 = vand.u32 %v2579, 4294901760
    %4547 = vmatpush1.msra.mxu0 %v4546
    %4548 = vmatprep.subr.mxu0 0.0
    %v4549 = vand.u32 %v2573, 4294901760
    %4550 = vmatpush1.msra.mxu0 %v4549
    %4551 = vmatprep.subr.mxu0 0.0
    %v4552 = vand.u32 %v2567, 4294901760
    %4553 = vmatpush1.msra.mxu0 %v4552
    %4554 = vmatprep.subr.mxu0 0.0
    %v4555 = vand.u32 %v2561, 4294901760
    %4556 = vmatpush1.msra.mxu0 %v4555
    %4557 = vmatprep.subr.mxu0 0.0
    %v4558 = vand.u32 %v2555, 4294901760
    %4559 = vmatpush1.msra.mxu0 %v4558
    %4560 = vmatprep.subr.mxu0 0.0
    %v4561 = vand.u32 %v2549, 4294901760
    %4562 = vmatpush1.msra.mxu0 %v4561
    %4563 = vmatprep.subr.mxu0 0.0
    %4564 = vmatpush2.msra.mxu0 0.0
    %4565 = vmatprep.subr.mxu0 0.0
    %4566 = vmatpush2.msra.mxu0 0.0
    %4567 = vmatprep.subr.mxu0 0.0
    %4568 = vmatpush2.msra.mxu0 0.0
    %4569 = vmatprep.subr.mxu0 0.0
    %4570 = vmatpush2.msra.mxu0 0.0
    %4571 = vmatprep.subr.mxu0 0.0
    %4572 = vmatpush2.msra.mxu0 0.0
    %4573 = vmatprep.subr.mxu0 0.0
    %4574 = vmatpush2.msra.mxu0 0.0
    %4575 = vmatprep.subr.mxu0 0.0
    %4576 = vmatpush2.msra.mxu0 0.0
    %4577 = vmatprep.subr.mxu0 0.0
    %4578 = vmatpush2.msra.mxu0 0.0
    %4579 = vmatprep.subr.mxu0 0.0
    %4580 = vmatpush2.msra.mxu0 0.0
    %4581 = vmatprep.subr.mxu0 0.0
    %4582 = vmatpush2.msra.mxu0 0.0
    %4583 = vmatprep.subr.mxu0 0.0
    %4584 = vmatpush2.msra.mxu0 0.0
    %4585 = vmatprep.subr.mxu0 0.0
    %4586 = vmatpush2.msra.mxu0 0.0
    %4587 = vmatprep.subr.mxu0 0.0
    %4588 = vmatpush2.msra.mxu0 0.0
    %4589 = vmatprep.subr.mxu0 0.0
    %4590 = vmatpush2.msra.mxu0 0.0
    %4591 = vmatprep.subr.mxu0 0.0
    %4592 = vmatpush2.msra.mxu0 0.0
    %4593 = vmatprep.subr.mxu0 0.0
    %4594 = vmatpush2.msra.mxu0 0.0
    %4595 = vmatprep.mubr.f32.mxu0 0.0
    %v4596 = vand.u32 %v4239, 4294901760
    %v4597 = vsub.f32 %v4239, %v4596
    %v4598 = vand.u32 %v4597, 4294901760
    %4599 = vmatmul.mubr.f32.gmra.mxu0 %v4598
    %v4600 = vpop.f32.mrf.mxu0
    %v4601 = vadd.f32 %v4520, %v4600
    %v4602 = vpop.f32.mrf.mxu0
    %4603 = vdwg.mxu0
    %4604 = vmatprep.subr.mxu0 0.0
    %4605 = vmatpush1.msra.mxu0 0.0
    %4606 = vmatprep.subr.mxu0 0.0
    %4607 = vmatpush1.msra.mxu0 0.0
    %4608 = vmatprep.subr.mxu0 0.0
    %4609 = vmatpush1.msra.mxu0 0.0
    %4610 = vmatprep.subr.mxu0 0.0
    %4611 = vmatpush1.msra.mxu0 0.0
    %4612 = vmatprep.subr.mxu0 0.0
    %4613 = vmatpush1.msra.mxu0 0.0
    %4614 = vmatprep.subr.mxu0 0.0
    %4615 = vmatpush1.msra.mxu0 0.0
    %4616 = vmatprep.subr.mxu0 0.0
    %4617 = vmatpush1.msra.mxu0 0.0
    %4618 = vmatprep.subr.mxu0 0.0
    %4619 = vmatpush1.msra.mxu0 0.0
    %4620 = vmatprep.subr.mxu0 0.0
    %v4621 = vand.u32 %v2591, 4294901760
    %v4622 = vsub.f32 %v2591, %v4621
    %v4623 = vand.u32 %v4622, 4294901760
    %4624 = vmatpush1.msra.mxu0 %v4623
    %4625 = vmatprep.subr.mxu0 0.0
    %v4626 = vand.u32 %v2585, 4294901760
    %v4627 = vsub.f32 %v2585, %v4626
    %v4628 = vand.u32 %v4627, 4294901760
    %4629 = vmatpush1.msra.mxu0 %v4628
    %4630 = vmatprep.subr.mxu0 0.0
    %v4631 = vand.u32 %v2579, 4294901760
    %v4632 = vsub.f32 %v2579, %v4631
    %v4633 = vand.u32 %v4632, 4294901760
    %4634 = vmatpush1.msra.mxu0 %v4633
    %4635 = vmatprep.subr.mxu0 0.0
    %v4636 = vand.u32 %v2573, 4294901760
    %v4637 = vsub.f32 %v2573, %v4636
    %v4638 = vand.u32 %v4637, 4294901760
    %4639 = vmatpush1.msra.mxu0 %v4638
    %4640 = vmatprep.subr.mxu0 0.0
    %v4641 = vand.u32 %v2567, 4294901760
    %v4642 = vsub.f32 %v2567, %v4641
    %v4643 = vand.u32 %v4642, 4294901760
    %4644 = vmatpush1.msra.mxu0 %v4643
    %4645 = vmatprep.subr.mxu0 0.0
    %v4646 = vand.u32 %v2561, 4294901760
    %v4647 = vsub.f32 %v2561, %v4646
    %v4648 = vand.u32 %v4647, 4294901760
    %4649 = vmatpush1.msra.mxu0 %v4648
    %4650 = vmatprep.subr.mxu0 0.0
    %v4651 = vand.u32 %v2555, 4294901760
    %v4652 = vsub.f32 %v2555, %v4651
    %v4653 = vand.u32 %v4652, 4294901760
    %4654 = vmatpush1.msra.mxu0 %v4653
    %4655 = vmatprep.subr.mxu0 0.0
    %v4656 = vand.u32 %v2549, 4294901760
    %v4657 = vsub.f32 %v2549, %v4656
    %v4658 = vand.u32 %v4657, 4294901760
    %4659 = vmatpush1.msra.mxu0 %v4658
    %4660 = vmatprep.subr.mxu0 0.0
    %4661 = vmatpush2.msra.mxu0 0.0
    %4662 = vmatprep.subr.mxu0 0.0
    %4663 = vmatpush2.msra.mxu0 0.0
    %4664 = vmatprep.subr.mxu0 0.0
    %4665 = vmatpush2.msra.mxu0 0.0
    %4666 = vmatprep.subr.mxu0 0.0
    %4667 = vmatpush2.msra.mxu0 0.0
    %4668 = vmatprep.subr.mxu0 0.0
    %4669 = vmatpush2.msra.mxu0 0.0
    %4670 = vmatprep.subr.mxu0 0.0
    %4671 = vmatpush2.msra.mxu0 0.0
    %4672 = vmatprep.subr.mxu0 0.0
    %4673 = vmatpush2.msra.mxu0 0.0
    %4674 = vmatprep.subr.mxu0 0.0
    %4675 = vmatpush2.msra.mxu0 0.0
    %4676 = vmatprep.subr.mxu0 0.0
    %4677 = vmatpush2.msra.mxu0 0.0
    %4678 = vmatprep.subr.mxu0 0.0
    %4679 = vmatpush2.msra.mxu0 0.0
    %4680 = vmatprep.subr.mxu0 0.0
    %4681 = vmatpush2.msra.mxu0 0.0
    %4682 = vmatprep.subr.mxu0 0.0
    %4683 = vmatpush2.msra.mxu0 0.0
    %4684 = vmatprep.subr.mxu0 0.0
    %4685 = vmatpush2.msra.mxu0 0.0
    %4686 = vmatprep.subr.mxu0 0.0
    %4687 = vmatpush2.msra.mxu0 0.0
    %4688 = vmatprep.subr.mxu0 0.0
    %4689 = vmatpush2.msra.mxu0 0.0
    %4690 = vmatprep.subr.mxu0 0.0
    %4691 = vmatpush2.msra.mxu0 0.0
    %4692 = vmatprep.mubr.f32.mxu0 0.0
    %v4693 = vand.u32 %v4239, 4294901760
    %4694 = vmatmul.mubr.f32.gmra.mxu0 %v4693
    %v4695 = vpop.f32.mrf.mxu0
    %v4696 = vadd.f32 %v4601, %v4695
    %v4697 = vpop.f32.mrf.mxu0
    %4698 = vdwg.mxu0
    %4699 = vmatprep.subr.mxu0 0.0
    %4700 = vmatpush1.msra.mxu0 0.0
    %4701 = vmatprep.subr.mxu0 0.0
    %4702 = vmatpush1.msra.mxu0 0.0
    %4703 = vmatprep.subr.mxu0 0.0
    %4704 = vmatpush1.msra.mxu0 0.0
    %4705 = vmatprep.subr.mxu0 0.0
    %4706 = vmatpush1.msra.mxu0 0.0
    %4707 = vmatprep.subr.mxu0 0.0
    %4708 = vmatpush1.msra.mxu0 0.0
    %4709 = vmatprep.subr.mxu0 0.0
    %4710 = vmatpush1.msra.mxu0 0.0
    %4711 = vmatprep.subr.mxu0 0.0
    %4712 = vmatpush1.msra.mxu0 0.0
    %4713 = vmatprep.subr.mxu0 0.0
    %4714 = vmatpush1.msra.mxu0 0.0
    %4715 = vmatprep.subr.mxu0 0.0
    %v4716 = vand.u32 %v2591, 4294901760
    %4717 = vmatpush1.msra.mxu0 %v4716
    %4718 = vmatprep.subr.mxu0 0.0
    %v4719 = vand.u32 %v2585, 4294901760
    %4720 = vmatpush1.msra.mxu0 %v4719
    %4721 = vmatprep.subr.mxu0 0.0
    %v4722 = vand.u32 %v2579, 4294901760
    %4723 = vmatpush1.msra.mxu0 %v4722
    %4724 = vmatprep.subr.mxu0 0.0
    %v4725 = vand.u32 %v2573, 4294901760
    %4726 = vmatpush1.msra.mxu0 %v4725
    %4727 = vmatprep.subr.mxu0 0.0
    %v4728 = vand.u32 %v2567, 4294901760
    %4729 = vmatpush1.msra.mxu0 %v4728
    %4730 = vmatprep.subr.mxu0 0.0
    %v4731 = vand.u32 %v2561, 4294901760
    %4732 = vmatpush1.msra.mxu0 %v4731
    %4733 = vmatprep.subr.mxu0 0.0
    %v4734 = vand.u32 %v2555, 4294901760
    %4735 = vmatpush1.msra.mxu0 %v4734
    %4736 = vmatprep.subr.mxu0 0.0
    %v4737 = vand.u32 %v2549, 4294901760
    %4738 = vmatpush1.msra.mxu0 %v4737
    %4739 = vmatprep.subr.mxu0 0.0
    %4740 = vmatpush2.msra.mxu0 0.0
    %4741 = vmatprep.subr.mxu0 0.0
    %4742 = vmatpush2.msra.mxu0 0.0
    %4743 = vmatprep.subr.mxu0 0.0
    %4744 = vmatpush2.msra.mxu0 0.0
    %4745 = vmatprep.subr.mxu0 0.0
    %4746 = vmatpush2.msra.mxu0 0.0
    %4747 = vmatprep.subr.mxu0 0.0
    %4748 = vmatpush2.msra.mxu0 0.0
    %4749 = vmatprep.subr.mxu0 0.0
    %4750 = vmatpush2.msra.mxu0 0.0
    %4751 = vmatprep.subr.mxu0 0.0
    %4752 = vmatpush2.msra.mxu0 0.0
    %4753 = vmatprep.subr.mxu0 0.0
    %4754 = vmatpush2.msra.mxu0 0.0
    %4755 = vmatprep.subr.mxu0 0.0
    %4756 = vmatpush2.msra.mxu0 0.0
    %4757 = vmatprep.subr.mxu0 0.0
    %4758 = vmatpush2.msra.mxu0 0.0
    %4759 = vmatprep.subr.mxu0 0.0
    %4760 = vmatpush2.msra.mxu0 0.0
    %4761 = vmatprep.subr.mxu0 0.0
    %4762 = vmatpush2.msra.mxu0 0.0
    %4763 = vmatprep.subr.mxu0 0.0
    %4764 = vmatpush2.msra.mxu0 0.0
    %4765 = vmatprep.subr.mxu0 0.0
    %4766 = vmatpush2.msra.mxu0 0.0
    %4767 = vmatprep.subr.mxu0 0.0
    %4768 = vmatpush2.msra.mxu0 0.0
    %4769 = vmatprep.subr.mxu0 0.0
    %4770 = vmatpush2.msra.mxu0 0.0
    %4771 = vmatprep.mubr.f32.mxu0 0.0
    %v4772 = vand.u32 %v4239, 4294901760
    %4773 = vmatmul.mubr.f32.gmra.mxu0 %v4772
    %v4774 = vpop.f32.mrf.mxu0
    %v4775 = vadd.f32 %v4696, %v4774
    %v4776 = vpop.f32.mrf.mxu0
    %4777 = vdwg.mxu0
    %4779 = vrot.lane.b32.xlu0 %v4775, 64
    %v4780 = vpop.permute.xlu0 %4779
    %v4782 = vsel %vm1151, %v3685, %v4780
    %4783 = vst [vmem:[#allocation8] sm:$0xff] %v4782
    // Predicated region
    $region26: #{tpu_custom_call.1} parent=1 // pred_check
      _
    $region27: #{tpu_custom_call.1} parent=1 // pred_check_branch
      %4785 = sbr.rel (0) target = $region29
    $region28: #{tpu_custom_call.1} parent=1 // pred_region
      %s4787 = ssub.s32 128, 128
      %4788 = vsyncadd [#allocation4], %s4787
      %s4790 = sshll.u32 [#allocation8], 4
      %s4791 = int_to_ptr.vmem [resolvable:$true] %s4790
      %4793 = dma.vmem_to_hbm [thread:$0]  %s4791, 128, %s3, [#allocation4]
    $region29: #{tpu_custom_call.1} parent=1 // pred_fallthru
      _
    // Predicated region
    $region30: #{tpu_custom_call.1} parent=1 // pred_check
      _
    $region31: #{tpu_custom_call.1} parent=1 // pred_check_branch
      %4795 = sbr.rel (0) target = $region33
    $region32: #{tpu_custom_call.1} parent=1 // pred_region
      %4796 = dma.done [#allocation4], 128
    $region33: #{tpu_custom_call.1} parent=1 // pred_fallthru
      _
    %4797 = vsyncpa [#allocation3], 1
    %4798 = vsyncpa [#allocation6], 1
    %4799 = vsyncpa [#allocation4], 1

</llo_original>
